<compile_context>
chip_gen: v5e
topology: v5e:2x2
jax: 0.10.0
libtpu: 0.0.40
codegen_flags: <defaults>
</compile_context>

<pallas_src>
import functools

import jax
import jax.numpy as jnp
from jax.experimental import pallas as pl
from jax.experimental.pallas import tpu as pltpu


# ---------------------------------------------------------------------------
# Pallas kernel: whole ResnetFC forward for one tile of rows.
# ---------------------------------------------------------------------------
def _resnetfc_kernel(zx_ref,
                     wf_ref, bf_ref,
                     w0_ref, b0_ref,
                     w1_ref, b1_ref,
                     w_out_ref, b_out_ref,
                     out_ref,
                     *, d_hidden, n_blocks):
    # Fused injection: one (TM, d_tot) @ (d_tot, n_blocks*d_hidden) matmul
    # computes linear_input(x_in) + lin_z[0](latent) in column block 0 and
    # lin_z[b](latent) in column block b for b >= 1.
    zx_bf = zx_ref[...].astype(jnp.bfloat16)                      # (TM, d_tot)
    lz_all = jnp.dot(zx_bf, wf_ref[...],
                     preferred_element_type=jnp.float32) + bf_ref[...]

    x = lz_all[:, 0:d_hidden]                                     # f32
    for blk in range(n_blocks):                                   # static unroll
        if blk > 0:
            # latent injection for this block (128-lane-aligned slice)
            x = x + lz_all[:, blk * d_hidden:(blk + 1) * d_hidden]

        # ResnetBlockFC(d_hidden): shortcut is identity (in == out)
        h0 = jnp.maximum(x, 0.0).astype(jnp.bfloat16)
        net = jnp.dot(h0, w0_ref[blk],
                      preferred_element_type=jnp.float32) + b0_ref[blk:blk + 1, :]
        h1 = jnp.maximum(net, 0.0).astype(jnp.bfloat16)
        dx = jnp.dot(h1, w1_ref[blk],
                     preferred_element_type=jnp.float32) + b1_ref[blk:blk + 1, :]
        x = x + dx                                                # f32 residual

    # linear_output (d_out = 4 lanes, stored unpadded)
    ho = jnp.maximum(x, 0.0).astype(jnp.bfloat16)
    out = jnp.dot(ho, w_out_ref[...],
                  preferred_element_type=jnp.float32) + b_out_ref[...]
    out_ref[...] = out.astype(out_ref.dtype)


# ---------------------------------------------------------------------------
# One-time parameter preparation (hoisted out of the per-call path).
# Fuses linear_input + all lin_z into one (d_tot, n_blocks*d_hidden) weight
# and casts all matmul weights to bf16.  Call ONCE and cache the result.
# ---------------------------------------------------------------------------
def prepare_resnetfc_params(params, *, d_latent, n_blocks):
    d_in, d_hidden = params["w_in"].shape
    assert d_hidden % 128 == 0, (
        "fused-injection lane slices require d_hidden to be a multiple of 128")
    assert params["wz"].shape == (n_blocks, d_latent, d_hidden)

    # rows 0..d_latent-1 multiply latent, rows d_latent..d_tot-1 multiply x_in.
    top = jnp.transpose(params["wz"], (1, 0, 2)).reshape(
        d_latent, n_blocks * d_hidden)                       # wz[b] per column blk
    bot = jnp.concatenate(
        [params["w_in"]]
        + [jnp.zeros((d_in, d_hidden), params["w_in"].dtype)] * (n_blocks - 1),
        axis=1)                                              # w_in only in blk 0
    w_fused = jnp.concatenate([top, bot], axis=0)            # (d_tot, NB*H)
    b_fused = jnp.concatenate(
        [params["bz"][0] + params["b_in"][0]]
        + [params["bz"][b] for b in range(1, n_blocks)]).reshape(
            1, n_blocks * d_hidden)

    # bf16 matmul operands; biases stay f32 (added in f32)
    return (w_fused.astype(jnp.bfloat16), b_fused,
            params["w0"].astype(jnp.bfloat16), params["b0"],
            params["w1"].astype(jnp.bfloat16), params["b1"],
            params["w_out"].astype(jnp.bfloat16), params["b_out"])


def _round_up(x, m):
    return ((x + m - 1) // m) * m


def _vmem_limit_bytes(tile_m, d_tot, d_hidden, n_blocks, d_out):
    # Rough per-row f32/bf16 intermediate footprint + weights + slack, then
    # clamp to [32 MiB, 48 MiB] (48 MiB keeps headroom under v7x's 64 MiB).
    per_row = 4 * (2 * d_tot + (n_blocks + 8) * d_hidden + 2 * d_out)
    est = tile_m * per_row + 4 * (1 << 20)
    return int(min(48 << 20, max(32 << 20, 2 * est)))


# ---------------------------------------------------------------------------
# Forward wrapper: builds grid / BlockSpecs only.  `fused` comes from
# prepare_resnetfc_params (computed once, outside the hot path).
# ---------------------------------------------------------------------------
def resnetfc_forward(zx, fused, *, tile_m=1024, vmem_limit_bytes=None):
    n_rows, d_tot = zx.shape
    (w_fused, b_fused, w0, b0, w1, b1, w_out, b_out) = fused
    n_blocks, d_hidden, _ = w0.shape
    d_out = w_out.shape[1]
    assert w_fused.shape == (d_tot, n_blocks * d_hidden)

    # Keep the row tile a multiple of 8 sublanes; never larger than the array.
    tile_m = max(8, min(tile_m, _round_up(n_rows, 8)))
    grid = (pl.cdiv(n_rows, tile_m),)        # partial last block clipped by Pallas

    if vmem_limit_bytes is None:
        vmem_limit_bytes = _vmem_limit_bytes(tile_m, d_tot, d_hidden,
                                             n_blocks, d_out)

    weight_args = (w_fused, b_fused, w0, b0, w1, b1, w_out, b_out)

    def full_spec(arr):
        nd = arr.ndim
        # Constant index_map => weights are DMA'd once and stay resident.
        return pl.BlockSpec(arr.shape, lambda i, _nd=nd: (0,) * _nd)

    kernel = functools.partial(_resnetfc_kernel,
                               d_hidden=d_hidden, n_blocks=n_blocks)

    return pl.pallas_call(
        kernel,
        out_shape=jax.ShapeDtypeStruct((n_rows, d_out), zx.dtype),
        grid_spec=pltpu.PrefetchScalarGridSpec(
            num_scalar_prefetch=0,
            grid=grid,
            in_specs=[pl.BlockSpec((tile_m, d_tot), lambda i: (i, 0))]
                     + [full_spec(w) for w in weight_args],
            out_specs=pl.BlockSpec((tile_m, d_out), lambda i: (i, 0)),
        ),
        compiler_params=pltpu.CompilerParams(
            dimension_semantics=("parallel",),
            vmem_limit_bytes=vmem_limit_bytes),
    )(zx, *weight_args)


# ---------------------------------------------------------------------------
# Pure-JAX reference (mirrors the PyTorch forward exactly).  matmul_dtype lets
# us mirror the kernel's bf16-operand / f32-accumulate matmuls for a tight
# numerical comparison.
# ---------------------------------------------------------------------------
def resnetfc_reference(zx, p, *, d_latent, n_blocks, matmul_dtype=jnp.float32):
    def mm(a, w):
        return jnp.dot(a.astype(matmul_dtype), w.astype(matmul_dtype),
                       preferred_element_type=jnp.float32)

    latent = zx[:, :d_latent]
    x = mm(zx[:, d_latent:], p["w_in"]) + p["b_in"]
    for i in range(n_blocks):
        x = x + (mm(latent, p["wz"][i]) + p["bz"][i])
        net = mm(jnp.maximum(x, 0.0), p["w0"][i]) + p["b0"][i]
        dx = mm(jnp.maximum(net, 0.0), p["w1"][i]) + p["b1"][i]
        x = x + dx
    return mm(jnp.maximum(x, 0.0), p["w_out"]) + p["b_out"]


# ---------------------------------------------------------------------------
# Deterministic parameter construction (shapes from ResnetFC.__init__).
# kaiming_normal(fan_in) ~ N(0, sqrt(2/fan_in)).
# NOTE: PyTorch init zeros fc_1.weight and all biases; we use small random
# values instead so the residual matmul path and the fused-bias path are
# numerically exercised (forward semantics are identical for any values).
# ---------------------------------------------------------------------------
def make_params(key, *, d_in, d_latent, d_hidden, d_out, n_blocks):
    keys = jax.random.split(key, 10)

    def kaiming(k, fan_in, shape):
        return jax.random.normal(k, shape, jnp.float32) * jnp.sqrt(2.0 / fan_in)

    def small(k, shape):
        return jax.random.normal(k, shape, jnp.float32) * 0.01

    return {
        # linear_input:  (d_in -> d_hidden), stored transposed
        "w_in": kaiming(keys[0], d_in, (d_in, d_hidden)),
        "b_in": small(keys[1], (1, d_hidden)),
        # lin_z[i]: (d_latent -> d_hidden)
        "wz": kaiming(keys[2], d_latent, (n_blocks, d_latent, d_hidden)),
        "bz": small(keys[3], (n_blocks, d_hidden)),
        # ResnetBlockFC fc_0: (d_hidden -> d_hidden)
        "w0": kaiming(keys[4], d_hidden, (n_blocks, d_hidden, d_hidden)),
        "b0": small(keys[5], (n_blocks, d_hidden)),
        # ResnetBlockFC fc_1: (d_hidden -> d_hidden)  (PyTorch init: zeros)
        "w1": kaiming(keys[6], d_hidden, (n_blocks, d_hidden, d_hidden)) * 0.1,
        "b1": small(keys[7], (n_blocks, d_hidden)),
        # linear_output: (d_hidden -> d_out)
        "w_out": kaiming(keys[8], d_hidden, (d_hidden, d_out)),
        "b_out": small(keys[9], (1, d_out)),
    }


if __name__ == "__main__":
    # Small shapes consistent with the module's forward: zx = [N, d_latent+d_in].
    # N_ROWS deliberately NOT a multiple of TILE_M to exercise the clipped
    # partial-block path that replaced the jnp.pad round-trip.
    D_IN, D_LATENT, D_HIDDEN, D_OUT, N_BLOCKS = 24, 40, 128, 4, 3
    N_ROWS, TILE_M = 2000, 512

    key = jax.random.PRNGKey(0)
    k_zx, k_p = jax.random.split(key)
    zx = jax.random.normal(k_zx, (N_ROWS, D_LATENT + D_IN), jnp.float32)
    params = make_params(k_p, d_in=D_IN, d_latent=D_LATENT,
                         d_hidden=D_HIDDEN, d_out=D_OUT, n_blocks=N_BLOCKS)

    # One-time weight fusion + bf16 cast, cached; NOT part of the per-call path.
    fused = prepare_resnetfc_params(params, d_latent=D_LATENT, n_blocks=N_BLOCKS)
    fused = tuple(jax.block_until_ready(w) for w in fused)

    out = resnetfc_forward(zx, fused, tile_m=TILE_M)
    out = jax.block_until_ready(out)
    assert out.shape == (N_ROWS, D_OUT)

    # Tight check vs a reference that mirrors the kernel's bf16-operand /
    # f32-accumulate matmuls (validates the injection fusion, block math and
    # the clipped tail block).
    ref_bf16 = resnetfc_reference(zx, params, d_latent=D_LATENT,
                                  n_blocks=N_BLOCKS, matmul_dtype=jnp.bfloat16)
    assert jnp.allclose(out, ref_bf16, rtol=1e-3, atol=1e-3), \
        f"bf16-matched max abs err {jnp.max(jnp.abs(out - ref_bf16))}"

    # Loose semantic check vs the full-f32 reference (bf16 quantization drift).
    ref_f32 = resnetfc_reference(zx, params, d_latent=D_LATENT,
                                 n_blocks=N_BLOCKS, matmul_dtype=jnp.float32)
    scale = jnp.maximum(1.0, jnp.max(jnp.abs(ref_f32)))
    rel_err = jnp.max(jnp.abs(out - ref_f32)) / scale
    assert rel_err < 0.03, f"f32-reference normalized max err {rel_err}"

    # TODO(synk): combine_interleaved (combine_layer < n_blocks), use_spade,
    # and Softplus (beta > 0) branches are not exercised in this configuration.
    print("KERNEL_OK")
</pallas_src>

<mosaic_0001>
module attributes {stable_mosaic.version = 11 : i64} {
  func.func @_resnetfc_kernel(%arg0: i32, %arg1: memref<512x64xf32, #tpu.memory_space<vmem>>, %arg2: memref<64x384xbf16, #tpu.memory_space<vmem>>, %arg3: memref<1x384xf32, #tpu.memory_space<vmem>>, %arg4: memref<3x128x128xbf16, #tpu.memory_space<vmem>>, %arg5: memref<3x128xf32, #tpu.memory_space<vmem>>, %arg6: memref<3x128x128xbf16, #tpu.memory_space<vmem>>, %arg7: memref<3x128xf32, #tpu.memory_space<vmem>>, %arg8: memref<128x4xbf16, #tpu.memory_space<vmem>>, %arg9: memref<1x4xf32, #tpu.memory_space<vmem>>, %arg10: memref<512x4xf32, #tpu.memory_space<vmem>>) attributes {dimension_semantics = [#tpu.dimension_semantics<parallel>], iteration_bounds = array<i64: 4>, scalar_prefetch = 0 : i64, scratch_operands = 0 : i64, tpu.core_type = #tpu.core_type<tc>, window_params = [{transform_indices = @transform_0, window_bounds = array<i64: 512, 64>}, {pipeline_mode = #tpu.pipeline_mode<synchronous>, transform_indices = @transform_1, window_bounds = array<i64: 64, 384>}, {pipeline_mode = #tpu.pipeline_mode<synchronous>, transform_indices = @transform_2, window_bounds = array<i64: 1, 384>}, {pipeline_mode = #tpu.pipeline_mode<synchronous>, transform_indices = @transform_3, window_bounds = array<i64: 3, 128, 128>}, {pipeline_mode = #tpu.pipeline_mode<synchronous>, transform_indices = @transform_4, window_bounds = array<i64: 3, 128>}, {pipeline_mode = #tpu.pipeline_mode<synchronous>, transform_indices = @transform_5, window_bounds = array<i64: 3, 128, 128>}, {pipeline_mode = #tpu.pipeline_mode<synchronous>, transform_indices = @transform_6, window_bounds = array<i64: 3, 128>}, {pipeline_mode = #tpu.pipeline_mode<synchronous>, transform_indices = @transform_7, window_bounds = array<i64: 128, 4>}, {pipeline_mode = #tpu.pipeline_mode<synchronous>, transform_indices = @transform_8, window_bounds = array<i64: 1, 4>}, {transform_indices = @transform_9, window_bounds = array<i64: 512, 4>}]} {
    %c0 = arith.constant 0 : index
    %c0_0 = arith.constant 0 : index
    %0 = vector.load %arg1[%c0, %c0_0] : memref<512x64xf32, #tpu.memory_space<vmem>>, vector<512x64xf32>
    %1 = arith.truncf %0 : vector<512x64xf32> to vector<512x64xbf16>
    %c0_1 = arith.constant 0 : index
    %c0_2 = arith.constant 0 : index
    %2 = vector.load %arg2[%c0_1, %c0_2] : memref<64x384xbf16, #tpu.memory_space<vmem>>, vector<64x384xbf16>
    %cst = arith.constant dense<0.000000e+00> : vector<512x384xf32>
    %3 = tpu.matmul %1, %2, %cst {dimension_numbers = #tpu.dot_dimension_numbers<[1], [0], [0], [1], [0, 0, 1, 1], [], []>} : vector<512x64xbf16>, vector<64x384xbf16>, vector<512x384xf32> -> vector<512x384xf32>
    %c0_3 = arith.constant 0 : index
    %c0_4 = arith.constant 0 : index
    %4 = vector.load %arg3[%c0_3, %c0_4] : memref<1x384xf32, #tpu.memory_space<vmem>>, vector<1x384xf32>
    %5 = vector.broadcast %4 : vector<1x384xf32> to vector<512x384xf32>
    %6 = arith.addf %3, %5 : vector<512x384xf32>
    %7 = vector.extract_strided_slice %6 {offsets = [0, 0], sizes = [512, 128], strides = [1, 1]} : vector<512x384xf32> to vector<512x128xf32>
    %cst_5 = arith.constant 0.000000e+00 : f32
    %8 = vector.broadcast %cst_5 : f32 to vector<512x128xf32>
    %9 = arith.maximumf %7, %8 : vector<512x128xf32>
    %10 = arith.truncf %9 : vector<512x128xf32> to vector<512x128xbf16>
    %c0_6 = arith.constant 0 : index
    %c0_7 = arith.constant 0 : index
    %c0_8 = arith.constant 0 : index
    %11 = vector.load %arg4[%c0_6, %c0_7, %c0_8] : memref<3x128x128xbf16, #tpu.memory_space<vmem>>, vector<1x128x128xbf16>
    %12 = vector.shape_cast %11 : vector<1x128x128xbf16> to vector<128x128xbf16>
    %cst_9 = arith.constant dense<0.000000e+00> : vector<512x128xf32>
    %13 = tpu.matmul %10, %12, %cst_9 {dimension_numbers = #tpu.dot_dimension_numbers<[1], [0], [0], [1], [0, 0, 1, 1], [], []>} : vector<512x128xbf16>, vector<128x128xbf16>, vector<512x128xf32> -> vector<512x128xf32>
    %c0_10 = arith.constant 0 : index
    %c0_11 = arith.constant 0 : index
    %14 = vector.load %arg5[%c0_10, %c0_11] : memref<3x128xf32, #tpu.memory_space<vmem>>, vector<1x128xf32>
    %15 = vector.broadcast %14 : vector<1x128xf32> to vector<512x128xf32>
    %16 = arith.addf %13, %15 : vector<512x128xf32>
    %cst_12 = arith.constant 0.000000e+00 : f32
    %17 = vector.broadcast %cst_12 : f32 to vector<512x128xf32>
    %18 = arith.maximumf %16, %17 : vector<512x128xf32>
    %19 = arith.truncf %18 : vector<512x128xf32> to vector<512x128xbf16>
    %c0_13 = arith.constant 0 : index
    %c0_14 = arith.constant 0 : index
    %c0_15 = arith.constant 0 : index
    %20 = vector.load %arg6[%c0_13, %c0_14, %c0_15] : memref<3x128x128xbf16, #tpu.memory_space<vmem>>, vector<1x128x128xbf16>
    %21 = vector.shape_cast %20 : vector<1x128x128xbf16> to vector<128x128xbf16>
    %cst_16 = arith.constant dense<0.000000e+00> : vector<512x128xf32>
    %22 = tpu.matmul %19, %21, %cst_16 {dimension_numbers = #tpu.dot_dimension_numbers<[1], [0], [0], [1], [0, 0, 1, 1], [], []>} : vector<512x128xbf16>, vector<128x128xbf16>, vector<512x128xf32> -> vector<512x128xf32>
    %c0_17 = arith.constant 0 : index
    %c0_18 = arith.constant 0 : index
    %23 = vector.load %arg7[%c0_17, %c0_18] : memref<3x128xf32, #tpu.memory_space<vmem>>, vector<1x128xf32>
    %24 = vector.broadcast %23 : vector<1x128xf32> to vector<512x128xf32>
    %25 = arith.addf %22, %24 : vector<512x128xf32>
    %26 = arith.addf %7, %25 : vector<512x128xf32>
    %27 = vector.extract_strided_slice %6 {offsets = [0, 128], sizes = [512, 128], strides = [1, 1]} : vector<512x384xf32> to vector<512x128xf32>
    %28 = arith.addf %26, %27 : vector<512x128xf32>
    %cst_19 = arith.constant 0.000000e+00 : f32
    %29 = vector.broadcast %cst_19 : f32 to vector<512x128xf32>
    %30 = arith.maximumf %28, %29 : vector<512x128xf32>
    %31 = arith.truncf %30 : vector<512x128xf32> to vector<512x128xbf16>
    %c1 = arith.constant 1 : index
    %c0_20 = arith.constant 0 : index
    %c0_21 = arith.constant 0 : index
    %32 = vector.load %arg4[%c1, %c0_20, %c0_21] : memref<3x128x128xbf16, #tpu.memory_space<vmem>>, vector<1x128x128xbf16>
    %33 = vector.shape_cast %32 : vector<1x128x128xbf16> to vector<128x128xbf16>
    %cst_22 = arith.constant dense<0.000000e+00> : vector<512x128xf32>
    %34 = tpu.matmul %31, %33, %cst_22 {dimension_numbers = #tpu.dot_dimension_numbers<[1], [0], [0], [1], [0, 0, 1, 1], [], []>} : vector<512x128xbf16>, vector<128x128xbf16>, vector<512x128xf32> -> vector<512x128xf32>
    %c1_23 = arith.constant 1 : index
    %c0_24 = arith.constant 0 : index
    %35 = vector.load %arg5[%c1_23, %c0_24] : memref<3x128xf32, #tpu.memory_space<vmem>>, vector<1x128xf32>
    %36 = vector.broadcast %35 : vector<1x128xf32> to vector<512x128xf32>
    %37 = arith.addf %34, %36 : vector<512x128xf32>
    %cst_25 = arith.constant 0.000000e+00 : f32
    %38 = vector.broadcast %cst_25 : f32 to vector<512x128xf32>
    %39 = arith.maximumf %37, %38 : vector<512x128xf32>
    %40 = arith.truncf %39 : vector<512x128xf32> to vector<512x128xbf16>
    %c1_26 = arith.constant 1 : index
    %c0_27 = arith.constant 0 : index
    %c0_28 = arith.constant 0 : index
    %41 = vector.load %arg6[%c1_26, %c0_27, %c0_28] : memref<3x128x128xbf16, #tpu.memory_space<vmem>>, vector<1x128x128xbf16>
    %42 = vector.shape_cast %41 : vector<1x128x128xbf16> to vector<128x128xbf16>
    %cst_29 = arith.constant dense<0.000000e+00> : vector<512x128xf32>
    %43 = tpu.matmul %40, %42, %cst_29 {dimension_numbers = #tpu.dot_dimension_numbers<[1], [0], [0], [1], [0, 0, 1, 1], [], []>} : vector<512x128xbf16>, vector<128x128xbf16>, vector<512x128xf32> -> vector<512x128xf32>
    %c1_30 = arith.constant 1 : index
    %c0_31 = arith.constant 0 : index
    %44 = vector.load %arg7[%c1_30, %c0_31] : memref<3x128xf32, #tpu.memory_space<vmem>>, vector<1x128xf32>
    %45 = vector.broadcast %44 : vector<1x128xf32> to vector<512x128xf32>
    %46 = arith.addf %43, %45 : vector<512x128xf32>
    %47 = arith.addf %28, %46 : vector<512x128xf32>
    %48 = vector.extract_strided_slice %6 {offsets = [0, 256], sizes = [512, 128], strides = [1, 1]} : vector<512x384xf32> to vector<512x128xf32>
    %49 = arith.addf %47, %48 : vector<512x128xf32>
    %cst_32 = arith.constant 0.000000e+00 : f32
    %50 = vector.broadcast %cst_32 : f32 to vector<512x128xf32>
    %51 = arith.maximumf %49, %50 : vector<512x128xf32>
    %52 = arith.truncf %51 : vector<512x128xf32> to vector<512x128xbf16>
    %c2 = arith.constant 2 : index
    %c0_33 = arith.constant 0 : index
    %c0_34 = arith.constant 0 : index
    %53 = vector.load %arg4[%c2, %c0_33, %c0_34] : memref<3x128x128xbf16, #tpu.memory_space<vmem>>, vector<1x128x128xbf16>
    %54 = vector.shape_cast %53 : vector<1x128x128xbf16> to vector<128x128xbf16>
    %cst_35 = arith.constant dense<0.000000e+00> : vector<512x128xf32>
    %55 = tpu.matmul %52, %54, %cst_35 {dimension_numbers = #tpu.dot_dimension_numbers<[1], [0], [0], [1], [0, 0, 1, 1], [], []>} : vector<512x128xbf16>, vector<128x128xbf16>, vector<512x128xf32> -> vector<512x128xf32>
    %c2_36 = arith.constant 2 : index
    %c0_37 = arith.constant 0 : index
    %56 = vector.load %arg5[%c2_36, %c0_37] : memref<3x128xf32, #tpu.memory_space<vmem>>, vector<1x128xf32>
    %57 = vector.broadcast %56 : vector<1x128xf32> to vector<512x128xf32>
    %58 = arith.addf %55, %57 : vector<512x128xf32>
    %cst_38 = arith.constant 0.000000e+00 : f32
    %59 = vector.broadcast %cst_38 : f32 to vector<512x128xf32>
    %60 = arith.maximumf %58, %59 : vector<512x128xf32>
    %61 = arith.truncf %60 : vector<512x128xf32> to vector<512x128xbf16>
    %c2_39 = arith.constant 2 : index
    %c0_40 = arith.constant 0 : index
    %c0_41 = arith.constant 0 : index
    %62 = vector.load %arg6[%c2_39, %c0_40, %c0_41] : memref<3x128x128xbf16, #tpu.memory_space<vmem>>, vector<1x128x128xbf16>
    %63 = vector.shape_cast %62 : vector<1x128x128xbf16> to vector<128x128xbf16>
    %cst_42 = arith.constant dense<0.000000e+00> : vector<512x128xf32>
    %64 = tpu.matmul %61, %63, %cst_42 {dimension_numbers = #tpu.dot_dimension_numbers<[1], [0], [0], [1], [0, 0, 1, 1], [], []>} : vector<512x128xbf16>, vector<128x128xbf16>, vector<512x128xf32> -> vector<512x128xf32>
    %c2_43 = arith.constant 2 : index
    %c0_44 = arith.constant 0 : index
    %65 = vector.load %arg7[%c2_43, %c0_44] : memref<3x128xf32, #tpu.memory_space<vmem>>, vector<1x128xf32>
    %66 = vector.broadcast %65 : vector<1x128xf32> to vector<512x128xf32>
    %67 = arith.addf %64, %66 : vector<512x128xf32>
    %68 = arith.addf %49, %67 : vector<512x128xf32>
    %cst_45 = arith.constant 0.000000e+00 : f32
    %69 = vector.broadcast %cst_45 : f32 to vector<512x128xf32>
    %70 = arith.maximumf %68, %69 : vector<512x128xf32>
    %71 = arith.truncf %70 : vector<512x128xf32> to vector<512x128xbf16>
    %c0_46 = arith.constant 0 : index
    %c0_47 = arith.constant 0 : index
    %72 = vector.load %arg8[%c0_46, %c0_47] : memref<128x4xbf16, #tpu.memory_space<vmem>>, vector<128x4xbf16>
    %cst_48 = arith.constant dense<0.000000e+00> : vector<512x4xf32>
    %73 = tpu.matmul %71, %72, %cst_48 {dimension_numbers = #tpu.dot_dimension_numbers<[1], [0], [0], [1], [0, 0, 1, 1], [], []>} : vector<512x128xbf16>, vector<128x4xbf16>, vector<512x4xf32> -> vector<512x4xf32>
    %c0_49 = arith.constant 0 : index
    %c0_50 = arith.constant 0 : index
    %74 = vector.load %arg9[%c0_49, %c0_50] : memref<1x4xf32, #tpu.memory_space<vmem>>, vector<1x4xf32>
    %75 = vector.broadcast %74 : vector<1x4xf32> to vector<512x4xf32>
    %76 = arith.addf %73, %75 : vector<512x4xf32>
    %c0_51 = arith.constant 0 : index
    %c0_52 = arith.constant 0 : index
    %77 = vector.load %arg10[%c0_51, %c0_52] : memref<512x4xf32, #tpu.memory_space<vmem>>, vector<512x4xf32>
    tpu.vector_store %arg10[%c0_51, %c0_52], %76 {strides = array<i32>} : memref<512x4xf32, #tpu.memory_space<vmem>>, vector<512x4xf32>,
    return
  }
  func.func @transform_0(%arg0: i32) -> (i32, i32) {
    %c0_i32 = arith.constant 0 : i32
    %c0_i32_0 = arith.constant 0 : i32
    return %arg0, %c0_i32 : i32, i32
  }
  func.func @transform_1(%arg0: i32) -> (i32, i32) {
    %c0_i32 = arith.constant 0 : i32
    %c0_i32_0 = arith.constant 0 : i32
    %c0_i32_1 = arith.constant 0 : i32
    return %c0_i32, %c0_i32_0 : i32, i32
  }
  func.func @transform_2(%arg0: i32) -> (i32, i32) {
    %c0_i32 = arith.constant 0 : i32
    %c0_i32_0 = arith.constant 0 : i32
    %c0_i32_1 = arith.constant 0 : i32
    return %c0_i32, %c0_i32_0 : i32, i32
  }
  func.func @transform_3(%arg0: i32) -> (i32, i32, i32) {
    %c0_i32 = arith.constant 0 : i32
    %c0_i32_0 = arith.constant 0 : i32
    %c0_i32_1 = arith.constant 0 : i32
    %c0_i32_2 = arith.constant 0 : i32
    return %c0_i32, %c0_i32_0, %c0_i32_1 : i32, i32, i32
  }
  func.func @transform_4(%arg0: i32) -> (i32, i32) {
    %c0_i32 = arith.constant 0 : i32
    %c0_i32_0 = arith.constant 0 : i32
    %c0_i32_1 = arith.constant 0 : i32
    return %c0_i32, %c0_i32_0 : i32, i32
  }
  func.func @transform_5(%arg0: i32) -> (i32, i32, i32) {
    %c0_i32 = arith.constant 0 : i32
    %c0_i32_0 = arith.constant 0 : i32
    %c0_i32_1 = arith.constant 0 : i32
    %c0_i32_2 = arith.constant 0 : i32
    return %c0_i32, %c0_i32_0, %c0_i32_1 : i32, i32, i32
  }
  func.func @transform_6(%arg0: i32) -> (i32, i32) {
    %c0_i32 = arith.constant 0 : i32
    %c0_i32_0 = arith.constant 0 : i32
    %c0_i32_1 = arith.constant 0 : i32
    return %c0_i32, %c0_i32_0 : i32, i32
  }
  func.func @transform_7(%arg0: i32) -> (i32, i32) {
    %c0_i32 = arith.constant 0 : i32
    %c0_i32_0 = arith.constant 0 : i32
    %c0_i32_1 = arith.constant 0 : i32
    return %c0_i32, %c0_i32_0 : i32, i32
  }
  func.func @transform_8(%arg0: i32) -> (i32, i32) {
    %c0_i32 = arith.constant 0 : i32
    %c0_i32_0 = arith.constant 0 : i32
    %c0_i32_1 = arith.constant 0 : i32
    return %c0_i32, %c0_i32_0 : i32, i32
  }
  func.func @transform_9(%arg0: i32) -> (i32, i32) {
    %c0_i32 = arith.constant 0 : i32
    %c0_i32_0 = arith.constant 0 : i32
    return %arg0, %c0_i32 : i32, i32
  }
}

</mosaic_0001>

<llo_original>
// kernel: tpu_custom_call.1
$region0: #{tpu_custom_call.1}
  #allocation0 [shape = 'u32[]', space=smem, size = 0x4, offset = 0x4, fixed_abs, tag = 'smem constant byte address 0x4 - core index']
  #allocation1 [shape = 'u32[72,128]{1,0:T(1,128)}', space=vmem, size = 0x9000, scoped, tag = 'internal scratch']
  %s0 = inlined_call_operand.vmem [shape: f32[2000,64], index: 0, kind: input, shape index: {}]
  %s1 = inlined_call_operand.vmem [shape: bf16[64,384], index: 1, kind: input, shape index: {}]
  %s2 = inlined_call_operand.vmem [shape: f32[1,384], index: 2, kind: input, shape index: {}]
  %s3 = inlined_call_operand.vmem [shape: bf16[3,128,128], index: 3, kind: input, shape index: {}]
  %s4 = inlined_call_operand.vmem [shape: f32[3,128], index: 4, kind: input, shape index: {}]
  %s5 = inlined_call_operand.vmem [shape: bf16[3,128,128], index: 5, kind: input, shape index: {}]
  %s6 = inlined_call_operand.vmem [shape: f32[3,128], index: 6, kind: input, shape index: {}]
  %s7 = inlined_call_operand.vmem [shape: bf16[128,4], index: 7, kind: input, shape index: {}]
  %s8 = inlined_call_operand.vmem [shape: f32[1,4], index: 8, kind: input, shape index: {}]
  %s9 = inlined_call_operand.vmem [shape: f32[2000,4], index: 9, kind: output, shape index: {}]
  %s10 = sld [smem:[#allocation0]]
  $region117: #{tpu_custom_call.1} parent=0
    _
  %s12 = ssub.s32 1, %s10
  %s13 = scalar_select 0, %s12, %s10
  $region1: #{tpu_custom_call.1} parent=0
    #allocation2 [shape = 'u8[524288]{0}', space=vmem, size = 0x80000, scoped, tag = 'output window, operand 0']
    loop: start=0, step=1, limit=6
    $region2: #{tpu_custom_call.1} parent=1 // loop_pre_header
      _
    $region3: #{tpu_custom_call.1} parent=1 // loop_header
      %s15 = sphi 0, %s19
      %p16 = scmp.ge.s32.totalorder %s15, 6
      %s25 = sphi 0, %s27
      %s28 = sphi 0, %s25
      %s29 = sphi 0, %s28
      %s45 = sphi 0, %s29
      %s49 = sphi 0, %s49
      %s51 = sphi 0, %s49
      %s52 = sphi 0, %s51
      %s66 = sphi 0, %s52
      %s70 = sphi 0, %s70
      %s72 = sphi 0, %s70
      %s73 = sphi 0, %s72
      %s87 = sphi 0, %s73
      %s91 = sphi 0, %s91
      %s93 = sphi 0, %s91
      %s94 = sphi 0, %s93
      %s108 = sphi 0, %s94
      %s112 = sphi 0, %s112
      %s114 = sphi 0, %s112
      %s115 = sphi 0, %s114
      %s129 = sphi 0, %s115
      %s133 = sphi 0, %s133
      %s135 = sphi 0, %s133
      %s136 = sphi 0, %s135
      %s150 = sphi 0, %s136
      %s154 = sphi 0, %s154
      %s156 = sphi 0, %s154
      %s157 = sphi 0, %s156
      %s171 = sphi 0, %s157
      %s175 = sphi 0, %s175
      %s177 = sphi 0, %s175
      %s178 = sphi 0, %s177
      %s192 = sphi 0, %s178
      %s196 = sphi 0, %s196
      %s198 = sphi 0, %s196
      %s199 = sphi 0, %s198
      %s213 = sphi 0, %s199
      %s219 = sphi 0, %s221
      %s222 = sphi 0, %s219
      %s223 = sphi 0, %s222
      %s239 = sphi 0, %s223
    $region4: #{tpu_custom_call.1} parent=1 // loop_header_branch
      %18 = sbr.rel (%p16) target = $region8
    $region5: #{tpu_custom_call.1} parent=1 // loop_body
      %s20 = ssub.s32 %s15, 1
      %s21 = ssub.s32 %s15, 2
      %s22 = sadd.s32 %s15, 1
      %s23 = ssub.s32 %s15, %s22
      %p24 = scmp.eq.s32.totalorder %s23, 0
      %s26 = sadd.s32 %s25, 1
      %s27 = scalar_select %p24, %s25, %s26
      %p30 = pneg %p24
      %p31 = scmp.eq.s32.totalorder %s15, 3
      %p32 = por %p30, %p31
      %p33 = scmp.ne.s32.totalorder %s25, %s28
      %p34 = scmp.eq.s32.totalorder %s15, 0
      %p35 = por %p33, %p34
      %p36 = scmp.ne.s32.totalorder %s25, %s28
      %p37 = scmp.eq.s32.totalorder %s20, 3
      %p38 = por %p36, %p37
      %p39 = scmp.ne.s32.totalorder %s28, %s29
      %p40 = scmp.eq.s32.totalorder %s20, 0
      %p41 = por %p39, %p40
      %p42 = scmp.ne.s32.totalorder %s28, %s29
      %p43 = scmp.eq.s32.totalorder %s21, 3
      %p44 = por %p42, %p43
      %p46 = scmp.ne.s32.totalorder %s29, %s45
      %p47 = scmp.eq.s32.totalorder %s21, 0
      %p48 = por %p46, %p47
      %s50 = sadd.s32 %s49, 1
      %p53 = scmp.eq.s32.totalorder %s15, 3
      %p54 = scmp.ne.s32.totalorder %s49, %s51
      %p55 = scmp.eq.s32.totalorder %s15, 0
      %p56 = por %p54, %p55
      %p57 = scmp.ne.s32.totalorder %s49, %s51
      %p58 = scmp.eq.s32.totalorder %s20, 3
      %p59 = por %p57, %p58
      %p60 = scmp.ne.s32.totalorder %s51, %s52
      %p61 = scmp.eq.s32.totalorder %s20, 0
      %p62 = por %p60, %p61
      %p63 = scmp.ne.s32.totalorder %s51, %s52
      %p64 = scmp.eq.s32.totalorder %s21, 3
      %p65 = por %p63, %p64
      %p67 = scmp.ne.s32.totalorder %s52, %s66
      %p68 = scmp.eq.s32.totalorder %s21, 0
      %p69 = por %p67, %p68
      %s71 = sadd.s32 %s70, 1
      %p74 = scmp.eq.s32.totalorder %s15, 3
      %p75 = scmp.ne.s32.totalorder %s70, %s72
      %p76 = scmp.eq.s32.totalorder %s15, 0
      %p77 = por %p75, %p76
      %p78 = scmp.ne.s32.totalorder %s70, %s72
      %p79 = scmp.eq.s32.totalorder %s20, 3
      %p80 = por %p78, %p79
      %p81 = scmp.ne.s32.totalorder %s72, %s73
      %p82 = scmp.eq.s32.totalorder %s20, 0
      %p83 = por %p81, %p82
      %p84 = scmp.ne.s32.totalorder %s72, %s73
      %p85 = scmp.eq.s32.totalorder %s21, 3
      %p86 = por %p84, %p85
      %p88 = scmp.ne.s32.totalorder %s73, %s87
      %p89 = scmp.eq.s32.totalorder %s21, 0
      %p90 = por %p88, %p89
      %s92 = sadd.s32 %s91, 1
      %p95 = scmp.eq.s32.totalorder %s15, 3
      %p96 = scmp.ne.s32.totalorder %s91, %s93
      %p97 = scmp.eq.s32.totalorder %s15, 0
      %p98 = por %p96, %p97
      %p99 = scmp.ne.s32.totalorder %s91, %s93
      %p100 = scmp.eq.s32.totalorder %s20, 3
      %p101 = por %p99, %p100
      %p102 = scmp.ne.s32.totalorder %s93, %s94
      %p103 = scmp.eq.s32.totalorder %s20, 0
      %p104 = por %p102, %p103
      %p105 = scmp.ne.s32.totalorder %s93, %s94
      %p106 = scmp.eq.s32.totalorder %s21, 3
      %p107 = por %p105, %p106
      %p109 = scmp.ne.s32.totalorder %s94, %s108
      %p110 = scmp.eq.s32.totalorder %s21, 0
      %p111 = por %p109, %p110
      %s113 = sadd.s32 %s112, 1
      %p116 = scmp.eq.s32.totalorder %s15, 3
      %p117 = scmp.ne.s32.totalorder %s112, %s114
      %p118 = scmp.eq.s32.totalorder %s15, 0
      %p119 = por %p117, %p118
      %p120 = scmp.ne.s32.totalorder %s112, %s114
      %p121 = scmp.eq.s32.totalorder %s20, 3
      %p122 = por %p120, %p121
      %p123 = scmp.ne.s32.totalorder %s114, %s115
      %p124 = scmp.eq.s32.totalorder %s20, 0
      %p125 = por %p123, %p124
      %p126 = scmp.ne.s32.totalorder %s114, %s115
      %p127 = scmp.eq.s32.totalorder %s21, 3
      %p128 = por %p126, %p127
      %p130 = scmp.ne.s32.totalorder %s115, %s129
      %p131 = scmp.eq.s32.totalorder %s21, 0
      %p132 = por %p130, %p131
      %s134 = sadd.s32 %s133, 1
      %p137 = scmp.eq.s32.totalorder %s15, 3
      %p138 = scmp.ne.s32.totalorder %s133, %s135
      %p139 = scmp.eq.s32.totalorder %s15, 0
      %p140 = por %p138, %p139
      %p141 = scmp.ne.s32.totalorder %s133, %s135
      %p142 = scmp.eq.s32.totalorder %s20, 3
      %p143 = por %p141, %p142
      %p144 = scmp.ne.s32.totalorder %s135, %s136
      %p145 = scmp.eq.s32.totalorder %s20, 0
      %p146 = por %p144, %p145
      %p147 = scmp.ne.s32.totalorder %s135, %s136
      %p148 = scmp.eq.s32.totalorder %s21, 3
      %p149 = por %p147, %p148
      %p151 = scmp.ne.s32.totalorder %s136, %s150
      %p152 = scmp.eq.s32.totalorder %s21, 0
      %p153 = por %p151, %p152
      %s155 = sadd.s32 %s154, 1
      %p158 = scmp.eq.s32.totalorder %s15, 3
      %p159 = scmp.ne.s32.totalorder %s154, %s156
      %p160 = scmp.eq.s32.totalorder %s15, 0
      %p161 = por %p159, %p160
      %p162 = scmp.ne.s32.totalorder %s154, %s156
      %p163 = scmp.eq.s32.totalorder %s20, 3
      %p164 = por %p162, %p163
      %p165 = scmp.ne.s32.totalorder %s156, %s157
      %p166 = scmp.eq.s32.totalorder %s20, 0
      %p167 = por %p165, %p166
      %p168 = scmp.ne.s32.totalorder %s156, %s157
      %p169 = scmp.eq.s32.totalorder %s21, 3
      %p170 = por %p168, %p169
      %p172 = scmp.ne.s32.totalorder %s157, %s171
      %p173 = scmp.eq.s32.totalorder %s21, 0
      %p174 = por %p172, %p173
      %s176 = sadd.s32 %s175, 1
      %p179 = scmp.eq.s32.totalorder %s15, 3
      %p180 = scmp.ne.s32.totalorder %s175, %s177
      %p181 = scmp.eq.s32.totalorder %s15, 0
      %p182 = por %p180, %p181
      %p183 = scmp.ne.s32.totalorder %s175, %s177
      %p184 = scmp.eq.s32.totalorder %s20, 3
      %p185 = por %p183, %p184
      %p186 = scmp.ne.s32.totalorder %s177, %s178
      %p187 = scmp.eq.s32.totalorder %s20, 0
      %p188 = por %p186, %p187
      %p189 = scmp.ne.s32.totalorder %s177, %s178
      %p190 = scmp.eq.s32.totalorder %s21, 3
      %p191 = por %p189, %p190
      %p193 = scmp.ne.s32.totalorder %s178, %s192
      %p194 = scmp.eq.s32.totalorder %s21, 0
      %p195 = por %p193, %p194
      %s197 = sadd.s32 %s196, 1
      %p200 = scmp.eq.s32.totalorder %s15, 3
      %p201 = scmp.ne.s32.totalorder %s196, %s198
      %p202 = scmp.eq.s32.totalorder %s15, 0
      %p203 = por %p201, %p202
      %p204 = scmp.ne.s32.totalorder %s196, %s198
      %p205 = scmp.eq.s32.totalorder %s20, 3
      %p206 = por %p204, %p205
      %p207 = scmp.ne.s32.totalorder %s198, %s199
      %p208 = scmp.eq.s32.totalorder %s20, 0
      %p209 = por %p207, %p208
      %p210 = scmp.ne.s32.totalorder %s198, %s199
      %p211 = scmp.eq.s32.totalorder %s21, 3
      %p212 = por %p210, %p211
      %p214 = scmp.ne.s32.totalorder %s199, %s213
      %p215 = scmp.eq.s32.totalorder %s21, 0
      %p216 = por %p214, %p215
      %s217 = ssub.s32 %s15, %s22
      %p218 = scmp.eq.s32.totalorder %s217, 0
      %s220 = sadd.s32 %s219, 1
      %s221 = scalar_select %p218, %s219, %s220
      %p224 = pneg %p218
      %p225 = scmp.eq.s32.totalorder %s15, 3
      %p226 = por %p224, %p225
      %p227 = scmp.ne.s32.totalorder %s219, %s222
      %p228 = scmp.eq.s32.totalorder %s15, 0
      %p229 = por %p227, %p228
      %p230 = scmp.ne.s32.totalorder %s219, %s222
      %p231 = scmp.eq.s32.totalorder %s20, 3
      %p232 = por %p230, %p231
      %p233 = scmp.ne.s32.totalorder %s222, %s223
      %p234 = scmp.eq.s32.totalorder %s20, 0
      %p235 = por %p233, %p234
      %p236 = scmp.ne.s32.totalorder %s222, %s223
      %p237 = scmp.eq.s32.totalorder %s21, 3
      %p238 = por %p236, %p237
      %p240 = scmp.ne.s32.totalorder %s223, %s239
      %p241 = scmp.eq.s32.totalorder %s21, 0
      %p242 = por %p240, %p241
      %p243 = scmp.le.s32.totalorder 1, %s15
      %p244 = scmp.lt.s32.totalorder %s15, 5
      %p245 = pnand %p243, %p244
      %p246 = pneg %p245
      // Predicated region
      $region9: #{tpu_custom_call.1} parent=5 // pred_check
        _
      $region10: #{tpu_custom_call.1} parent=5 // pred_check_branch
        %248 = sbr.rel (%p245) target = $region12
      $region11: #{tpu_custom_call.1} parent=5 // pred_region
        %s249 = ssub.s32 %s15, 1
        // Predicated region
        $region13: #{tpu_custom_call.1} parent=11 // pred_check
          %p250 = pneg %p62
        $region14: #{tpu_custom_call.1} parent=11 // pred_check_branch
          %252 = sbr.rel (%p250) target = $region16
        $region15: #{tpu_custom_call.1} parent=11 // pred_region
          _
        $region16: #{tpu_custom_call.1} parent=11 // pred_fallthru
          _
        // Predicated region
        $region17: #{tpu_custom_call.1} parent=11 // pred_check
          %p253 = pneg %p83
        $region18: #{tpu_custom_call.1} parent=11 // pred_check_branch
          %255 = sbr.rel (%p253) target = $region20
        $region19: #{tpu_custom_call.1} parent=11 // pred_region
          _
        $region20: #{tpu_custom_call.1} parent=11 // pred_fallthru
          _
        // Predicated region
        $region21: #{tpu_custom_call.1} parent=11 // pred_check
          %p256 = pneg %p104
        $region22: #{tpu_custom_call.1} parent=11 // pred_check_branch
          %258 = sbr.rel (%p256) target = $region24
        $region23: #{tpu_custom_call.1} parent=11 // pred_region
          _
        $region24: #{tpu_custom_call.1} parent=11 // pred_fallthru
          _
        // Predicated region
        $region25: #{tpu_custom_call.1} parent=11 // pred_check
          %p259 = pneg %p125
        $region26: #{tpu_custom_call.1} parent=11 // pred_check_branch
          %261 = sbr.rel (%p259) target = $region28
        $region27: #{tpu_custom_call.1} parent=11 // pred_region
          _
        $region28: #{tpu_custom_call.1} parent=11 // pred_fallthru
          _
        // Predicated region
        $region29: #{tpu_custom_call.1} parent=11 // pred_check
          %p262 = pneg %p146
        $region30: #{tpu_custom_call.1} parent=11 // pred_check_branch
          %264 = sbr.rel (%p262) target = $region32
        $region31: #{tpu_custom_call.1} parent=11 // pred_region
          _
        $region32: #{tpu_custom_call.1} parent=11 // pred_fallthru
          _
        // Predicated region
        $region33: #{tpu_custom_call.1} parent=11 // pred_check
          %p265 = pneg %p167
        $region34: #{tpu_custom_call.1} parent=11 // pred_check_branch
          %267 = sbr.rel (%p265) target = $region36
        $region35: #{tpu_custom_call.1} parent=11 // pred_region
          _
        $region36: #{tpu_custom_call.1} parent=11 // pred_fallthru
          _
        // Predicated region
        $region37: #{tpu_custom_call.1} parent=11 // pred_check
          %p268 = pneg %p188
        $region38: #{tpu_custom_call.1} parent=11 // pred_check_branch
          %270 = sbr.rel (%p268) target = $region40
        $region39: #{tpu_custom_call.1} parent=11 // pred_region
          _
        $region40: #{tpu_custom_call.1} parent=11 // pred_fallthru
          _
        // Predicated region
        $region41: #{tpu_custom_call.1} parent=11 // pred_check
          %p271 = pneg %p209
        $region42: #{tpu_custom_call.1} parent=11 // pred_check_branch
          %273 = sbr.rel (%p271) target = $region44
        $region43: #{tpu_custom_call.1} parent=11 // pred_region
          _
        $region44: #{tpu_custom_call.1} parent=11 // pred_fallthru
          _
      $region12: #{tpu_custom_call.1} parent=5 // pred_fallthru
        _
      %p274 = scmp.lt.s32.totalorder %s15, 4
      // Predicated region
      $region45: #{tpu_custom_call.1} parent=5 // pred_check
        %p275 = pneg %p274
      $region46: #{tpu_custom_call.1} parent=5 // pred_check_branch
        %277 = sbr.rel (%p275) target = $region48
      $region47: #{tpu_custom_call.1} parent=5 // pred_region
        // Predicated region
        $region49: #{tpu_custom_call.1} parent=47 // pred_check
          %p278 = pneg %p35
        $region50: #{tpu_custom_call.1} parent=47 // pred_check_branch
          %280 = sbr.rel (%p278) target = $region52
        $region51: #{tpu_custom_call.1} parent=47 // pred_region
          %s281 = smul.u32 64, %s15
          %s282 = ssub.s32 250, %s281
          %p283 = scmp.lt.s32.totalorder %s282, 64
          %s284 = scalar_select %p283, %s282, 64
          %s285 = smul.u32 8, %s284
          %p286 = scmp.lt.s32.totalorder %s281, 249
          %s287 = scalar_select %p286, %s281, 249
          %s288 = smul.addr %s287, 8
          %s289 = scalar_lea.vmem %s0, %s288
          %s290 = smul.u32 64, %s15
          %s291 = ssub.s32 250, %s290
          %p292 = scmp.lt.s32.totalorder %s291, 64
          %s293 = scalar_select %p292, %s291, 64
          %s294 = smul.u32 8, %s293
        $region52: #{tpu_custom_call.1} parent=47 // pred_fallthru
          _
      $region48: #{tpu_custom_call.1} parent=5 // pred_fallthru
        _
      %p295 = scmp.le.s32.totalorder 1, %s15
      %p296 = scmp.lt.s32.totalorder %s15, 5
      %p297 = pnand %p295, %p296
      %p298 = pneg %p297
      // Predicated region
      $region53: #{tpu_custom_call.1} parent=5 // pred_check
        _
      $region54: #{tpu_custom_call.1} parent=5 // pred_check_branch
        %300 = sbr.rel (%p297) target = $region56
      $region55: #{tpu_custom_call.1} parent=5 // pred_region
        %s301 = ssub.s32 %s15, 1
        %s302 = smul.u32 64, %s20
        %s303 = ssub.s32 250, %s302
        %p304 = scmp.lt.s32.totalorder %s303, 64
        %s305 = scalar_select %p304, %s303, 64
        %s306 = smul.u32 8, %s305
        %p307 = scmp.lt.s32.totalorder %s302, 249
        %s308 = scalar_select %p307, %s302, 249
        %s309 = smul.addr %s308, 8
        %s310 = scalar_lea.vmem %s0, %s309
        %p311 = pneg %p41
        %p312 = pneg %p38
        %p313 = pneg %p62
        %p314 = pneg %p59
        %p315 = pneg %p83
        %p316 = pneg %p80
        %p317 = pneg %p104
        %p318 = pneg %p101
        %p319 = pneg %p125
        %p320 = pneg %p122
        %p321 = pneg %p146
        %p322 = pneg %p143
        %p323 = pneg %p167
        %p324 = pneg %p164
        %p325 = pneg %p188
        %p326 = pneg %p185
        %p327 = pneg %p209
        %p328 = pneg %p206
        %p329 = pneg %p235
        %p330 = pneg %p232
        %s331 = sand.u32 %s222, 1
        %s332 = sand.u32 %s222, 1
        %s333 = smul.addr %s332, 512
        %s334 = scalar_lea.vmem [#allocation2], %s333
        %s335 = smul.u32 64, %s20
        %s336 = ssub.s32 250, %s335
        %p337 = scmp.lt.s32.totalorder %s336, 64
        %s338 = scalar_select %p337, %s336, 64
        %s339 = smul.u32 8, %s338
        %p340 = scmp.lt.s32.totalorder %s335, 249
        %s341 = scalar_select %p340, %s335, 249
        %s342 = smul.addr %s341, 8
        %s343 = scalar_lea.vmem %s0, %s342
        %s344 = smul.u32 64, %s20
        %s345 = ssub.s32 250, %s344
        %p346 = scmp.lt.s32.totalorder %s345, 64
        %s347 = scalar_select %p346, %s345, 64
        %s348 = smul.u32 8, %s347
        %s349 = smul.u32 64, %s20
        %s350 = ssub.s32 250, %s349
        %p351 = scmp.lt.s32.totalorder %s350, 64
        %s352 = scalar_select %p351, %s350, 64
        %s353 = smul.u32 8, %s352
        %v355 = vld [vmem:[%s343] sm:$0xff]
        %v356 = vld [vmem:[%s343 + $0x8] sm:$0xff]
        %v357 = vld [vmem:[%s343 + $0x10] sm:$0xff]
        %v358 = vld [vmem:[%s343 + $0x18] sm:$0xff]
        %v359 = vld [vmem:[%s343 + $0x20] sm:$0xff]
        %v360 = vld [vmem:[%s343 + $0x28] sm:$0xff]
        %v361 = vld [vmem:[%s343 + $0x30] sm:$0xff]
        %v362 = vld [vmem:[%s343 + $0x38] sm:$0xff]
        %v363 = vld [vmem:[%s343 + $0x40] sm:$0xff]
        %v364 = vld [vmem:[%s343 + $0x48] sm:$0xff]
        %v365 = vld [vmem:[%s343 + $0x50] sm:$0xff]
        %v366 = vld [vmem:[%s343 + $0x58] sm:$0xff]
        %v367 = vld [vmem:[%s343 + $0x60] sm:$0xff]
        %v368 = vld [vmem:[%s343 + $0x68] sm:$0xff]
        %v369 = vld [vmem:[%s343 + $0x70] sm:$0xff]
        %v370 = vld [vmem:[%s343 + $0x78] sm:$0xff]
        %v371 = vld [vmem:[%s343 + $0x80] sm:$0xff]
        %v372 = vld [vmem:[%s343 + $0x88] sm:$0xff]
        %v373 = vld [vmem:[%s343 + $0x90] sm:$0xff]
        %v374 = vld [vmem:[%s343 + $0x98] sm:$0xff]
        %v375 = vld [vmem:[%s343 + $0xa0] sm:$0xff]
        %v376 = vld [vmem:[%s343 + $0xa8] sm:$0xff]
        %v377 = vld [vmem:[%s343 + $0xb0] sm:$0xff]
        %v378 = vld [vmem:[%s343 + $0xb8] sm:$0xff]
        %v379 = vld [vmem:[%s343 + $0xc0] sm:$0xff]
        %v380 = vld [vmem:[%s343 + $0xc8] sm:$0xff]
        %v381 = vld [vmem:[%s343 + $0xd0] sm:$0xff]
        %v382 = vld [vmem:[%s343 + $0xd8] sm:$0xff]
        %v383 = vld [vmem:[%s343 + $0xe0] sm:$0xff]
        %v384 = vld [vmem:[%s343 + $0xe8] sm:$0xff]
        %v385 = vld [vmem:[%s343 + $0xf0] sm:$0xff]
        %v386 = vld [vmem:[%s343 + $0xf8] sm:$0xff]
        %v387 = vld [vmem:[%s343 + $0x100] sm:$0xff]
        %v388 = vld [vmem:[%s343 + $0x108] sm:$0xff]
        %v389 = vld [vmem:[%s343 + $0x110] sm:$0xff]
        %v390 = vld [vmem:[%s343 + $0x118] sm:$0xff]
        %v391 = vld [vmem:[%s343 + $0x120] sm:$0xff]
        %v392 = vld [vmem:[%s343 + $0x128] sm:$0xff]
        %v393 = vld [vmem:[%s343 + $0x130] sm:$0xff]
        %v394 = vld [vmem:[%s343 + $0x138] sm:$0xff]
        %v395 = vld [vmem:[%s343 + $0x140] sm:$0xff]
        %v396 = vld [vmem:[%s343 + $0x148] sm:$0xff]
        %v397 = vld [vmem:[%s343 + $0x150] sm:$0xff]
        %v398 = vld [vmem:[%s343 + $0x158] sm:$0xff]
        %v399 = vld [vmem:[%s343 + $0x160] sm:$0xff]
        %v400 = vld [vmem:[%s343 + $0x168] sm:$0xff]
        %v401 = vld [vmem:[%s343 + $0x170] sm:$0xff]
        %v402 = vld [vmem:[%s343 + $0x178] sm:$0xff]
        %v403 = vld [vmem:[%s343 + $0x180] sm:$0xff]
        %v404 = vld [vmem:[%s343 + $0x188] sm:$0xff]
        %v405 = vld [vmem:[%s343 + $0x190] sm:$0xff]
        %v406 = vld [vmem:[%s343 + $0x198] sm:$0xff]
        %v407 = vld [vmem:[%s343 + $0x1a0] sm:$0xff]
        %v408 = vld [vmem:[%s343 + $0x1a8] sm:$0xff]
        %v409 = vld [vmem:[%s343 + $0x1b0] sm:$0xff]
        %v410 = vld [vmem:[%s343 + $0x1b8] sm:$0xff]
        %v411 = vld [vmem:[%s343 + $0x1c0] sm:$0xff]
        %v412 = vld [vmem:[%s343 + $0x1c8] sm:$0xff]
        %v413 = vld [vmem:[%s343 + $0x1d0] sm:$0xff]
        %v414 = vld [vmem:[%s343 + $0x1d8] sm:$0xff]
        %v415 = vld [vmem:[%s343 + $0x1e0] sm:$0xff]
        %v416 = vld [vmem:[%s343 + $0x1e8] sm:$0xff]
        %v417 = vld [vmem:[%s343 + $0x1f0] sm:$0xff]
        %v418 = vld [vmem:[%s343 + $0x1f8] sm:$0xff]
        %v419 = vpack.c.bf16 %v356, %v355
        %v420 = vpack.c.bf16 %v358, %v357
        %v421 = vpack.c.bf16 %v360, %v359
        %v422 = vpack.c.bf16 %v362, %v361
        %v423 = vpack.c.bf16 %v364, %v363
        %v424 = vpack.c.bf16 %v366, %v365
        %v425 = vpack.c.bf16 %v368, %v367
        %v426 = vpack.c.bf16 %v370, %v369
        %v427 = vpack.c.bf16 %v372, %v371
        %v428 = vpack.c.bf16 %v374, %v373
        %v429 = vpack.c.bf16 %v376, %v375
        %v430 = vpack.c.bf16 %v378, %v377
        %v431 = vpack.c.bf16 %v380, %v379
        %v432 = vpack.c.bf16 %v382, %v381
        %v433 = vpack.c.bf16 %v384, %v383
        %v434 = vpack.c.bf16 %v386, %v385
        %v435 = vpack.c.bf16 %v388, %v387
        %v436 = vpack.c.bf16 %v390, %v389
        %v437 = vpack.c.bf16 %v392, %v391
        %v438 = vpack.c.bf16 %v394, %v393
        %v439 = vpack.c.bf16 %v396, %v395
        %v440 = vpack.c.bf16 %v398, %v397
        %v441 = vpack.c.bf16 %v400, %v399
        %v442 = vpack.c.bf16 %v402, %v401
        %v443 = vpack.c.bf16 %v404, %v403
        %v444 = vpack.c.bf16 %v406, %v405
        %v445 = vpack.c.bf16 %v408, %v407
        %v446 = vpack.c.bf16 %v410, %v409
        %v447 = vpack.c.bf16 %v412, %v411
        %v448 = vpack.c.bf16 %v414, %v413
        %v449 = vpack.c.bf16 %v416, %v415
        %v450 = vpack.c.bf16 %v418, %v417
        %v451 = vld [vmem:[%s1] sm:$0xff]
        %v452 = vld [vmem:[%s1 + $0x8] sm:$0xf]
        %v453 = vld [vmem:[%s1 + $0xc] sm:$0xff]
        %v454 = vld [vmem:[%s1 + $0x14] sm:$0xf]
        %v455 = vld [vmem:[%s1 + $0x18] sm:$0xff]
        %v456 = vld [vmem:[%s1 + $0x20] sm:$0xf]
        %v457 = vld [vmem:[%s1 + $0x24] sm:$0xff]
        %v458 = vld [vmem:[%s1 + $0x2c] sm:$0xf]
        %v459 = vld [vmem:[%s1 + $0x30] sm:$0xff]
        %v460 = vld [vmem:[%s1 + $0x38] sm:$0xf]
        %v461 = vld [vmem:[%s1 + $0x3c] sm:$0xff]
        %v462 = vld [vmem:[%s1 + $0x44] sm:$0xf]
        %v463 = vld [vmem:[%s1 + $0x48] sm:$0xff]
        %v464 = vld [vmem:[%s1 + $0x50] sm:$0xf]
        %v465 = vld [vmem:[%s1 + $0x54] sm:$0xff]
        %v466 = vld [vmem:[%s1 + $0x5c] sm:$0xf]
        %v467 = vld [vmem:[%s2] sm:$0x7]
        %v469 = vperm.slane %v467, 0
        %v470 = vperm.slane %v467, 1
        %v471 = vperm.slane %v467, 2
        %v491 = vunpack.c.l.b16 %v451
        %v492 = vunpack.c.h.b16 %v451
        %v493 = vunpack.c.l.b16 %v452
        %v494 = vunpack.c.l.b16 %v453
        %v495 = vunpack.c.h.b16 %v453
        %v496 = vunpack.c.l.b16 %v454
        %v497 = vunpack.c.l.b16 %v455
        %v498 = vunpack.c.h.b16 %v455
        %v499 = vunpack.c.l.b16 %v456
        %v500 = vunpack.c.l.b16 %v457
        %v501 = vunpack.c.h.b16 %v457
        %v502 = vunpack.c.l.b16 %v458
        %v503 = vunpack.c.l.b16 %v459
        %v504 = vunpack.c.h.b16 %v459
        %v505 = vunpack.c.l.b16 %v460
        %v506 = vunpack.c.l.b16 %v461
        %v507 = vunpack.c.h.b16 %v461
        %v508 = vunpack.c.l.b16 %v462
        %v509 = vunpack.c.l.b16 %v463
        %v510 = vunpack.c.h.b16 %v463
        %v511 = vunpack.c.l.b16 %v464
        %v512 = vunpack.c.l.b16 %v465
        %v513 = vunpack.c.h.b16 %v465
        %v514 = vunpack.c.l.b16 %v466
        %v515 = vpack.c.b16 %v494, %v491
        %v516 = vpack.c.b16 %v495, %v492
        %v517 = vpack.c.b16 %v496, %v493
        %v518 = vpack.c.b16 %v500, %v497
        %v519 = vpack.c.b16 %v501, %v498
        %v520 = vpack.c.b16 %v502, %v499
        %v521 = vpack.c.b16 %v506, %v503
        %v522 = vpack.c.b16 %v507, %v504
        %v523 = vpack.c.b16 %v508, %v505
        %v524 = vpack.c.b16 %v512, %v509
        %v525 = vpack.c.b16 %v513, %v510
        %v526 = vpack.c.b16 %v514, %v511
        %vm539 = vcmask 523264
        %v541 = vsel %vm539, %v419, 0
        %v544 = vsel %vm539, %v420, 0
        %v547 = vsel %vm539, %v421, 0
        %v550 = vsel %vm539, %v422, 0
        %v553 = vsel %vm539, %v423, 0
        %v556 = vsel %vm539, %v424, 0
        %v559 = vsel %vm539, %v425, 0
        %v562 = vsel %vm539, %v426, 0
        %v565 = vsel %vm539, %v427, 0
        %v568 = vsel %vm539, %v428, 0
        %v571 = vsel %vm539, %v429, 0
        %v574 = vsel %vm539, %v430, 0
        %v577 = vsel %vm539, %v431, 0
        %v580 = vsel %vm539, %v432, 0
        %v583 = vsel %vm539, %v433, 0
        %v586 = vsel %vm539, %v434, 0
        %v589 = vsel %vm539, %v435, 0
        %v592 = vsel %vm539, %v436, 0
        %v595 = vsel %vm539, %v437, 0
        %v598 = vsel %vm539, %v438, 0
        %v601 = vsel %vm539, %v439, 0
        %v604 = vsel %vm539, %v440, 0
        %v607 = vsel %vm539, %v441, 0
        %v610 = vsel %vm539, %v442, 0
        %v613 = vsel %vm539, %v443, 0
        %v616 = vsel %vm539, %v444, 0
        %v619 = vsel %vm539, %v445, 0
        %v622 = vsel %vm539, %v446, 0
        %v625 = vsel %vm539, %v447, 0
        %v628 = vsel %vm539, %v448, 0
        %v631 = vsel %vm539, %v449, 0
        %v634 = vsel %vm539, %v450, 0
        %636 = vmatpush.bf16.msra.mxu0 0
        %637 = vmatpush.bf16.msra.mxu0 0
        %638 = vmatpush.bf16.msra.mxu0 0
        %639 = vmatpush.bf16.msra.mxu0 0
        %640 = vmatpush.bf16.msra.mxu0 %v524
        %641 = vmatpush.bf16.msra.mxu0 %v521
        %642 = vmatpush.bf16.msra.mxu0 %v518
        %643 = vmatpush.bf16.msra.mxu0 %v515
        %644 = vmatmul.bf16.gmra.mxu0 %v541
        %v645 = vpop.f32.mrf.mxu0
        %v646 = vadd.f32 %v469, %v645
        %v647 = vpop.f32.mrf.mxu0
        %v648 = vadd.f32 %v469, %v647
        %649 = vmatmul.bf16.gmra.mxu0 %v544
        %v650 = vpop.f32.mrf.mxu0
        %v651 = vadd.f32 %v469, %v650
        %v652 = vpop.f32.mrf.mxu0
        %v653 = vadd.f32 %v469, %v652
        %654 = vmatmul.bf16.gmra.mxu0 %v547
        %v655 = vpop.f32.mrf.mxu0
        %v656 = vadd.f32 %v469, %v655
        %v657 = vpop.f32.mrf.mxu0
        %v658 = vadd.f32 %v469, %v657
        %659 = vmatmul.bf16.gmra.mxu0 %v550
        %v660 = vpop.f32.mrf.mxu0
        %v661 = vadd.f32 %v469, %v660
        %v662 = vpop.f32.mrf.mxu0
        %v663 = vadd.f32 %v469, %v662
        %664 = vmatmul.bf16.gmra.mxu0 %v553
        %v665 = vpop.f32.mrf.mxu0
        %v666 = vadd.f32 %v469, %v665
        %v667 = vpop.f32.mrf.mxu0
        %v668 = vadd.f32 %v469, %v667
        %669 = vmatmul.bf16.gmra.mxu0 %v556
        %v670 = vpop.f32.mrf.mxu0
        %v671 = vadd.f32 %v469, %v670
        %v672 = vpop.f32.mrf.mxu0
        %v673 = vadd.f32 %v469, %v672
        %674 = vmatmul.bf16.gmra.mxu0 %v559
        %v675 = vpop.f32.mrf.mxu0
        %v676 = vadd.f32 %v469, %v675
        %v677 = vpop.f32.mrf.mxu0
        %v678 = vadd.f32 %v469, %v677
        %679 = vmatmul.bf16.gmra.mxu0 %v562
        %v680 = vpop.f32.mrf.mxu0
        %v681 = vadd.f32 %v469, %v680
        %v682 = vpop.f32.mrf.mxu0
        %v683 = vadd.f32 %v469, %v682
        %684 = vmatmul.bf16.gmra.mxu0 %v565
        %v685 = vpop.f32.mrf.mxu0
        %v686 = vadd.f32 %v469, %v685
        %v687 = vpop.f32.mrf.mxu0
        %v688 = vadd.f32 %v469, %v687
        %689 = vmatmul.bf16.gmra.mxu0 %v568
        %v690 = vpop.f32.mrf.mxu0
        %v691 = vadd.f32 %v469, %v690
        %v692 = vpop.f32.mrf.mxu0
        %v693 = vadd.f32 %v469, %v692
        %694 = vmatmul.bf16.gmra.mxu0 %v571
        %v695 = vpop.f32.mrf.mxu0
        %v696 = vadd.f32 %v469, %v695
        %v697 = vpop.f32.mrf.mxu0
        %v698 = vadd.f32 %v469, %v697
        %699 = vmatmul.bf16.gmra.mxu0 %v574
        %v700 = vpop.f32.mrf.mxu0
        %v701 = vadd.f32 %v469, %v700
        %v702 = vpop.f32.mrf.mxu0
        %v703 = vadd.f32 %v469, %v702
        %704 = vmatmul.bf16.gmra.mxu0 %v577
        %v705 = vpop.f32.mrf.mxu0
        %v706 = vadd.f32 %v469, %v705
        %v707 = vpop.f32.mrf.mxu0
        %v708 = vadd.f32 %v469, %v707
        %709 = vmatmul.bf16.gmra.mxu0 %v580
        %v710 = vpop.f32.mrf.mxu0
        %v711 = vadd.f32 %v469, %v710
        %v712 = vpop.f32.mrf.mxu0
        %v713 = vadd.f32 %v469, %v712
        %714 = vmatmul.bf16.gmra.mxu0 %v583
        %v715 = vpop.f32.mrf.mxu0
        %v716 = vadd.f32 %v469, %v715
        %v717 = vpop.f32.mrf.mxu0
        %v718 = vadd.f32 %v469, %v717
        %719 = vmatmul.bf16.gmra.mxu0 %v586
        %v720 = vpop.f32.mrf.mxu0
        %v721 = vadd.f32 %v469, %v720
        %v722 = vpop.f32.mrf.mxu0
        %v723 = vadd.f32 %v469, %v722
        %724 = vmatmul.bf16.gmra.mxu0 %v589
        %v725 = vpop.f32.mrf.mxu0
        %v726 = vadd.f32 %v469, %v725
        %v727 = vpop.f32.mrf.mxu0
        %v728 = vadd.f32 %v469, %v727
        %729 = vmatmul.bf16.gmra.mxu0 %v592
        %v730 = vpop.f32.mrf.mxu0
        %v731 = vadd.f32 %v469, %v730
        %v732 = vpop.f32.mrf.mxu0
        %v733 = vadd.f32 %v469, %v732
        %734 = vmatmul.bf16.gmra.mxu0 %v595
        %v735 = vpop.f32.mrf.mxu0
        %v736 = vadd.f32 %v469, %v735
        %v737 = vpop.f32.mrf.mxu0
        %v738 = vadd.f32 %v469, %v737
        %739 = vmatmul.bf16.gmra.mxu0 %v598
        %v740 = vpop.f32.mrf.mxu0
        %v741 = vadd.f32 %v469, %v740
        %v742 = vpop.f32.mrf.mxu0
        %v743 = vadd.f32 %v469, %v742
        %744 = vmatmul.bf16.gmra.mxu0 %v601
        %v745 = vpop.f32.mrf.mxu0
        %v746 = vadd.f32 %v469, %v745
        %v747 = vpop.f32.mrf.mxu0
        %v748 = vadd.f32 %v469, %v747
        %749 = vmatmul.bf16.gmra.mxu0 %v604
        %v750 = vpop.f32.mrf.mxu0
        %v751 = vadd.f32 %v469, %v750
        %v752 = vpop.f32.mrf.mxu0
        %v753 = vadd.f32 %v469, %v752
        %754 = vmatmul.bf16.gmra.mxu0 %v607
        %v755 = vpop.f32.mrf.mxu0
        %v756 = vadd.f32 %v469, %v755
        %v757 = vpop.f32.mrf.mxu0
        %v758 = vadd.f32 %v469, %v757
        %759 = vmatmul.bf16.gmra.mxu0 %v610
        %v760 = vpop.f32.mrf.mxu0
        %v761 = vadd.f32 %v469, %v760
        %v762 = vpop.f32.mrf.mxu0
        %v763 = vadd.f32 %v469, %v762
        %764 = vmatmul.bf16.gmra.mxu0 %v613
        %v765 = vpop.f32.mrf.mxu0
        %v766 = vadd.f32 %v469, %v765
        %v767 = vpop.f32.mrf.mxu0
        %v768 = vadd.f32 %v469, %v767
        %769 = vmatmul.bf16.gmra.mxu0 %v616
        %v770 = vpop.f32.mrf.mxu0
        %v771 = vadd.f32 %v469, %v770
        %v772 = vpop.f32.mrf.mxu0
        %v773 = vadd.f32 %v469, %v772
        %774 = vmatmul.bf16.gmra.mxu0 %v619
        %v775 = vpop.f32.mrf.mxu0
        %v776 = vadd.f32 %v469, %v775
        %v777 = vpop.f32.mrf.mxu0
        %v778 = vadd.f32 %v469, %v777
        %779 = vmatmul.bf16.gmra.mxu0 %v622
        %v780 = vpop.f32.mrf.mxu0
        %v781 = vadd.f32 %v469, %v780
        %v782 = vpop.f32.mrf.mxu0
        %v783 = vadd.f32 %v469, %v782
        %784 = vmatmul.bf16.gmra.mxu0 %v625
        %v785 = vpop.f32.mrf.mxu0
        %v786 = vadd.f32 %v469, %v785
        %v787 = vpop.f32.mrf.mxu0
        %v788 = vadd.f32 %v469, %v787
        %789 = vmatmul.bf16.gmra.mxu0 %v628
        %v790 = vpop.f32.mrf.mxu0
        %v791 = vadd.f32 %v469, %v790
        %v792 = vpop.f32.mrf.mxu0
        %v793 = vadd.f32 %v469, %v792
        %794 = vmatmul.bf16.gmra.mxu0 %v631
        %v795 = vpop.f32.mrf.mxu0
        %v796 = vadd.f32 %v469, %v795
        %v797 = vpop.f32.mrf.mxu0
        %v798 = vadd.f32 %v469, %v797
        %799 = vmatmul.bf16.gmra.mxu0 %v634
        %v800 = vpop.f32.mrf.mxu0
        %v801 = vadd.f32 %v469, %v800
        %v802 = vpop.f32.mrf.mxu0
        %v803 = vadd.f32 %v469, %v802
        %804 = vdwg.mxu0
        %805 = vmatpush.bf16.msra.mxu0 0
        %806 = vmatpush.bf16.msra.mxu0 0
        %807 = vmatpush.bf16.msra.mxu0 0
        %808 = vmatpush.bf16.msra.mxu0 0
        %809 = vmatpush.bf16.msra.mxu0 %v525
        %810 = vmatpush.bf16.msra.mxu0 %v522
        %811 = vmatpush.bf16.msra.mxu0 %v519
        %812 = vmatpush.bf16.msra.mxu0 %v516
        %813 = vmatmul.bf16.gmra.mxu0 %v541
        %v814 = vpop.f32.mrf.mxu0
        %v815 = vadd.f32 %v470, %v814
        %v816 = vpop.f32.mrf.mxu0
        %v817 = vadd.f32 %v470, %v816
        %818 = vmatmul.bf16.gmra.mxu0 %v544
        %v819 = vpop.f32.mrf.mxu0
        %v820 = vadd.f32 %v470, %v819
        %v821 = vpop.f32.mrf.mxu0
        %v822 = vadd.f32 %v470, %v821
        %823 = vmatmul.bf16.gmra.mxu0 %v547
        %v824 = vpop.f32.mrf.mxu0
        %v825 = vadd.f32 %v470, %v824
        %v826 = vpop.f32.mrf.mxu0
        %v827 = vadd.f32 %v470, %v826
        %828 = vmatmul.bf16.gmra.mxu0 %v550
        %v829 = vpop.f32.mrf.mxu0
        %v830 = vadd.f32 %v470, %v829
        %v831 = vpop.f32.mrf.mxu0
        %v832 = vadd.f32 %v470, %v831
        %833 = vmatmul.bf16.gmra.mxu0 %v553
        %v834 = vpop.f32.mrf.mxu0
        %v835 = vadd.f32 %v470, %v834
        %v836 = vpop.f32.mrf.mxu0
        %v837 = vadd.f32 %v470, %v836
        %838 = vmatmul.bf16.gmra.mxu0 %v556
        %v839 = vpop.f32.mrf.mxu0
        %v840 = vadd.f32 %v470, %v839
        %v841 = vpop.f32.mrf.mxu0
        %v842 = vadd.f32 %v470, %v841
        %843 = vmatmul.bf16.gmra.mxu0 %v559
        %v844 = vpop.f32.mrf.mxu0
        %v845 = vadd.f32 %v470, %v844
        %v846 = vpop.f32.mrf.mxu0
        %v847 = vadd.f32 %v470, %v846
        %848 = vmatmul.bf16.gmra.mxu0 %v562
        %v849 = vpop.f32.mrf.mxu0
        %v850 = vadd.f32 %v470, %v849
        %v851 = vpop.f32.mrf.mxu0
        %v852 = vadd.f32 %v470, %v851
        %853 = vmatmul.bf16.gmra.mxu0 %v565
        %v854 = vpop.f32.mrf.mxu0
        %v855 = vadd.f32 %v470, %v854
        %v856 = vpop.f32.mrf.mxu0
        %v857 = vadd.f32 %v470, %v856
        %858 = vmatmul.bf16.gmra.mxu0 %v568
        %v859 = vpop.f32.mrf.mxu0
        %v860 = vadd.f32 %v470, %v859
        %v861 = vpop.f32.mrf.mxu0
        %v862 = vadd.f32 %v470, %v861
        %863 = vmatmul.bf16.gmra.mxu0 %v571
        %v864 = vpop.f32.mrf.mxu0
        %v865 = vadd.f32 %v470, %v864
        %v866 = vpop.f32.mrf.mxu0
        %v867 = vadd.f32 %v470, %v866
        %868 = vmatmul.bf16.gmra.mxu0 %v574
        %v869 = vpop.f32.mrf.mxu0
        %v870 = vadd.f32 %v470, %v869
        %v871 = vpop.f32.mrf.mxu0
        %v872 = vadd.f32 %v470, %v871
        %873 = vmatmul.bf16.gmra.mxu0 %v577
        %v874 = vpop.f32.mrf.mxu0
        %v875 = vadd.f32 %v470, %v874
        %v876 = vpop.f32.mrf.mxu0
        %v877 = vadd.f32 %v470, %v876
        %878 = vmatmul.bf16.gmra.mxu0 %v580
        %v879 = vpop.f32.mrf.mxu0
        %v880 = vadd.f32 %v470, %v879
        %v881 = vpop.f32.mrf.mxu0
        %v882 = vadd.f32 %v470, %v881
        %883 = vmatmul.bf16.gmra.mxu0 %v583
        %v884 = vpop.f32.mrf.mxu0
        %v885 = vadd.f32 %v470, %v884
        %v886 = vpop.f32.mrf.mxu0
        %v887 = vadd.f32 %v470, %v886
        %888 = vmatmul.bf16.gmra.mxu0 %v586
        %v889 = vpop.f32.mrf.mxu0
        %v890 = vadd.f32 %v470, %v889
        %v891 = vpop.f32.mrf.mxu0
        %v892 = vadd.f32 %v470, %v891
        %893 = vmatmul.bf16.gmra.mxu0 %v589
        %v894 = vpop.f32.mrf.mxu0
        %v895 = vadd.f32 %v470, %v894
        %v896 = vpop.f32.mrf.mxu0
        %v897 = vadd.f32 %v470, %v896
        %898 = vmatmul.bf16.gmra.mxu0 %v592
        %v899 = vpop.f32.mrf.mxu0
        %v900 = vadd.f32 %v470, %v899
        %v901 = vpop.f32.mrf.mxu0
        %v902 = vadd.f32 %v470, %v901
        %903 = vmatmul.bf16.gmra.mxu0 %v595
        %v904 = vpop.f32.mrf.mxu0
        %v905 = vadd.f32 %v470, %v904
        %v906 = vpop.f32.mrf.mxu0
        %v907 = vadd.f32 %v470, %v906
        %908 = vmatmul.bf16.gmra.mxu0 %v598
        %v909 = vpop.f32.mrf.mxu0
        %v910 = vadd.f32 %v470, %v909
        %v911 = vpop.f32.mrf.mxu0
        %v912 = vadd.f32 %v470, %v911
        %913 = vmatmul.bf16.gmra.mxu0 %v601
        %v914 = vpop.f32.mrf.mxu0
        %v915 = vadd.f32 %v470, %v914
        %v916 = vpop.f32.mrf.mxu0
        %v917 = vadd.f32 %v470, %v916
        %918 = vmatmul.bf16.gmra.mxu0 %v604
        %v919 = vpop.f32.mrf.mxu0
        %v920 = vadd.f32 %v470, %v919
        %v921 = vpop.f32.mrf.mxu0
        %v922 = vadd.f32 %v470, %v921
        %923 = vmatmul.bf16.gmra.mxu0 %v607
        %v924 = vpop.f32.mrf.mxu0
        %v925 = vadd.f32 %v470, %v924
        %v926 = vpop.f32.mrf.mxu0
        %v927 = vadd.f32 %v470, %v926
        %928 = vmatmul.bf16.gmra.mxu0 %v610
        %v929 = vpop.f32.mrf.mxu0
        %v930 = vadd.f32 %v470, %v929
        %v931 = vpop.f32.mrf.mxu0
        %v932 = vadd.f32 %v470, %v931
        %933 = vmatmul.bf16.gmra.mxu0 %v613
        %v934 = vpop.f32.mrf.mxu0
        %v935 = vadd.f32 %v470, %v934
        %v936 = vpop.f32.mrf.mxu0
        %v937 = vadd.f32 %v470, %v936
        %938 = vmatmul.bf16.gmra.mxu0 %v616
        %v939 = vpop.f32.mrf.mxu0
        %v940 = vadd.f32 %v470, %v939
        %v941 = vpop.f32.mrf.mxu0
        %v942 = vadd.f32 %v470, %v941
        %943 = vmatmul.bf16.gmra.mxu0 %v619
        %v944 = vpop.f32.mrf.mxu0
        %v945 = vadd.f32 %v470, %v944
        %v946 = vpop.f32.mrf.mxu0
        %v947 = vadd.f32 %v470, %v946
        %948 = vmatmul.bf16.gmra.mxu0 %v622
        %v949 = vpop.f32.mrf.mxu0
        %v950 = vadd.f32 %v470, %v949
        %v951 = vpop.f32.mrf.mxu0
        %v952 = vadd.f32 %v470, %v951
        %953 = vmatmul.bf16.gmra.mxu0 %v625
        %v954 = vpop.f32.mrf.mxu0
        %v955 = vadd.f32 %v470, %v954
        %v956 = vpop.f32.mrf.mxu0
        %v957 = vadd.f32 %v470, %v956
        %958 = vmatmul.bf16.gmra.mxu0 %v628
        %v959 = vpop.f32.mrf.mxu0
        %v960 = vadd.f32 %v470, %v959
        %v961 = vpop.f32.mrf.mxu0
        %v962 = vadd.f32 %v470, %v961
        %963 = vmatmul.bf16.gmra.mxu0 %v631
        %v964 = vpop.f32.mrf.mxu0
        %v965 = vadd.f32 %v470, %v964
        %v966 = vpop.f32.mrf.mxu0
        %v967 = vadd.f32 %v470, %v966
        %968 = vmatmul.bf16.gmra.mxu0 %v634
        %v969 = vpop.f32.mrf.mxu0
        %v970 = vadd.f32 %v470, %v969
        %v971 = vpop.f32.mrf.mxu0
        %v972 = vadd.f32 %v470, %v971
        %973 = vdwg.mxu0
        %974 = vmatpush.bf16.msra.mxu0 0
        %975 = vmatpush.bf16.msra.mxu0 0
        %976 = vmatpush.bf16.msra.mxu0 0
        %977 = vmatpush.bf16.msra.mxu0 0
        %978 = vmatpush.bf16.msra.mxu0 %v526
        %979 = vmatpush.bf16.msra.mxu0 %v523
        %980 = vmatpush.bf16.msra.mxu0 %v520
        %981 = vmatpush.bf16.msra.mxu0 %v517
        %982 = vmatmul.bf16.gmra.mxu0 %v541
        %v983 = vpop.f32.mrf.mxu0
        %v984 = vadd.f32 %v471, %v983
        %v985 = vpop.f32.mrf.mxu0
        %v986 = vadd.f32 %v471, %v985
        %987 = vmatmul.bf16.gmra.mxu0 %v544
        %v988 = vpop.f32.mrf.mxu0
        %v989 = vadd.f32 %v471, %v988
        %v990 = vpop.f32.mrf.mxu0
        %v991 = vadd.f32 %v471, %v990
        %992 = vmatmul.bf16.gmra.mxu0 %v547
        %v993 = vpop.f32.mrf.mxu0
        %v994 = vadd.f32 %v471, %v993
        %v995 = vpop.f32.mrf.mxu0
        %v996 = vadd.f32 %v471, %v995
        %997 = vmatmul.bf16.gmra.mxu0 %v550
        %v998 = vpop.f32.mrf.mxu0
        %v999 = vadd.f32 %v471, %v998
        %v1000 = vpop.f32.mrf.mxu0
        %v1001 = vadd.f32 %v471, %v1000
        %1002 = vmatmul.bf16.gmra.mxu0 %v553
        %v1003 = vpop.f32.mrf.mxu0
        %v1004 = vadd.f32 %v471, %v1003
        %v1005 = vpop.f32.mrf.mxu0
        %v1006 = vadd.f32 %v471, %v1005
        %1007 = vmatmul.bf16.gmra.mxu0 %v556
        %v1008 = vpop.f32.mrf.mxu0
        %v1009 = vadd.f32 %v471, %v1008
        %v1010 = vpop.f32.mrf.mxu0
        %v1011 = vadd.f32 %v471, %v1010
        %1012 = vmatmul.bf16.gmra.mxu0 %v559
        %v1013 = vpop.f32.mrf.mxu0
        %v1014 = vadd.f32 %v471, %v1013
        %v1015 = vpop.f32.mrf.mxu0
        %v1016 = vadd.f32 %v471, %v1015
        %1017 = vmatmul.bf16.gmra.mxu0 %v562
        %v1018 = vpop.f32.mrf.mxu0
        %v1019 = vadd.f32 %v471, %v1018
        %v1020 = vpop.f32.mrf.mxu0
        %v1021 = vadd.f32 %v471, %v1020
        %1022 = vmatmul.bf16.gmra.mxu0 %v565
        %v1023 = vpop.f32.mrf.mxu0
        %v1024 = vadd.f32 %v471, %v1023
        %v1025 = vpop.f32.mrf.mxu0
        %v1026 = vadd.f32 %v471, %v1025
        %1027 = vmatmul.bf16.gmra.mxu0 %v568
        %v1028 = vpop.f32.mrf.mxu0
        %v1029 = vadd.f32 %v471, %v1028
        %v1030 = vpop.f32.mrf.mxu0
        %v1031 = vadd.f32 %v471, %v1030
        %1032 = vmatmul.bf16.gmra.mxu0 %v571
        %v1033 = vpop.f32.mrf.mxu0
        %v1034 = vadd.f32 %v471, %v1033
        %v1035 = vpop.f32.mrf.mxu0
        %v1036 = vadd.f32 %v471, %v1035
        %1037 = vmatmul.bf16.gmra.mxu0 %v574
        %v1038 = vpop.f32.mrf.mxu0
        %v1039 = vadd.f32 %v471, %v1038
        %v1040 = vpop.f32.mrf.mxu0
        %v1041 = vadd.f32 %v471, %v1040
        %1042 = vmatmul.bf16.gmra.mxu0 %v577
        %v1043 = vpop.f32.mrf.mxu0
        %v1044 = vadd.f32 %v471, %v1043
        %v1045 = vpop.f32.mrf.mxu0
        %v1046 = vadd.f32 %v471, %v1045
        %1047 = vmatmul.bf16.gmra.mxu0 %v580
        %v1048 = vpop.f32.mrf.mxu0
        %v1049 = vadd.f32 %v471, %v1048
        %v1050 = vpop.f32.mrf.mxu0
        %v1051 = vadd.f32 %v471, %v1050
        %1052 = vmatmul.bf16.gmra.mxu0 %v583
        %v1053 = vpop.f32.mrf.mxu0
        %v1054 = vadd.f32 %v471, %v1053
        %v1055 = vpop.f32.mrf.mxu0
        %v1056 = vadd.f32 %v471, %v1055
        %1057 = vmatmul.bf16.gmra.mxu0 %v586
        %v1058 = vpop.f32.mrf.mxu0
        %v1059 = vadd.f32 %v471, %v1058
        %v1060 = vpop.f32.mrf.mxu0
        %v1061 = vadd.f32 %v471, %v1060
        %1062 = vmatmul.bf16.gmra.mxu0 %v589
        %v1063 = vpop.f32.mrf.mxu0
        %v1064 = vadd.f32 %v471, %v1063
        %v1065 = vpop.f32.mrf.mxu0
        %v1066 = vadd.f32 %v471, %v1065
        %1067 = vmatmul.bf16.gmra.mxu0 %v592
        %v1068 = vpop.f32.mrf.mxu0
        %v1069 = vadd.f32 %v471, %v1068
        %v1070 = vpop.f32.mrf.mxu0
        %v1071 = vadd.f32 %v471, %v1070
        %1072 = vmatmul.bf16.gmra.mxu0 %v595
        %v1073 = vpop.f32.mrf.mxu0
        %v1074 = vadd.f32 %v471, %v1073
        %v1075 = vpop.f32.mrf.mxu0
        %v1076 = vadd.f32 %v471, %v1075
        %1077 = vmatmul.bf16.gmra.mxu0 %v598
        %v1078 = vpop.f32.mrf.mxu0
        %v1079 = vadd.f32 %v471, %v1078
        %v1080 = vpop.f32.mrf.mxu0
        %v1081 = vadd.f32 %v471, %v1080
        %1082 = vmatmul.bf16.gmra.mxu0 %v601
        %v1083 = vpop.f32.mrf.mxu0
        %v1084 = vadd.f32 %v471, %v1083
        %v1085 = vpop.f32.mrf.mxu0
        %v1086 = vadd.f32 %v471, %v1085
        %1087 = vmatmul.bf16.gmra.mxu0 %v604
        %v1088 = vpop.f32.mrf.mxu0
        %v1089 = vadd.f32 %v471, %v1088
        %v1090 = vpop.f32.mrf.mxu0
        %v1091 = vadd.f32 %v471, %v1090
        %1092 = vmatmul.bf16.gmra.mxu0 %v607
        %v1093 = vpop.f32.mrf.mxu0
        %v1094 = vadd.f32 %v471, %v1093
        %v1095 = vpop.f32.mrf.mxu0
        %v1096 = vadd.f32 %v471, %v1095
        %1097 = vmatmul.bf16.gmra.mxu0 %v610
        %v1098 = vpop.f32.mrf.mxu0
        %v1099 = vadd.f32 %v471, %v1098
        %v1100 = vpop.f32.mrf.mxu0
        %v1101 = vadd.f32 %v471, %v1100
        %1102 = vmatmul.bf16.gmra.mxu0 %v613
        %v1103 = vpop.f32.mrf.mxu0
        %v1104 = vadd.f32 %v471, %v1103
        %v1105 = vpop.f32.mrf.mxu0
        %v1106 = vadd.f32 %v471, %v1105
        %1107 = vmatmul.bf16.gmra.mxu0 %v616
        %v1108 = vpop.f32.mrf.mxu0
        %v1109 = vadd.f32 %v471, %v1108
        %v1110 = vpop.f32.mrf.mxu0
        %v1111 = vadd.f32 %v471, %v1110
        %1112 = vmatmul.bf16.gmra.mxu0 %v619
        %v1113 = vpop.f32.mrf.mxu0
        %v1114 = vadd.f32 %v471, %v1113
        %v1115 = vpop.f32.mrf.mxu0
        %v1116 = vadd.f32 %v471, %v1115
        %1117 = vmatmul.bf16.gmra.mxu0 %v622
        %v1118 = vpop.f32.mrf.mxu0
        %v1119 = vadd.f32 %v471, %v1118
        %v1120 = vpop.f32.mrf.mxu0
        %v1121 = vadd.f32 %v471, %v1120
        %1122 = vmatmul.bf16.gmra.mxu0 %v625
        %v1123 = vpop.f32.mrf.mxu0
        %v1124 = vadd.f32 %v471, %v1123
        %v1125 = vpop.f32.mrf.mxu0
        %v1126 = vadd.f32 %v471, %v1125
        %1127 = vmatmul.bf16.gmra.mxu0 %v628
        %v1128 = vpop.f32.mrf.mxu0
        %v1129 = vadd.f32 %v471, %v1128
        %v1130 = vpop.f32.mrf.mxu0
        %v1131 = vadd.f32 %v471, %v1130
        %1132 = vmatmul.bf16.gmra.mxu0 %v631
        %v1133 = vpop.f32.mrf.mxu0
        %v1134 = vadd.f32 %v471, %v1133
        %v1135 = vpop.f32.mrf.mxu0
        %v1136 = vadd.f32 %v471, %v1135
        %1137 = vmatmul.bf16.gmra.mxu0 %v634
        %v1138 = vpop.f32.mrf.mxu0
        %v1139 = vadd.f32 %v471, %v1138
        %v1140 = vpop.f32.mrf.mxu0
        %v1141 = vadd.f32 %v471, %v1140
        %1142 = vdwg.mxu0
        %v1143 = vmax.f32 %v646, 0.0
        %v1144 = vmax.f32 %v648, 0.0
        %v1145 = vmax.f32 %v651, 0.0
        %v1146 = vmax.f32 %v653, 0.0
        %v1147 = vmax.f32 %v656, 0.0
        %v1148 = vmax.f32 %v658, 0.0
        %v1149 = vmax.f32 %v661, 0.0
        %v1150 = vmax.f32 %v663, 0.0
        %v1151 = vmax.f32 %v666, 0.0
        %v1152 = vmax.f32 %v668, 0.0
        %v1153 = vmax.f32 %v671, 0.0
        %v1154 = vmax.f32 %v673, 0.0
        %v1155 = vmax.f32 %v676, 0.0
        %v1156 = vmax.f32 %v678, 0.0
        %v1157 = vmax.f32 %v681, 0.0
        %v1158 = vmax.f32 %v683, 0.0
        %v1159 = vmax.f32 %v686, 0.0
        %v1160 = vmax.f32 %v688, 0.0
        %v1161 = vmax.f32 %v691, 0.0
        %v1162 = vmax.f32 %v693, 0.0
        %v1163 = vmax.f32 %v696, 0.0
        %v1164 = vmax.f32 %v698, 0.0
        %v1165 = vmax.f32 %v701, 0.0
        %v1166 = vmax.f32 %v703, 0.0
        %v1167 = vmax.f32 %v706, 0.0
        %v1168 = vmax.f32 %v708, 0.0
        %v1169 = vmax.f32 %v711, 0.0
        %v1170 = vmax.f32 %v713, 0.0
        %v1171 = vmax.f32 %v716, 0.0
        %v1172 = vmax.f32 %v718, 0.0
        %v1173 = vmax.f32 %v721, 0.0
        %v1174 = vmax.f32 %v723, 0.0
        %v1175 = vmax.f32 %v726, 0.0
        %v1176 = vmax.f32 %v728, 0.0
        %v1177 = vmax.f32 %v731, 0.0
        %v1178 = vmax.f32 %v733, 0.0
        %v1179 = vmax.f32 %v736, 0.0
        %v1180 = vmax.f32 %v738, 0.0
        %v1181 = vmax.f32 %v741, 0.0
        %v1182 = vmax.f32 %v743, 0.0
        %v1183 = vmax.f32 %v746, 0.0
        %v1184 = vmax.f32 %v748, 0.0
        %v1185 = vmax.f32 %v751, 0.0
        %v1186 = vmax.f32 %v753, 0.0
        %v1187 = vmax.f32 %v756, 0.0
        %v1188 = vmax.f32 %v758, 0.0
        %v1189 = vmax.f32 %v761, 0.0
        %v1190 = vmax.f32 %v763, 0.0
        %v1191 = vmax.f32 %v766, 0.0
        %v1192 = vmax.f32 %v768, 0.0
        %v1193 = vmax.f32 %v771, 0.0
        %v1194 = vmax.f32 %v773, 0.0
        %v1195 = vmax.f32 %v776, 0.0
        %v1196 = vmax.f32 %v778, 0.0
        %v1197 = vmax.f32 %v781, 0.0
        %v1198 = vmax.f32 %v783, 0.0
        %v1199 = vmax.f32 %v786, 0.0
        %v1200 = vmax.f32 %v788, 0.0
        %v1201 = vmax.f32 %v791, 0.0
        %v1202 = vmax.f32 %v793, 0.0
        %v1203 = vmax.f32 %v796, 0.0
        %v1204 = vmax.f32 %v798, 0.0
        %v1205 = vmax.f32 %v801, 0.0
        %v1206 = vmax.f32 %v803, 0.0
        %v1207 = vpack.c.bf16 %v1144, %v1143
        %v1208 = vpack.c.bf16 %v1146, %v1145
        %v1209 = vpack.c.bf16 %v1148, %v1147
        %v1210 = vpack.c.bf16 %v1150, %v1149
        %v1211 = vpack.c.bf16 %v1152, %v1151
        %v1212 = vpack.c.bf16 %v1154, %v1153
        %v1213 = vpack.c.bf16 %v1156, %v1155
        %v1214 = vpack.c.bf16 %v1158, %v1157
        %v1215 = vpack.c.bf16 %v1160, %v1159
        %v1216 = vpack.c.bf16 %v1162, %v1161
        %v1217 = vpack.c.bf16 %v1164, %v1163
        %v1218 = vpack.c.bf16 %v1166, %v1165
        %v1219 = vpack.c.bf16 %v1168, %v1167
        %v1220 = vpack.c.bf16 %v1170, %v1169
        %v1221 = vpack.c.bf16 %v1172, %v1171
        %v1222 = vpack.c.bf16 %v1174, %v1173
        %v1223 = vpack.c.bf16 %v1176, %v1175
        %v1224 = vpack.c.bf16 %v1178, %v1177
        %v1225 = vpack.c.bf16 %v1180, %v1179
        %v1226 = vpack.c.bf16 %v1182, %v1181
        %v1227 = vpack.c.bf16 %v1184, %v1183
        %v1228 = vpack.c.bf16 %v1186, %v1185
        %v1229 = vpack.c.bf16 %v1188, %v1187
        %v1230 = vpack.c.bf16 %v1190, %v1189
        %v1231 = vpack.c.bf16 %v1192, %v1191
        %v1232 = vpack.c.bf16 %v1194, %v1193
        %v1233 = vpack.c.bf16 %v1196, %v1195
        %v1234 = vpack.c.bf16 %v1198, %v1197
        %v1235 = vpack.c.bf16 %v1200, %v1199
        %v1236 = vpack.c.bf16 %v1202, %v1201
        %v1237 = vpack.c.bf16 %v1204, %v1203
        %v1238 = vpack.c.bf16 %v1206, %v1205
        %v1239 = vld [vmem:[%s3] sm:$0xf]
        %v1240 = vld [vmem:[%s3 + $0x4] sm:$0xf]
        %v1241 = vld [vmem:[%s3 + $0x8] sm:$0xf]
        %v1242 = vld [vmem:[%s3 + $0xc] sm:$0xf]
        %v1243 = vld [vmem:[%s3 + $0x10] sm:$0xf]
        %v1244 = vld [vmem:[%s3 + $0x14] sm:$0xf]
        %v1245 = vld [vmem:[%s3 + $0x18] sm:$0xf]
        %v1246 = vld [vmem:[%s3 + $0x1c] sm:$0xf]
        %v1247 = vld [vmem:[%s3 + $0x20] sm:$0xf]
        %v1248 = vld [vmem:[%s3 + $0x24] sm:$0xf]
        %v1249 = vld [vmem:[%s3 + $0x28] sm:$0xf]
        %v1250 = vld [vmem:[%s3 + $0x2c] sm:$0xf]
        %v1251 = vld [vmem:[%s3 + $0x30] sm:$0xf]
        %v1252 = vld [vmem:[%s3 + $0x34] sm:$0xf]
        %v1253 = vld [vmem:[%s3 + $0x38] sm:$0xf]
        %v1254 = vld [vmem:[%s3 + $0x3c] sm:$0xf]
        %v1255 = vld [vmem:[%s4] sm:$0x1]
        %v1256 = vperm.slane %v1255, 0
        %v1273 = vunpack.c.l.b16 %v1239
        %v1274 = vunpack.c.l.b16 %v1240
        %v1275 = vunpack.c.l.b16 %v1241
        %v1276 = vunpack.c.l.b16 %v1242
        %v1277 = vunpack.c.l.b16 %v1243
        %v1278 = vunpack.c.l.b16 %v1244
        %v1279 = vunpack.c.l.b16 %v1245
        %v1280 = vunpack.c.l.b16 %v1246
        %v1281 = vunpack.c.l.b16 %v1247
        %v1282 = vunpack.c.l.b16 %v1248
        %v1283 = vunpack.c.l.b16 %v1249
        %v1284 = vunpack.c.l.b16 %v1250
        %v1285 = vunpack.c.l.b16 %v1251
        %v1286 = vunpack.c.l.b16 %v1252
        %v1287 = vunpack.c.l.b16 %v1253
        %v1288 = vunpack.c.l.b16 %v1254
        %v1289 = vpack.c.b16 %v1274, %v1273
        %v1290 = vpack.c.b16 %v1276, %v1275
        %v1291 = vpack.c.b16 %v1278, %v1277
        %v1292 = vpack.c.b16 %v1280, %v1279
        %v1293 = vpack.c.b16 %v1282, %v1281
        %v1294 = vpack.c.b16 %v1284, %v1283
        %v1295 = vpack.c.b16 %v1286, %v1285
        %v1296 = vpack.c.b16 %v1288, %v1287
        %1305 = vmatpush.bf16.msra.mxu0 %v1296
        %1306 = vmatpush.bf16.msra.mxu0 %v1295
        %1307 = vmatpush.bf16.msra.mxu0 %v1294
        %1308 = vmatpush.bf16.msra.mxu0 %v1293
        %1309 = vmatpush.bf16.msra.mxu0 %v1292
        %1310 = vmatpush.bf16.msra.mxu0 %v1291
        %1311 = vmatpush.bf16.msra.mxu0 %v1290
        %1312 = vmatpush.bf16.msra.mxu0 %v1289
        %1313 = vmatmul.bf16.gmra.mxu0 %v1207
        %v1314 = vpop.f32.mrf.mxu0
        %v1315 = vadd.f32 %v1256, %v1314
        %v1316 = vpop.f32.mrf.mxu0
        %v1317 = vadd.f32 %v1256, %v1316
        %1318 = vmatmul.bf16.gmra.mxu0 %v1208
        %v1319 = vpop.f32.mrf.mxu0
        %v1320 = vadd.f32 %v1256, %v1319
        %v1321 = vpop.f32.mrf.mxu0
        %v1322 = vadd.f32 %v1256, %v1321
        %1323 = vmatmul.bf16.gmra.mxu0 %v1209
        %v1324 = vpop.f32.mrf.mxu0
        %v1325 = vadd.f32 %v1256, %v1324
        %v1326 = vpop.f32.mrf.mxu0
        %v1327 = vadd.f32 %v1256, %v1326
        %1328 = vmatmul.bf16.gmra.mxu0 %v1210
        %v1329 = vpop.f32.mrf.mxu0
        %v1330 = vadd.f32 %v1256, %v1329
        %v1331 = vpop.f32.mrf.mxu0
        %v1332 = vadd.f32 %v1256, %v1331
        %1333 = vmatmul.bf16.gmra.mxu0 %v1211
        %v1334 = vpop.f32.mrf.mxu0
        %v1335 = vadd.f32 %v1256, %v1334
        %v1336 = vpop.f32.mrf.mxu0
        %v1337 = vadd.f32 %v1256, %v1336
        %1338 = vmatmul.bf16.gmra.mxu0 %v1212
        %v1339 = vpop.f32.mrf.mxu0
        %v1340 = vadd.f32 %v1256, %v1339
        %v1341 = vpop.f32.mrf.mxu0
        %v1342 = vadd.f32 %v1256, %v1341
        %1343 = vmatmul.bf16.gmra.mxu0 %v1213
        %v1344 = vpop.f32.mrf.mxu0
        %v1345 = vadd.f32 %v1256, %v1344
        %v1346 = vpop.f32.mrf.mxu0
        %v1347 = vadd.f32 %v1256, %v1346
        %1348 = vmatmul.bf16.gmra.mxu0 %v1214
        %v1349 = vpop.f32.mrf.mxu0
        %v1350 = vadd.f32 %v1256, %v1349
        %v1351 = vpop.f32.mrf.mxu0
        %v1352 = vadd.f32 %v1256, %v1351
        %1353 = vmatmul.bf16.gmra.mxu0 %v1215
        %v1354 = vpop.f32.mrf.mxu0
        %v1355 = vadd.f32 %v1256, %v1354
        %v1356 = vpop.f32.mrf.mxu0
        %v1357 = vadd.f32 %v1256, %v1356
        %1358 = vmatmul.bf16.gmra.mxu0 %v1216
        %v1359 = vpop.f32.mrf.mxu0
        %v1360 = vadd.f32 %v1256, %v1359
        %v1361 = vpop.f32.mrf.mxu0
        %v1362 = vadd.f32 %v1256, %v1361
        %1363 = vmatmul.bf16.gmra.mxu0 %v1217
        %v1364 = vpop.f32.mrf.mxu0
        %v1365 = vadd.f32 %v1256, %v1364
        %v1366 = vpop.f32.mrf.mxu0
        %v1367 = vadd.f32 %v1256, %v1366
        %1368 = vmatmul.bf16.gmra.mxu0 %v1218
        %v1369 = vpop.f32.mrf.mxu0
        %v1370 = vadd.f32 %v1256, %v1369
        %v1371 = vpop.f32.mrf.mxu0
        %v1372 = vadd.f32 %v1256, %v1371
        %1373 = vmatmul.bf16.gmra.mxu0 %v1219
        %v1374 = vpop.f32.mrf.mxu0
        %v1375 = vadd.f32 %v1256, %v1374
        %v1376 = vpop.f32.mrf.mxu0
        %v1377 = vadd.f32 %v1256, %v1376
        %1378 = vmatmul.bf16.gmra.mxu0 %v1220
        %v1379 = vpop.f32.mrf.mxu0
        %v1380 = vadd.f32 %v1256, %v1379
        %v1381 = vpop.f32.mrf.mxu0
        %v1382 = vadd.f32 %v1256, %v1381
        %1383 = vmatmul.bf16.gmra.mxu0 %v1221
        %v1384 = vpop.f32.mrf.mxu0
        %v1385 = vadd.f32 %v1256, %v1384
        %v1386 = vpop.f32.mrf.mxu0
        %v1387 = vadd.f32 %v1256, %v1386
        %1388 = vmatmul.bf16.gmra.mxu0 %v1222
        %v1389 = vpop.f32.mrf.mxu0
        %v1390 = vadd.f32 %v1256, %v1389
        %v1391 = vpop.f32.mrf.mxu0
        %v1392 = vadd.f32 %v1256, %v1391
        %1393 = vmatmul.bf16.gmra.mxu0 %v1223
        %v1394 = vpop.f32.mrf.mxu0
        %v1395 = vadd.f32 %v1256, %v1394
        %v1396 = vpop.f32.mrf.mxu0
        %v1397 = vadd.f32 %v1256, %v1396
        %1398 = vmatmul.bf16.gmra.mxu0 %v1224
        %v1399 = vpop.f32.mrf.mxu0
        %v1400 = vadd.f32 %v1256, %v1399
        %v1401 = vpop.f32.mrf.mxu0
        %v1402 = vadd.f32 %v1256, %v1401
        %1403 = vmatmul.bf16.gmra.mxu0 %v1225
        %v1404 = vpop.f32.mrf.mxu0
        %v1405 = vadd.f32 %v1256, %v1404
        %v1406 = vpop.f32.mrf.mxu0
        %v1407 = vadd.f32 %v1256, %v1406
        %1408 = vmatmul.bf16.gmra.mxu0 %v1226
        %v1409 = vpop.f32.mrf.mxu0
        %v1410 = vadd.f32 %v1256, %v1409
        %v1411 = vpop.f32.mrf.mxu0
        %v1412 = vadd.f32 %v1256, %v1411
        %1413 = vmatmul.bf16.gmra.mxu0 %v1227
        %v1414 = vpop.f32.mrf.mxu0
        %v1415 = vadd.f32 %v1256, %v1414
        %v1416 = vpop.f32.mrf.mxu0
        %v1417 = vadd.f32 %v1256, %v1416
        %1418 = vmatmul.bf16.gmra.mxu0 %v1228
        %v1419 = vpop.f32.mrf.mxu0
        %v1420 = vadd.f32 %v1256, %v1419
        %v1421 = vpop.f32.mrf.mxu0
        %v1422 = vadd.f32 %v1256, %v1421
        %1423 = vmatmul.bf16.gmra.mxu0 %v1229
        %v1424 = vpop.f32.mrf.mxu0
        %v1425 = vadd.f32 %v1256, %v1424
        %v1426 = vpop.f32.mrf.mxu0
        %v1427 = vadd.f32 %v1256, %v1426
        %1428 = vmatmul.bf16.gmra.mxu0 %v1230
        %v1429 = vpop.f32.mrf.mxu0
        %v1430 = vadd.f32 %v1256, %v1429
        %v1431 = vpop.f32.mrf.mxu0
        %v1432 = vadd.f32 %v1256, %v1431
        %1433 = vmatmul.bf16.gmra.mxu0 %v1231
        %v1434 = vpop.f32.mrf.mxu0
        %v1435 = vadd.f32 %v1256, %v1434
        %v1436 = vpop.f32.mrf.mxu0
        %v1437 = vadd.f32 %v1256, %v1436
        %1438 = vmatmul.bf16.gmra.mxu0 %v1232
        %v1439 = vpop.f32.mrf.mxu0
        %v1440 = vadd.f32 %v1256, %v1439
        %v1441 = vpop.f32.mrf.mxu0
        %v1442 = vadd.f32 %v1256, %v1441
        %1443 = vmatmul.bf16.gmra.mxu0 %v1233
        %v1444 = vpop.f32.mrf.mxu0
        %v1445 = vadd.f32 %v1256, %v1444
        %v1446 = vpop.f32.mrf.mxu0
        %v1447 = vadd.f32 %v1256, %v1446
        %1448 = vmatmul.bf16.gmra.mxu0 %v1234
        %v1449 = vpop.f32.mrf.mxu0
        %v1450 = vadd.f32 %v1256, %v1449
        %v1451 = vpop.f32.mrf.mxu0
        %v1452 = vadd.f32 %v1256, %v1451
        %1453 = vmatmul.bf16.gmra.mxu0 %v1235
        %v1454 = vpop.f32.mrf.mxu0
        %v1455 = vadd.f32 %v1256, %v1454
        %v1456 = vpop.f32.mrf.mxu0
        %v1457 = vadd.f32 %v1256, %v1456
        %1458 = vmatmul.bf16.gmra.mxu0 %v1236
        %v1459 = vpop.f32.mrf.mxu0
        %v1460 = vadd.f32 %v1256, %v1459
        %v1461 = vpop.f32.mrf.mxu0
        %v1462 = vadd.f32 %v1256, %v1461
        %1463 = vmatmul.bf16.gmra.mxu0 %v1237
        %v1464 = vpop.f32.mrf.mxu0
        %v1465 = vadd.f32 %v1256, %v1464
        %v1466 = vpop.f32.mrf.mxu0
        %v1467 = vadd.f32 %v1256, %v1466
        %1468 = vmatmul.bf16.gmra.mxu0 %v1238
        %v1469 = vpop.f32.mrf.mxu0
        %v1470 = vadd.f32 %v1256, %v1469
        %v1471 = vpop.f32.mrf.mxu0
        %v1472 = vadd.f32 %v1256, %v1471
        %1473 = vdwg.mxu0
        %v1474 = vmax.f32 %v1315, 0.0
        %v1475 = vmax.f32 %v1317, 0.0
        %v1476 = vmax.f32 %v1320, 0.0
        %v1477 = vmax.f32 %v1322, 0.0
        %v1478 = vmax.f32 %v1325, 0.0
        %v1479 = vmax.f32 %v1327, 0.0
        %v1480 = vmax.f32 %v1330, 0.0
        %v1481 = vmax.f32 %v1332, 0.0
        %v1482 = vmax.f32 %v1335, 0.0
        %v1483 = vmax.f32 %v1337, 0.0
        %v1484 = vmax.f32 %v1340, 0.0
        %v1485 = vmax.f32 %v1342, 0.0
        %v1486 = vmax.f32 %v1345, 0.0
        %v1487 = vmax.f32 %v1347, 0.0
        %v1488 = vmax.f32 %v1350, 0.0
        %v1489 = vmax.f32 %v1352, 0.0
        %v1490 = vmax.f32 %v1355, 0.0
        %v1491 = vmax.f32 %v1357, 0.0
        %v1492 = vmax.f32 %v1360, 0.0
        %v1493 = vmax.f32 %v1362, 0.0
        %v1494 = vmax.f32 %v1365, 0.0
        %v1495 = vmax.f32 %v1367, 0.0
        %v1496 = vmax.f32 %v1370, 0.0
        %v1497 = vmax.f32 %v1372, 0.0
        %v1498 = vmax.f32 %v1375, 0.0
        %v1499 = vmax.f32 %v1377, 0.0
        %v1500 = vmax.f32 %v1380, 0.0
        %v1501 = vmax.f32 %v1382, 0.0
        %v1502 = vmax.f32 %v1385, 0.0
        %v1503 = vmax.f32 %v1387, 0.0
        %v1504 = vmax.f32 %v1390, 0.0
        %v1505 = vmax.f32 %v1392, 0.0
        %v1506 = vmax.f32 %v1395, 0.0
        %v1507 = vmax.f32 %v1397, 0.0
        %v1508 = vmax.f32 %v1400, 0.0
        %v1509 = vmax.f32 %v1402, 0.0
        %v1510 = vmax.f32 %v1405, 0.0
        %v1511 = vmax.f32 %v1407, 0.0
        %v1512 = vmax.f32 %v1410, 0.0
        %v1513 = vmax.f32 %v1412, 0.0
        %v1514 = vmax.f32 %v1415, 0.0
        %v1515 = vmax.f32 %v1417, 0.0
        %v1516 = vmax.f32 %v1420, 0.0
        %v1517 = vmax.f32 %v1422, 0.0
        %v1518 = vmax.f32 %v1425, 0.0
        %v1519 = vmax.f32 %v1427, 0.0
        %v1520 = vmax.f32 %v1430, 0.0
        %v1521 = vmax.f32 %v1432, 0.0
        %v1522 = vmax.f32 %v1435, 0.0
        %v1523 = vmax.f32 %v1437, 0.0
        %v1524 = vmax.f32 %v1440, 0.0
        %v1525 = vmax.f32 %v1442, 0.0
        %v1526 = vmax.f32 %v1445, 0.0
        %v1527 = vmax.f32 %v1447, 0.0
        %v1528 = vmax.f32 %v1450, 0.0
        %v1529 = vmax.f32 %v1452, 0.0
        %v1530 = vmax.f32 %v1455, 0.0
        %v1531 = vmax.f32 %v1457, 0.0
        %v1532 = vmax.f32 %v1460, 0.0
        %v1533 = vmax.f32 %v1462, 0.0
        %v1534 = vmax.f32 %v1465, 0.0
        %v1535 = vmax.f32 %v1467, 0.0
        %v1536 = vmax.f32 %v1470, 0.0
        %v1537 = vmax.f32 %v1472, 0.0
        %v1538 = vpack.c.bf16 %v1475, %v1474
        %v1539 = vpack.c.bf16 %v1477, %v1476
        %v1540 = vpack.c.bf16 %v1479, %v1478
        %v1541 = vpack.c.bf16 %v1481, %v1480
        %v1542 = vpack.c.bf16 %v1483, %v1482
        %v1543 = vpack.c.bf16 %v1485, %v1484
        %v1544 = vpack.c.bf16 %v1487, %v1486
        %v1545 = vpack.c.bf16 %v1489, %v1488
        %v1546 = vpack.c.bf16 %v1491, %v1490
        %v1547 = vpack.c.bf16 %v1493, %v1492
        %v1548 = vpack.c.bf16 %v1495, %v1494
        %v1549 = vpack.c.bf16 %v1497, %v1496
        %v1550 = vpack.c.bf16 %v1499, %v1498
        %v1551 = vpack.c.bf16 %v1501, %v1500
        %v1552 = vpack.c.bf16 %v1503, %v1502
        %v1553 = vpack.c.bf16 %v1505, %v1504
        %v1554 = vpack.c.bf16 %v1507, %v1506
        %v1555 = vpack.c.bf16 %v1509, %v1508
        %v1556 = vpack.c.bf16 %v1511, %v1510
        %v1557 = vpack.c.bf16 %v1513, %v1512
        %v1558 = vpack.c.bf16 %v1515, %v1514
        %v1559 = vpack.c.bf16 %v1517, %v1516
        %v1560 = vpack.c.bf16 %v1519, %v1518
        %v1561 = vpack.c.bf16 %v1521, %v1520
        %v1562 = vpack.c.bf16 %v1523, %v1522
        %v1563 = vpack.c.bf16 %v1525, %v1524
        %v1564 = vpack.c.bf16 %v1527, %v1526
        %v1565 = vpack.c.bf16 %v1529, %v1528
        %v1566 = vpack.c.bf16 %v1531, %v1530
        %v1567 = vpack.c.bf16 %v1533, %v1532
        %v1568 = vpack.c.bf16 %v1535, %v1534
        %v1569 = vpack.c.bf16 %v1537, %v1536
        %v1570 = vld [vmem:[%s5] sm:$0xf]
        %v1571 = vld [vmem:[%s5 + $0x4] sm:$0xf]
        %v1572 = vld [vmem:[%s5 + $0x8] sm:$0xf]
        %v1573 = vld [vmem:[%s5 + $0xc] sm:$0xf]
        %v1574 = vld [vmem:[%s5 + $0x10] sm:$0xf]
        %v1575 = vld [vmem:[%s5 + $0x14] sm:$0xf]
        %v1576 = vld [vmem:[%s5 + $0x18] sm:$0xf]
        %v1577 = vld [vmem:[%s5 + $0x1c] sm:$0xf]
        %v1578 = vld [vmem:[%s5 + $0x20] sm:$0xf]
        %v1579 = vld [vmem:[%s5 + $0x24] sm:$0xf]
        %v1580 = vld [vmem:[%s5 + $0x28] sm:$0xf]
        %v1581 = vld [vmem:[%s5 + $0x2c] sm:$0xf]
        %v1582 = vld [vmem:[%s5 + $0x30] sm:$0xf]
        %v1583 = vld [vmem:[%s5 + $0x34] sm:$0xf]
        %v1584 = vld [vmem:[%s5 + $0x38] sm:$0xf]
        %v1585 = vld [vmem:[%s5 + $0x3c] sm:$0xf]
        %v1586 = vld [vmem:[%s6] sm:$0x1]
        %v1587 = vperm.slane %v1586, 0
        %v1604 = vunpack.c.l.b16 %v1570
        %v1605 = vunpack.c.l.b16 %v1571
        %v1606 = vunpack.c.l.b16 %v1572
        %v1607 = vunpack.c.l.b16 %v1573
        %v1608 = vunpack.c.l.b16 %v1574
        %v1609 = vunpack.c.l.b16 %v1575
        %v1610 = vunpack.c.l.b16 %v1576
        %v1611 = vunpack.c.l.b16 %v1577
        %v1612 = vunpack.c.l.b16 %v1578
        %v1613 = vunpack.c.l.b16 %v1579
        %v1614 = vunpack.c.l.b16 %v1580
        %v1615 = vunpack.c.l.b16 %v1581
        %v1616 = vunpack.c.l.b16 %v1582
        %v1617 = vunpack.c.l.b16 %v1583
        %v1618 = vunpack.c.l.b16 %v1584
        %v1619 = vunpack.c.l.b16 %v1585
        %v1620 = vpack.c.b16 %v1605, %v1604
        %v1621 = vpack.c.b16 %v1607, %v1606
        %v1622 = vpack.c.b16 %v1609, %v1608
        %v1623 = vpack.c.b16 %v1611, %v1610
        %v1624 = vpack.c.b16 %v1613, %v1612
        %v1625 = vpack.c.b16 %v1615, %v1614
        %v1626 = vpack.c.b16 %v1617, %v1616
        %v1627 = vpack.c.b16 %v1619, %v1618
        %1636 = vmatpush.bf16.msra.mxu0 %v1627
        %1637 = vmatpush.bf16.msra.mxu0 %v1626
        %1638 = vmatpush.bf16.msra.mxu0 %v1625
        %1639 = vmatpush.bf16.msra.mxu0 %v1624
        %1640 = vmatpush.bf16.msra.mxu0 %v1623
        %1641 = vmatpush.bf16.msra.mxu0 %v1622
        %1642 = vmatpush.bf16.msra.mxu0 %v1621
        %1643 = vmatpush.bf16.msra.mxu0 %v1620
        %1644 = vmatmul.bf16.gmra.mxu0 %v1538
        %v1645 = vpop.f32.mrf.mxu0
        %v1646 = vadd.f32 %v1587, %v1645
        %v1647 = vpop.f32.mrf.mxu0
        %v1648 = vadd.f32 %v1587, %v1647
        %1649 = vmatmul.bf16.gmra.mxu0 %v1539
        %v1650 = vpop.f32.mrf.mxu0
        %v1651 = vadd.f32 %v1587, %v1650
        %v1652 = vpop.f32.mrf.mxu0
        %v1653 = vadd.f32 %v1587, %v1652
        %1654 = vmatmul.bf16.gmra.mxu0 %v1540
        %v1655 = vpop.f32.mrf.mxu0
        %v1656 = vadd.f32 %v1587, %v1655
        %v1657 = vpop.f32.mrf.mxu0
        %v1658 = vadd.f32 %v1587, %v1657
        %1659 = vmatmul.bf16.gmra.mxu0 %v1541
        %v1660 = vpop.f32.mrf.mxu0
        %v1661 = vadd.f32 %v1587, %v1660
        %v1662 = vpop.f32.mrf.mxu0
        %v1663 = vadd.f32 %v1587, %v1662
        %1664 = vmatmul.bf16.gmra.mxu0 %v1542
        %v1665 = vpop.f32.mrf.mxu0
        %v1666 = vadd.f32 %v1587, %v1665
        %v1667 = vpop.f32.mrf.mxu0
        %v1668 = vadd.f32 %v1587, %v1667
        %1669 = vmatmul.bf16.gmra.mxu0 %v1543
        %v1670 = vpop.f32.mrf.mxu0
        %v1671 = vadd.f32 %v1587, %v1670
        %v1672 = vpop.f32.mrf.mxu0
        %v1673 = vadd.f32 %v1587, %v1672
        %1674 = vmatmul.bf16.gmra.mxu0 %v1544
        %v1675 = vpop.f32.mrf.mxu0
        %v1676 = vadd.f32 %v1587, %v1675
        %v1677 = vpop.f32.mrf.mxu0
        %v1678 = vadd.f32 %v1587, %v1677
        %1679 = vmatmul.bf16.gmra.mxu0 %v1545
        %v1680 = vpop.f32.mrf.mxu0
        %v1681 = vadd.f32 %v1587, %v1680
        %v1682 = vpop.f32.mrf.mxu0
        %v1683 = vadd.f32 %v1587, %v1682
        %1684 = vmatmul.bf16.gmra.mxu0 %v1546
        %v1685 = vpop.f32.mrf.mxu0
        %v1686 = vadd.f32 %v1587, %v1685
        %v1687 = vpop.f32.mrf.mxu0
        %v1688 = vadd.f32 %v1587, %v1687
        %1689 = vmatmul.bf16.gmra.mxu0 %v1547
        %v1690 = vpop.f32.mrf.mxu0
        %v1691 = vadd.f32 %v1587, %v1690
        %v1692 = vpop.f32.mrf.mxu0
        %v1693 = vadd.f32 %v1587, %v1692
        %1694 = vmatmul.bf16.gmra.mxu0 %v1548
        %v1695 = vpop.f32.mrf.mxu0
        %v1696 = vadd.f32 %v1587, %v1695
        %v1697 = vpop.f32.mrf.mxu0
        %v1698 = vadd.f32 %v1587, %v1697
        %1699 = vmatmul.bf16.gmra.mxu0 %v1549
        %v1700 = vpop.f32.mrf.mxu0
        %v1701 = vadd.f32 %v1587, %v1700
        %v1702 = vpop.f32.mrf.mxu0
        %v1703 = vadd.f32 %v1587, %v1702
        %1704 = vmatmul.bf16.gmra.mxu0 %v1550
        %v1705 = vpop.f32.mrf.mxu0
        %v1706 = vadd.f32 %v1587, %v1705
        %v1707 = vpop.f32.mrf.mxu0
        %v1708 = vadd.f32 %v1587, %v1707
        %1709 = vmatmul.bf16.gmra.mxu0 %v1551
        %v1710 = vpop.f32.mrf.mxu0
        %v1711 = vadd.f32 %v1587, %v1710
        %v1712 = vpop.f32.mrf.mxu0
        %v1713 = vadd.f32 %v1587, %v1712
        %1714 = vmatmul.bf16.gmra.mxu0 %v1552
        %v1715 = vpop.f32.mrf.mxu0
        %v1716 = vadd.f32 %v1587, %v1715
        %v1717 = vpop.f32.mrf.mxu0
        %v1718 = vadd.f32 %v1587, %v1717
        %1719 = vmatmul.bf16.gmra.mxu0 %v1553
        %v1720 = vpop.f32.mrf.mxu0
        %v1721 = vadd.f32 %v1587, %v1720
        %v1722 = vpop.f32.mrf.mxu0
        %v1723 = vadd.f32 %v1587, %v1722
        %1724 = vmatmul.bf16.gmra.mxu0 %v1554
        %v1725 = vpop.f32.mrf.mxu0
        %v1726 = vadd.f32 %v1587, %v1725
        %v1727 = vpop.f32.mrf.mxu0
        %v1728 = vadd.f32 %v1587, %v1727
        %1729 = vmatmul.bf16.gmra.mxu0 %v1555
        %v1730 = vpop.f32.mrf.mxu0
        %v1731 = vadd.f32 %v1587, %v1730
        %v1732 = vpop.f32.mrf.mxu0
        %v1733 = vadd.f32 %v1587, %v1732
        %1734 = vmatmul.bf16.gmra.mxu0 %v1556
        %v1735 = vpop.f32.mrf.mxu0
        %v1736 = vadd.f32 %v1587, %v1735
        %v1737 = vpop.f32.mrf.mxu0
        %v1738 = vadd.f32 %v1587, %v1737
        %1739 = vmatmul.bf16.gmra.mxu0 %v1557
        %v1740 = vpop.f32.mrf.mxu0
        %v1741 = vadd.f32 %v1587, %v1740
        %v1742 = vpop.f32.mrf.mxu0
        %v1743 = vadd.f32 %v1587, %v1742
        %1744 = vmatmul.bf16.gmra.mxu0 %v1558
        %v1745 = vpop.f32.mrf.mxu0
        %v1746 = vadd.f32 %v1587, %v1745
        %v1747 = vpop.f32.mrf.mxu0
        %v1748 = vadd.f32 %v1587, %v1747
        %1749 = vmatmul.bf16.gmra.mxu0 %v1559
        %v1750 = vpop.f32.mrf.mxu0
        %v1751 = vadd.f32 %v1587, %v1750
        %v1752 = vpop.f32.mrf.mxu0
        %v1753 = vadd.f32 %v1587, %v1752
        %1754 = vmatmul.bf16.gmra.mxu0 %v1560
        %v1755 = vpop.f32.mrf.mxu0
        %v1756 = vadd.f32 %v1587, %v1755
        %v1757 = vpop.f32.mrf.mxu0
        %v1758 = vadd.f32 %v1587, %v1757
        %1759 = vmatmul.bf16.gmra.mxu0 %v1561
        %v1760 = vpop.f32.mrf.mxu0
        %v1761 = vadd.f32 %v1587, %v1760
        %v1762 = vpop.f32.mrf.mxu0
        %v1763 = vadd.f32 %v1587, %v1762
        %1764 = vmatmul.bf16.gmra.mxu0 %v1562
        %v1765 = vpop.f32.mrf.mxu0
        %v1766 = vadd.f32 %v1587, %v1765
        %v1767 = vpop.f32.mrf.mxu0
        %v1768 = vadd.f32 %v1587, %v1767
        %1769 = vmatmul.bf16.gmra.mxu0 %v1563
        %v1770 = vpop.f32.mrf.mxu0
        %v1771 = vadd.f32 %v1587, %v1770
        %v1772 = vpop.f32.mrf.mxu0
        %v1773 = vadd.f32 %v1587, %v1772
        %1774 = vmatmul.bf16.gmra.mxu0 %v1564
        %v1775 = vpop.f32.mrf.mxu0
        %v1776 = vadd.f32 %v1587, %v1775
        %v1777 = vpop.f32.mrf.mxu0
        %v1778 = vadd.f32 %v1587, %v1777
        %1779 = vmatmul.bf16.gmra.mxu0 %v1565
        %v1780 = vpop.f32.mrf.mxu0
        %v1781 = vadd.f32 %v1587, %v1780
        %v1782 = vpop.f32.mrf.mxu0
        %v1783 = vadd.f32 %v1587, %v1782
        %1784 = vmatmul.bf16.gmra.mxu0 %v1566
        %v1785 = vpop.f32.mrf.mxu0
        %v1786 = vadd.f32 %v1587, %v1785
        %v1787 = vpop.f32.mrf.mxu0
        %v1788 = vadd.f32 %v1587, %v1787
        %1789 = vmatmul.bf16.gmra.mxu0 %v1567
        %v1790 = vpop.f32.mrf.mxu0
        %v1791 = vadd.f32 %v1587, %v1790
        %v1792 = vpop.f32.mrf.mxu0
        %v1793 = vadd.f32 %v1587, %v1792
        %1794 = vmatmul.bf16.gmra.mxu0 %v1568
        %v1795 = vpop.f32.mrf.mxu0
        %v1796 = vadd.f32 %v1587, %v1795
        %v1797 = vpop.f32.mrf.mxu0
        %v1798 = vadd.f32 %v1587, %v1797
        %1799 = vmatmul.bf16.gmra.mxu0 %v1569
        %v1800 = vpop.f32.mrf.mxu0
        %v1801 = vadd.f32 %v1587, %v1800
        %v1802 = vpop.f32.mrf.mxu0
        %v1803 = vadd.f32 %v1587, %v1802
        %1804 = vdwg.mxu0
        %v1805 = vadd.f32 %v646, %v1646
        %v1806 = vadd.f32 %v648, %v1648
        %v1807 = vadd.f32 %v651, %v1651
        %v1808 = vadd.f32 %v653, %v1653
        %v1809 = vadd.f32 %v656, %v1656
        %v1810 = vadd.f32 %v658, %v1658
        %v1811 = vadd.f32 %v661, %v1661
        %v1812 = vadd.f32 %v663, %v1663
        %v1813 = vadd.f32 %v666, %v1666
        %v1814 = vadd.f32 %v668, %v1668
        %v1815 = vadd.f32 %v671, %v1671
        %v1816 = vadd.f32 %v673, %v1673
        %v1817 = vadd.f32 %v676, %v1676
        %v1818 = vadd.f32 %v678, %v1678
        %v1819 = vadd.f32 %v681, %v1681
        %v1820 = vadd.f32 %v683, %v1683
        %v1821 = vadd.f32 %v686, %v1686
        %v1822 = vadd.f32 %v688, %v1688
        %v1823 = vadd.f32 %v691, %v1691
        %v1824 = vadd.f32 %v693, %v1693
        %v1825 = vadd.f32 %v696, %v1696
        %v1826 = vadd.f32 %v698, %v1698
        %v1827 = vadd.f32 %v701, %v1701
        %v1828 = vadd.f32 %v703, %v1703
        %v1829 = vadd.f32 %v706, %v1706
        %v1830 = vadd.f32 %v708, %v1708
        %v1831 = vadd.f32 %v711, %v1711
        %v1832 = vadd.f32 %v713, %v1713
        %v1833 = vadd.f32 %v716, %v1716
        %v1834 = vadd.f32 %v718, %v1718
        %v1835 = vadd.f32 %v721, %v1721
        %v1836 = vadd.f32 %v723, %v1723
        %v1837 = vadd.f32 %v726, %v1726
        %v1838 = vadd.f32 %v728, %v1728
        %v1839 = vadd.f32 %v731, %v1731
        %v1840 = vadd.f32 %v733, %v1733
        %v1841 = vadd.f32 %v736, %v1736
        %v1842 = vadd.f32 %v738, %v1738
        %v1843 = vadd.f32 %v741, %v1741
        %v1844 = vadd.f32 %v743, %v1743
        %v1845 = vadd.f32 %v746, %v1746
        %v1846 = vadd.f32 %v748, %v1748
        %v1847 = vadd.f32 %v751, %v1751
        %v1848 = vadd.f32 %v753, %v1753
        %v1849 = vadd.f32 %v756, %v1756
        %v1850 = vadd.f32 %v758, %v1758
        %v1851 = vadd.f32 %v761, %v1761
        %v1852 = vadd.f32 %v763, %v1763
        %v1853 = vadd.f32 %v766, %v1766
        %v1854 = vadd.f32 %v768, %v1768
        %v1855 = vadd.f32 %v771, %v1771
        %v1856 = vadd.f32 %v773, %v1773
        %v1857 = vadd.f32 %v776, %v1776
        %v1858 = vadd.f32 %v778, %v1778
        %v1859 = vadd.f32 %v781, %v1781
        %v1860 = vadd.f32 %v783, %v1783
        %v1861 = vadd.f32 %v786, %v1786
        %v1862 = vadd.f32 %v788, %v1788
        %v1863 = vadd.f32 %v791, %v1791
        %v1864 = vadd.f32 %v793, %v1793
        %v1865 = vadd.f32 %v796, %v1796
        %v1866 = vadd.f32 %v798, %v1798
        %v1867 = vadd.f32 %v801, %v1801
        %v1868 = vadd.f32 %v803, %v1803
        %v1869 = vadd.f32 %v1805, %v815
        %v1870 = vadd.f32 %v1806, %v817
        %v1871 = vadd.f32 %v1807, %v820
        %v1872 = vadd.f32 %v1808, %v822
        %v1873 = vadd.f32 %v1809, %v825
        %v1874 = vadd.f32 %v1810, %v827
        %v1875 = vadd.f32 %v1811, %v830
        %v1876 = vadd.f32 %v1812, %v832
        %v1877 = vadd.f32 %v1813, %v835
        %v1878 = vadd.f32 %v1814, %v837
        %v1879 = vadd.f32 %v1815, %v840
        %v1880 = vadd.f32 %v1816, %v842
        %v1881 = vadd.f32 %v1817, %v845
        %v1882 = vadd.f32 %v1818, %v847
        %v1883 = vadd.f32 %v1819, %v850
        %v1884 = vadd.f32 %v1820, %v852
        %v1885 = vadd.f32 %v1821, %v855
        %v1886 = vadd.f32 %v1822, %v857
        %v1887 = vadd.f32 %v1823, %v860
        %v1888 = vadd.f32 %v1824, %v862
        %v1889 = vadd.f32 %v1825, %v865
        %v1890 = vadd.f32 %v1826, %v867
        %v1891 = vadd.f32 %v1827, %v870
        %v1892 = vadd.f32 %v1828, %v872
        %v1893 = vadd.f32 %v1829, %v875
        %v1894 = vadd.f32 %v1830, %v877
        %v1895 = vadd.f32 %v1831, %v880
        %v1896 = vadd.f32 %v1832, %v882
        %v1897 = vadd.f32 %v1833, %v885
        %v1898 = vadd.f32 %v1834, %v887
        %v1899 = vadd.f32 %v1835, %v890
        %v1900 = vadd.f32 %v1836, %v892
        %v1901 = vadd.f32 %v1837, %v895
        %v1902 = vadd.f32 %v1838, %v897
        %v1903 = vadd.f32 %v1839, %v900
        %v1904 = vadd.f32 %v1840, %v902
        %v1905 = vadd.f32 %v1841, %v905
        %v1906 = vadd.f32 %v1842, %v907
        %v1907 = vadd.f32 %v1843, %v910
        %v1908 = vadd.f32 %v1844, %v912
        %v1909 = vadd.f32 %v1845, %v915
        %v1910 = vadd.f32 %v1846, %v917
        %v1911 = vadd.f32 %v1847, %v920
        %v1912 = vadd.f32 %v1848, %v922
        %v1913 = vadd.f32 %v1849, %v925
        %v1914 = vadd.f32 %v1850, %v927
        %v1915 = vadd.f32 %v1851, %v930
        %v1916 = vadd.f32 %v1852, %v932
        %v1917 = vadd.f32 %v1853, %v935
        %v1918 = vadd.f32 %v1854, %v937
        %v1919 = vadd.f32 %v1855, %v940
        %v1920 = vadd.f32 %v1856, %v942
        %v1921 = vadd.f32 %v1857, %v945
        %v1922 = vadd.f32 %v1858, %v947
        %v1923 = vadd.f32 %v1859, %v950
        %v1924 = vadd.f32 %v1860, %v952
        %v1925 = vadd.f32 %v1861, %v955
        %v1926 = vadd.f32 %v1862, %v957
        %v1927 = vadd.f32 %v1863, %v960
        %v1928 = vadd.f32 %v1864, %v962
        %v1929 = vadd.f32 %v1865, %v965
        %v1930 = vadd.f32 %v1866, %v967
        %v1931 = vadd.f32 %v1867, %v970
        %v1932 = vadd.f32 %v1868, %v972
        %v1933 = vmax.f32 %v1869, 0.0
        %v1934 = vmax.f32 %v1870, 0.0
        %v1935 = vmax.f32 %v1871, 0.0
        %v1936 = vmax.f32 %v1872, 0.0
        %v1937 = vmax.f32 %v1873, 0.0
        %v1938 = vmax.f32 %v1874, 0.0
        %v1939 = vmax.f32 %v1875, 0.0
        %v1940 = vmax.f32 %v1876, 0.0
        %v1941 = vmax.f32 %v1877, 0.0
        %v1942 = vmax.f32 %v1878, 0.0
        %v1943 = vmax.f32 %v1879, 0.0
        %v1944 = vmax.f32 %v1880, 0.0
        %v1945 = vmax.f32 %v1881, 0.0
        %v1946 = vmax.f32 %v1882, 0.0
        %v1947 = vmax.f32 %v1883, 0.0
        %v1948 = vmax.f32 %v1884, 0.0
        %v1949 = vmax.f32 %v1885, 0.0
        %v1950 = vmax.f32 %v1886, 0.0
        %v1951 = vmax.f32 %v1887, 0.0
        %v1952 = vmax.f32 %v1888, 0.0
        %v1953 = vmax.f32 %v1889, 0.0
        %v1954 = vmax.f32 %v1890, 0.0
        %v1955 = vmax.f32 %v1891, 0.0
        %v1956 = vmax.f32 %v1892, 0.0
        %v1957 = vmax.f32 %v1893, 0.0
        %v1958 = vmax.f32 %v1894, 0.0
        %v1959 = vmax.f32 %v1895, 0.0
        %v1960 = vmax.f32 %v1896, 0.0
        %v1961 = vmax.f32 %v1897, 0.0
        %v1962 = vmax.f32 %v1898, 0.0
        %v1963 = vmax.f32 %v1899, 0.0
        %v1964 = vmax.f32 %v1900, 0.0
        %v1965 = vmax.f32 %v1901, 0.0
        %v1966 = vmax.f32 %v1902, 0.0
        %v1967 = vmax.f32 %v1903, 0.0
        %v1968 = vmax.f32 %v1904, 0.0
        %v1969 = vmax.f32 %v1905, 0.0
        %v1970 = vmax.f32 %v1906, 0.0
        %v1971 = vmax.f32 %v1907, 0.0
        %v1972 = vmax.f32 %v1908, 0.0
        %v1973 = vmax.f32 %v1909, 0.0
        %v1974 = vmax.f32 %v1910, 0.0
        %v1975 = vmax.f32 %v1911, 0.0
        %v1976 = vmax.f32 %v1912, 0.0
        %v1977 = vmax.f32 %v1913, 0.0
        %v1978 = vmax.f32 %v1914, 0.0
        %v1979 = vmax.f32 %v1915, 0.0
        %v1980 = vmax.f32 %v1916, 0.0
        %v1981 = vmax.f32 %v1917, 0.0
        %v1982 = vmax.f32 %v1918, 0.0
        %v1983 = vmax.f32 %v1919, 0.0
        %v1984 = vmax.f32 %v1920, 0.0
        %v1985 = vmax.f32 %v1921, 0.0
        %v1986 = vmax.f32 %v1922, 0.0
        %v1987 = vmax.f32 %v1923, 0.0
        %v1988 = vmax.f32 %v1924, 0.0
        %v1989 = vmax.f32 %v1925, 0.0
        %v1990 = vmax.f32 %v1926, 0.0
        %v1991 = vmax.f32 %v1927, 0.0
        %v1992 = vmax.f32 %v1928, 0.0
        %v1993 = vmax.f32 %v1929, 0.0
        %v1994 = vmax.f32 %v1930, 0.0
        %v1995 = vmax.f32 %v1931, 0.0
        %v1996 = vmax.f32 %v1932, 0.0
        %v1997 = vpack.c.bf16 %v1934, %v1933
        %v1998 = vpack.c.bf16 %v1936, %v1935
        %v1999 = vpack.c.bf16 %v1938, %v1937
        %v2000 = vpack.c.bf16 %v1940, %v1939
        %v2001 = vpack.c.bf16 %v1942, %v1941
        %v2002 = vpack.c.bf16 %v1944, %v1943
        %v2003 = vpack.c.bf16 %v1946, %v1945
        %v2004 = vpack.c.bf16 %v1948, %v1947
        %v2005 = vpack.c.bf16 %v1950, %v1949
        %v2006 = vpack.c.bf16 %v1952, %v1951
        %v2007 = vpack.c.bf16 %v1954, %v1953
        %v2008 = vpack.c.bf16 %v1956, %v1955
        %v2009 = vpack.c.bf16 %v1958, %v1957
        %v2010 = vpack.c.bf16 %v1960, %v1959
        %v2011 = vpack.c.bf16 %v1962, %v1961
        %v2012 = vpack.c.bf16 %v1964, %v1963
        %v2013 = vpack.c.bf16 %v1966, %v1965
        %v2014 = vpack.c.bf16 %v1968, %v1967
        %v2015 = vpack.c.bf16 %v1970, %v1969
        %v2016 = vpack.c.bf16 %v1972, %v1971
        %v2017 = vpack.c.bf16 %v1974, %v1973
        %v2018 = vpack.c.bf16 %v1976, %v1975
        %v2019 = vpack.c.bf16 %v1978, %v1977
        %v2020 = vpack.c.bf16 %v1980, %v1979
        %v2021 = vpack.c.bf16 %v1982, %v1981
        %v2022 = vpack.c.bf16 %v1984, %v1983
        %v2023 = vpack.c.bf16 %v1986, %v1985
        %v2024 = vpack.c.bf16 %v1988, %v1987
        %v2025 = vpack.c.bf16 %v1990, %v1989
        %v2026 = vpack.c.bf16 %v1992, %v1991
        %v2027 = vpack.c.bf16 %v1994, %v1993
        %v2028 = vpack.c.bf16 %v1996, %v1995
        %s2029 = scalar_lea.vmem %s3, 64
        %v2030 = vld [vmem:[%s2029] sm:$0xf]
        %v2031 = vld [vmem:[%s2029 + $0x4] sm:$0xf]
        %v2032 = vld [vmem:[%s2029 + $0x8] sm:$0xf]
        %v2033 = vld [vmem:[%s2029 + $0xc] sm:$0xf]
        %v2034 = vld [vmem:[%s2029 + $0x10] sm:$0xf]
        %v2035 = vld [vmem:[%s2029 + $0x14] sm:$0xf]
        %v2036 = vld [vmem:[%s2029 + $0x18] sm:$0xf]
        %v2037 = vld [vmem:[%s2029 + $0x1c] sm:$0xf]
        %v2038 = vld [vmem:[%s2029 + $0x20] sm:$0xf]
        %v2039 = vld [vmem:[%s2029 + $0x24] sm:$0xf]
        %v2040 = vld [vmem:[%s2029 + $0x28] sm:$0xf]
        %v2041 = vld [vmem:[%s2029 + $0x2c] sm:$0xf]
        %v2042 = vld [vmem:[%s2029 + $0x30] sm:$0xf]
        %v2043 = vld [vmem:[%s2029 + $0x34] sm:$0xf]
        %v2044 = vld [vmem:[%s2029 + $0x38] sm:$0xf]
        %v2045 = vld [vmem:[%s2029 + $0x3c] sm:$0xf]
        %v2046 = vld [vmem:[%s4 + $0x1] sm:$0x1]
        %v2047 = vperm.slane %v2046, 0
        %v2064 = vunpack.c.l.b16 %v2030
        %v2065 = vunpack.c.l.b16 %v2031
        %v2066 = vunpack.c.l.b16 %v2032
        %v2067 = vunpack.c.l.b16 %v2033
        %v2068 = vunpack.c.l.b16 %v2034
        %v2069 = vunpack.c.l.b16 %v2035
        %v2070 = vunpack.c.l.b16 %v2036
        %v2071 = vunpack.c.l.b16 %v2037
        %v2072 = vunpack.c.l.b16 %v2038
        %v2073 = vunpack.c.l.b16 %v2039
        %v2074 = vunpack.c.l.b16 %v2040
        %v2075 = vunpack.c.l.b16 %v2041
        %v2076 = vunpack.c.l.b16 %v2042
        %v2077 = vunpack.c.l.b16 %v2043
        %v2078 = vunpack.c.l.b16 %v2044
        %v2079 = vunpack.c.l.b16 %v2045
        %v2080 = vpack.c.b16 %v2065, %v2064
        %v2081 = vpack.c.b16 %v2067, %v2066
        %v2082 = vpack.c.b16 %v2069, %v2068
        %v2083 = vpack.c.b16 %v2071, %v2070
        %v2084 = vpack.c.b16 %v2073, %v2072
        %v2085 = vpack.c.b16 %v2075, %v2074
        %v2086 = vpack.c.b16 %v2077, %v2076
        %v2087 = vpack.c.b16 %v2079, %v2078
        %2096 = vmatpush.bf16.msra.mxu0 %v2087
        %2097 = vmatpush.bf16.msra.mxu0 %v2086
        %2098 = vmatpush.bf16.msra.mxu0 %v2085
        %2099 = vmatpush.bf16.msra.mxu0 %v2084
        %2100 = vmatpush.bf16.msra.mxu0 %v2083
        %2101 = vmatpush.bf16.msra.mxu0 %v2082
        %2102 = vmatpush.bf16.msra.mxu0 %v2081
        %2103 = vmatpush.bf16.msra.mxu0 %v2080
        %2104 = vmatmul.bf16.gmra.mxu0 %v1997
        %v2105 = vpop.f32.mrf.mxu0
        %v2106 = vadd.f32 %v2047, %v2105
        %v2107 = vpop.f32.mrf.mxu0
        %v2108 = vadd.f32 %v2047, %v2107
        %2109 = vmatmul.bf16.gmra.mxu0 %v1998
        %v2110 = vpop.f32.mrf.mxu0
        %v2111 = vadd.f32 %v2047, %v2110
        %v2112 = vpop.f32.mrf.mxu0
        %v2113 = vadd.f32 %v2047, %v2112
        %2114 = vmatmul.bf16.gmra.mxu0 %v1999
        %v2115 = vpop.f32.mrf.mxu0
        %v2116 = vadd.f32 %v2047, %v2115
        %v2117 = vpop.f32.mrf.mxu0
        %v2118 = vadd.f32 %v2047, %v2117
        %2119 = vmatmul.bf16.gmra.mxu0 %v2000
        %v2120 = vpop.f32.mrf.mxu0
        %v2121 = vadd.f32 %v2047, %v2120
        %v2122 = vpop.f32.mrf.mxu0
        %v2123 = vadd.f32 %v2047, %v2122
        %2124 = vmatmul.bf16.gmra.mxu0 %v2001
        %v2125 = vpop.f32.mrf.mxu0
        %v2126 = vadd.f32 %v2047, %v2125
        %v2127 = vpop.f32.mrf.mxu0
        %v2128 = vadd.f32 %v2047, %v2127
        %2129 = vmatmul.bf16.gmra.mxu0 %v2002
        %v2130 = vpop.f32.mrf.mxu0
        %v2131 = vadd.f32 %v2047, %v2130
        %v2132 = vpop.f32.mrf.mxu0
        %v2133 = vadd.f32 %v2047, %v2132
        %2134 = vmatmul.bf16.gmra.mxu0 %v2003
        %v2135 = vpop.f32.mrf.mxu0
        %v2136 = vadd.f32 %v2047, %v2135
        %v2137 = vpop.f32.mrf.mxu0
        %v2138 = vadd.f32 %v2047, %v2137
        %2139 = vmatmul.bf16.gmra.mxu0 %v2004
        %v2140 = vpop.f32.mrf.mxu0
        %v2141 = vadd.f32 %v2047, %v2140
        %v2142 = vpop.f32.mrf.mxu0
        %v2143 = vadd.f32 %v2047, %v2142
        %2144 = vmatmul.bf16.gmra.mxu0 %v2005
        %v2145 = vpop.f32.mrf.mxu0
        %v2146 = vadd.f32 %v2047, %v2145
        %v2147 = vpop.f32.mrf.mxu0
        %v2148 = vadd.f32 %v2047, %v2147
        %2149 = vmatmul.bf16.gmra.mxu0 %v2006
        %v2150 = vpop.f32.mrf.mxu0
        %v2151 = vadd.f32 %v2047, %v2150
        %v2152 = vpop.f32.mrf.mxu0
        %v2153 = vadd.f32 %v2047, %v2152
        %2154 = vmatmul.bf16.gmra.mxu0 %v2007
        %v2155 = vpop.f32.mrf.mxu0
        %v2156 = vadd.f32 %v2047, %v2155
        %v2157 = vpop.f32.mrf.mxu0
        %v2158 = vadd.f32 %v2047, %v2157
        %2159 = vmatmul.bf16.gmra.mxu0 %v2008
        %v2160 = vpop.f32.mrf.mxu0
        %v2161 = vadd.f32 %v2047, %v2160
        %v2162 = vpop.f32.mrf.mxu0
        %v2163 = vadd.f32 %v2047, %v2162
        %2164 = vmatmul.bf16.gmra.mxu0 %v2009
        %v2165 = vpop.f32.mrf.mxu0
        %v2166 = vadd.f32 %v2047, %v2165
        %v2167 = vpop.f32.mrf.mxu0
        %v2168 = vadd.f32 %v2047, %v2167
        %2169 = vmatmul.bf16.gmra.mxu0 %v2010
        %v2170 = vpop.f32.mrf.mxu0
        %v2171 = vadd.f32 %v2047, %v2170
        %v2172 = vpop.f32.mrf.mxu0
        %v2173 = vadd.f32 %v2047, %v2172
        %2174 = vmatmul.bf16.gmra.mxu0 %v2011
        %v2175 = vpop.f32.mrf.mxu0
        %v2176 = vadd.f32 %v2047, %v2175
        %v2177 = vpop.f32.mrf.mxu0
        %v2178 = vadd.f32 %v2047, %v2177
        %2179 = vmatmul.bf16.gmra.mxu0 %v2012
        %v2180 = vpop.f32.mrf.mxu0
        %v2181 = vadd.f32 %v2047, %v2180
        %v2182 = vpop.f32.mrf.mxu0
        %v2183 = vadd.f32 %v2047, %v2182
        %2184 = vmatmul.bf16.gmra.mxu0 %v2013
        %v2185 = vpop.f32.mrf.mxu0
        %v2186 = vadd.f32 %v2047, %v2185
        %v2187 = vpop.f32.mrf.mxu0
        %v2188 = vadd.f32 %v2047, %v2187
        %2189 = vmatmul.bf16.gmra.mxu0 %v2014
        %v2190 = vpop.f32.mrf.mxu0
        %v2191 = vadd.f32 %v2047, %v2190
        %v2192 = vpop.f32.mrf.mxu0
        %v2193 = vadd.f32 %v2047, %v2192
        %2194 = vmatmul.bf16.gmra.mxu0 %v2015
        %v2195 = vpop.f32.mrf.mxu0
        %v2196 = vadd.f32 %v2047, %v2195
        %v2197 = vpop.f32.mrf.mxu0
        %v2198 = vadd.f32 %v2047, %v2197
        %2199 = vmatmul.bf16.gmra.mxu0 %v2016
        %v2200 = vpop.f32.mrf.mxu0
        %v2201 = vadd.f32 %v2047, %v2200
        %v2202 = vpop.f32.mrf.mxu0
        %v2203 = vadd.f32 %v2047, %v2202
        %2204 = vmatmul.bf16.gmra.mxu0 %v2017
        %v2205 = vpop.f32.mrf.mxu0
        %v2206 = vadd.f32 %v2047, %v2205
        %v2207 = vpop.f32.mrf.mxu0
        %v2208 = vadd.f32 %v2047, %v2207
        %2209 = vmatmul.bf16.gmra.mxu0 %v2018
        %v2210 = vpop.f32.mrf.mxu0
        %v2211 = vadd.f32 %v2047, %v2210
        %v2212 = vpop.f32.mrf.mxu0
        %v2213 = vadd.f32 %v2047, %v2212
        %2214 = vmatmul.bf16.gmra.mxu0 %v2019
        %v2215 = vpop.f32.mrf.mxu0
        %v2216 = vadd.f32 %v2047, %v2215
        %v2217 = vpop.f32.mrf.mxu0
        %v2218 = vadd.f32 %v2047, %v2217
        %2219 = vmatmul.bf16.gmra.mxu0 %v2020
        %v2220 = vpop.f32.mrf.mxu0
        %v2221 = vadd.f32 %v2047, %v2220
        %v2222 = vpop.f32.mrf.mxu0
        %v2223 = vadd.f32 %v2047, %v2222
        %2224 = vmatmul.bf16.gmra.mxu0 %v2021
        %v2225 = vpop.f32.mrf.mxu0
        %v2226 = vadd.f32 %v2047, %v2225
        %v2227 = vpop.f32.mrf.mxu0
        %v2228 = vadd.f32 %v2047, %v2227
        %2229 = vmatmul.bf16.gmra.mxu0 %v2022
        %v2230 = vpop.f32.mrf.mxu0
        %v2231 = vadd.f32 %v2047, %v2230
        %v2232 = vpop.f32.mrf.mxu0
        %v2233 = vadd.f32 %v2047, %v2232
        %2234 = vmatmul.bf16.gmra.mxu0 %v2023
        %v2235 = vpop.f32.mrf.mxu0
        %v2236 = vadd.f32 %v2047, %v2235
        %v2237 = vpop.f32.mrf.mxu0
        %v2238 = vadd.f32 %v2047, %v2237
        %2239 = vmatmul.bf16.gmra.mxu0 %v2024
        %v2240 = vpop.f32.mrf.mxu0
        %v2241 = vadd.f32 %v2047, %v2240
        %v2242 = vpop.f32.mrf.mxu0
        %v2243 = vadd.f32 %v2047, %v2242
        %2244 = vmatmul.bf16.gmra.mxu0 %v2025
        %v2245 = vpop.f32.mrf.mxu0
        %v2246 = vadd.f32 %v2047, %v2245
        %v2247 = vpop.f32.mrf.mxu0
        %v2248 = vadd.f32 %v2047, %v2247
        %2249 = vmatmul.bf16.gmra.mxu0 %v2026
        %v2250 = vpop.f32.mrf.mxu0
        %v2251 = vadd.f32 %v2047, %v2250
        %v2252 = vpop.f32.mrf.mxu0
        %v2253 = vadd.f32 %v2047, %v2252
        %2254 = vmatmul.bf16.gmra.mxu0 %v2027
        %v2255 = vpop.f32.mrf.mxu0
        %v2256 = vadd.f32 %v2047, %v2255
        %v2257 = vpop.f32.mrf.mxu0
        %v2258 = vadd.f32 %v2047, %v2257
        %2259 = vmatmul.bf16.gmra.mxu0 %v2028
        %v2260 = vpop.f32.mrf.mxu0
        %v2261 = vadd.f32 %v2047, %v2260
        %v2262 = vpop.f32.mrf.mxu0
        %v2263 = vadd.f32 %v2047, %v2262
        %2264 = vdwg.mxu0
        %v2265 = vmax.f32 %v2106, 0.0
        %v2266 = vmax.f32 %v2108, 0.0
        %v2267 = vmax.f32 %v2111, 0.0
        %v2268 = vmax.f32 %v2113, 0.0
        %v2269 = vmax.f32 %v2116, 0.0
        %v2270 = vmax.f32 %v2118, 0.0
        %v2271 = vmax.f32 %v2121, 0.0
        %v2272 = vmax.f32 %v2123, 0.0
        %v2273 = vmax.f32 %v2126, 0.0
        %v2274 = vmax.f32 %v2128, 0.0
        %v2275 = vmax.f32 %v2131, 0.0
        %v2276 = vmax.f32 %v2133, 0.0
        %v2277 = vmax.f32 %v2136, 0.0
        %v2278 = vmax.f32 %v2138, 0.0
        %v2279 = vmax.f32 %v2141, 0.0
        %v2280 = vmax.f32 %v2143, 0.0
        %v2281 = vmax.f32 %v2146, 0.0
        %v2282 = vmax.f32 %v2148, 0.0
        %v2283 = vmax.f32 %v2151, 0.0
        %v2284 = vmax.f32 %v2153, 0.0
        %v2285 = vmax.f32 %v2156, 0.0
        %v2286 = vmax.f32 %v2158, 0.0
        %v2287 = vmax.f32 %v2161, 0.0
        %v2288 = vmax.f32 %v2163, 0.0
        %v2289 = vmax.f32 %v2166, 0.0
        %v2290 = vmax.f32 %v2168, 0.0
        %v2291 = vmax.f32 %v2171, 0.0
        %v2292 = vmax.f32 %v2173, 0.0
        %v2293 = vmax.f32 %v2176, 0.0
        %v2294 = vmax.f32 %v2178, 0.0
        %v2295 = vmax.f32 %v2181, 0.0
        %v2296 = vmax.f32 %v2183, 0.0
        %v2297 = vmax.f32 %v2186, 0.0
        %v2298 = vmax.f32 %v2188, 0.0
        %v2299 = vmax.f32 %v2191, 0.0
        %v2300 = vmax.f32 %v2193, 0.0
        %v2301 = vmax.f32 %v2196, 0.0
        %v2302 = vmax.f32 %v2198, 0.0
        %v2303 = vmax.f32 %v2201, 0.0
        %v2304 = vmax.f32 %v2203, 0.0
        %v2305 = vmax.f32 %v2206, 0.0
        %v2306 = vmax.f32 %v2208, 0.0
        %v2307 = vmax.f32 %v2211, 0.0
        %v2308 = vmax.f32 %v2213, 0.0
        %v2309 = vmax.f32 %v2216, 0.0
        %v2310 = vmax.f32 %v2218, 0.0
        %v2311 = vmax.f32 %v2221, 0.0
        %v2312 = vmax.f32 %v2223, 0.0
        %v2313 = vmax.f32 %v2226, 0.0
        %v2314 = vmax.f32 %v2228, 0.0
        %v2315 = vmax.f32 %v2231, 0.0
        %v2316 = vmax.f32 %v2233, 0.0
        %v2317 = vmax.f32 %v2236, 0.0
        %v2318 = vmax.f32 %v2238, 0.0
        %v2319 = vmax.f32 %v2241, 0.0
        %v2320 = vmax.f32 %v2243, 0.0
        %v2321 = vmax.f32 %v2246, 0.0
        %v2322 = vmax.f32 %v2248, 0.0
        %v2323 = vmax.f32 %v2251, 0.0
        %v2324 = vmax.f32 %v2253, 0.0
        %v2325 = vmax.f32 %v2256, 0.0
        %v2326 = vmax.f32 %v2258, 0.0
        %v2327 = vmax.f32 %v2261, 0.0
        %v2328 = vmax.f32 %v2263, 0.0
        %v2329 = vpack.c.bf16 %v2266, %v2265
        %v2330 = vpack.c.bf16 %v2268, %v2267
        %v2331 = vpack.c.bf16 %v2270, %v2269
        %v2332 = vpack.c.bf16 %v2272, %v2271
        %v2333 = vpack.c.bf16 %v2274, %v2273
        %v2334 = vpack.c.bf16 %v2276, %v2275
        %v2335 = vpack.c.bf16 %v2278, %v2277
        %v2336 = vpack.c.bf16 %v2280, %v2279
        %v2337 = vpack.c.bf16 %v2282, %v2281
        %v2338 = vpack.c.bf16 %v2284, %v2283
        %v2339 = vpack.c.bf16 %v2286, %v2285
        %v2340 = vpack.c.bf16 %v2288, %v2287
        %v2341 = vpack.c.bf16 %v2290, %v2289
        %v2342 = vpack.c.bf16 %v2292, %v2291
        %v2343 = vpack.c.bf16 %v2294, %v2293
        %v2344 = vpack.c.bf16 %v2296, %v2295
        %v2345 = vpack.c.bf16 %v2298, %v2297
        %v2346 = vpack.c.bf16 %v2300, %v2299
        %v2347 = vpack.c.bf16 %v2302, %v2301
        %v2348 = vpack.c.bf16 %v2304, %v2303
        %v2349 = vpack.c.bf16 %v2306, %v2305
        %v2350 = vpack.c.bf16 %v2308, %v2307
        %v2351 = vpack.c.bf16 %v2310, %v2309
        %v2352 = vpack.c.bf16 %v2312, %v2311
        %v2353 = vpack.c.bf16 %v2314, %v2313
        %v2354 = vpack.c.bf16 %v2316, %v2315
        %v2355 = vpack.c.bf16 %v2318, %v2317
        %v2356 = vpack.c.bf16 %v2320, %v2319
        %v2357 = vpack.c.bf16 %v2322, %v2321
        %v2358 = vpack.c.bf16 %v2324, %v2323
        %v2359 = vpack.c.bf16 %v2326, %v2325
        %v2360 = vpack.c.bf16 %v2328, %v2327
        %s2361 = scalar_lea.vmem %s5, 64
        %v2362 = vld [vmem:[%s2361] sm:$0xf]
        %v2363 = vld [vmem:[%s2361 + $0x4] sm:$0xf]
        %v2364 = vld [vmem:[%s2361 + $0x8] sm:$0xf]
        %v2365 = vld [vmem:[%s2361 + $0xc] sm:$0xf]
        %v2366 = vld [vmem:[%s2361 + $0x10] sm:$0xf]
        %v2367 = vld [vmem:[%s2361 + $0x14] sm:$0xf]
        %v2368 = vld [vmem:[%s2361 + $0x18] sm:$0xf]
        %v2369 = vld [vmem:[%s2361 + $0x1c] sm:$0xf]
        %v2370 = vld [vmem:[%s2361 + $0x20] sm:$0xf]
        %v2371 = vld [vmem:[%s2361 + $0x24] sm:$0xf]
        %v2372 = vld [vmem:[%s2361 + $0x28] sm:$0xf]
        %v2373 = vld [vmem:[%s2361 + $0x2c] sm:$0xf]
        %v2374 = vld [vmem:[%s2361 + $0x30] sm:$0xf]
        %v2375 = vld [vmem:[%s2361 + $0x34] sm:$0xf]
        %v2376 = vld [vmem:[%s2361 + $0x38] sm:$0xf]
        %v2377 = vld [vmem:[%s2361 + $0x3c] sm:$0xf]
        %v2378 = vld [vmem:[%s6 + $0x1] sm:$0x1]
        %v2379 = vperm.slane %v2378, 0
        %v2396 = vunpack.c.l.b16 %v2362
        %v2397 = vunpack.c.l.b16 %v2363
        %v2398 = vunpack.c.l.b16 %v2364
        %v2399 = vunpack.c.l.b16 %v2365
        %v2400 = vunpack.c.l.b16 %v2366
        %v2401 = vunpack.c.l.b16 %v2367
        %v2402 = vunpack.c.l.b16 %v2368
        %v2403 = vunpack.c.l.b16 %v2369
        %v2404 = vunpack.c.l.b16 %v2370
        %v2405 = vunpack.c.l.b16 %v2371
        %v2406 = vunpack.c.l.b16 %v2372
        %v2407 = vunpack.c.l.b16 %v2373
        %v2408 = vunpack.c.l.b16 %v2374
        %v2409 = vunpack.c.l.b16 %v2375
        %v2410 = vunpack.c.l.b16 %v2376
        %v2411 = vunpack.c.l.b16 %v2377
        %v2412 = vpack.c.b16 %v2397, %v2396
        %v2413 = vpack.c.b16 %v2399, %v2398
        %v2414 = vpack.c.b16 %v2401, %v2400
        %v2415 = vpack.c.b16 %v2403, %v2402
        %v2416 = vpack.c.b16 %v2405, %v2404
        %v2417 = vpack.c.b16 %v2407, %v2406
        %v2418 = vpack.c.b16 %v2409, %v2408
        %v2419 = vpack.c.b16 %v2411, %v2410
        %2428 = vmatpush.bf16.msra.mxu0 %v2419
        %2429 = vmatpush.bf16.msra.mxu0 %v2418
        %2430 = vmatpush.bf16.msra.mxu0 %v2417
        %2431 = vmatpush.bf16.msra.mxu0 %v2416
        %2432 = vmatpush.bf16.msra.mxu0 %v2415
        %2433 = vmatpush.bf16.msra.mxu0 %v2414
        %2434 = vmatpush.bf16.msra.mxu0 %v2413
        %2435 = vmatpush.bf16.msra.mxu0 %v2412
        %2436 = vmatmul.bf16.gmra.mxu0 %v2329
        %v2437 = vpop.f32.mrf.mxu0
        %v2438 = vadd.f32 %v2379, %v2437
        %v2439 = vpop.f32.mrf.mxu0
        %v2440 = vadd.f32 %v2379, %v2439
        %2441 = vmatmul.bf16.gmra.mxu0 %v2330
        %v2442 = vpop.f32.mrf.mxu0
        %v2443 = vadd.f32 %v2379, %v2442
        %v2444 = vpop.f32.mrf.mxu0
        %v2445 = vadd.f32 %v2379, %v2444
        %2446 = vmatmul.bf16.gmra.mxu0 %v2331
        %v2447 = vpop.f32.mrf.mxu0
        %v2448 = vadd.f32 %v2379, %v2447
        %v2449 = vpop.f32.mrf.mxu0
        %v2450 = vadd.f32 %v2379, %v2449
        %2451 = vmatmul.bf16.gmra.mxu0 %v2332
        %v2452 = vpop.f32.mrf.mxu0
        %v2453 = vadd.f32 %v2379, %v2452
        %v2454 = vpop.f32.mrf.mxu0
        %v2455 = vadd.f32 %v2379, %v2454
        %2456 = vmatmul.bf16.gmra.mxu0 %v2333
        %v2457 = vpop.f32.mrf.mxu0
        %v2458 = vadd.f32 %v2379, %v2457
        %v2459 = vpop.f32.mrf.mxu0
        %v2460 = vadd.f32 %v2379, %v2459
        %2461 = vmatmul.bf16.gmra.mxu0 %v2334
        %v2462 = vpop.f32.mrf.mxu0
        %v2463 = vadd.f32 %v2379, %v2462
        %v2464 = vpop.f32.mrf.mxu0
        %v2465 = vadd.f32 %v2379, %v2464
        %2466 = vmatmul.bf16.gmra.mxu0 %v2335
        %v2467 = vpop.f32.mrf.mxu0
        %v2468 = vadd.f32 %v2379, %v2467
        %v2469 = vpop.f32.mrf.mxu0
        %v2470 = vadd.f32 %v2379, %v2469
        %2471 = vmatmul.bf16.gmra.mxu0 %v2336
        %v2472 = vpop.f32.mrf.mxu0
        %v2473 = vadd.f32 %v2379, %v2472
        %v2474 = vpop.f32.mrf.mxu0
        %v2475 = vadd.f32 %v2379, %v2474
        %2476 = vmatmul.bf16.gmra.mxu0 %v2337
        %v2477 = vpop.f32.mrf.mxu0
        %v2478 = vadd.f32 %v2379, %v2477
        %v2479 = vpop.f32.mrf.mxu0
        %v2480 = vadd.f32 %v2379, %v2479
        %2481 = vmatmul.bf16.gmra.mxu0 %v2338
        %v2482 = vpop.f32.mrf.mxu0
        %v2483 = vadd.f32 %v2379, %v2482
        %v2484 = vpop.f32.mrf.mxu0
        %v2485 = vadd.f32 %v2379, %v2484
        %2486 = vmatmul.bf16.gmra.mxu0 %v2339
        %v2487 = vpop.f32.mrf.mxu0
        %v2488 = vadd.f32 %v2379, %v2487
        %v2489 = vpop.f32.mrf.mxu0
        %v2490 = vadd.f32 %v2379, %v2489
        %2491 = vmatmul.bf16.gmra.mxu0 %v2340
        %v2492 = vpop.f32.mrf.mxu0
        %v2493 = vadd.f32 %v2379, %v2492
        %v2494 = vpop.f32.mrf.mxu0
        %v2495 = vadd.f32 %v2379, %v2494
        %2496 = vmatmul.bf16.gmra.mxu0 %v2341
        %v2497 = vpop.f32.mrf.mxu0
        %v2498 = vadd.f32 %v2379, %v2497
        %v2499 = vpop.f32.mrf.mxu0
        %v2500 = vadd.f32 %v2379, %v2499
        %2501 = vmatmul.bf16.gmra.mxu0 %v2342
        %v2502 = vpop.f32.mrf.mxu0
        %v2503 = vadd.f32 %v2379, %v2502
        %v2504 = vpop.f32.mrf.mxu0
        %v2505 = vadd.f32 %v2379, %v2504
        %2506 = vmatmul.bf16.gmra.mxu0 %v2343
        %v2507 = vpop.f32.mrf.mxu0
        %v2508 = vadd.f32 %v2379, %v2507
        %v2509 = vpop.f32.mrf.mxu0
        %v2510 = vadd.f32 %v2379, %v2509
        %2511 = vmatmul.bf16.gmra.mxu0 %v2344
        %v2512 = vpop.f32.mrf.mxu0
        %v2513 = vadd.f32 %v2379, %v2512
        %v2514 = vpop.f32.mrf.mxu0
        %v2515 = vadd.f32 %v2379, %v2514
        %2516 = vmatmul.bf16.gmra.mxu0 %v2345
        %v2517 = vpop.f32.mrf.mxu0
        %v2518 = vadd.f32 %v2379, %v2517
        %v2519 = vpop.f32.mrf.mxu0
        %v2520 = vadd.f32 %v2379, %v2519
        %2521 = vmatmul.bf16.gmra.mxu0 %v2346
        %v2522 = vpop.f32.mrf.mxu0
        %v2523 = vadd.f32 %v2379, %v2522
        %v2524 = vpop.f32.mrf.mxu0
        %v2525 = vadd.f32 %v2379, %v2524
        %2526 = vmatmul.bf16.gmra.mxu0 %v2347
        %v2527 = vpop.f32.mrf.mxu0
        %v2528 = vadd.f32 %v2379, %v2527
        %v2529 = vpop.f32.mrf.mxu0
        %v2530 = vadd.f32 %v2379, %v2529
        %2531 = vmatmul.bf16.gmra.mxu0 %v2348
        %v2532 = vpop.f32.mrf.mxu0
        %v2533 = vadd.f32 %v2379, %v2532
        %v2534 = vpop.f32.mrf.mxu0
        %v2535 = vadd.f32 %v2379, %v2534
        %2536 = vmatmul.bf16.gmra.mxu0 %v2349
        %v2537 = vpop.f32.mrf.mxu0
        %v2538 = vadd.f32 %v2379, %v2537
        %v2539 = vpop.f32.mrf.mxu0
        %v2540 = vadd.f32 %v2379, %v2539
        %2541 = vmatmul.bf16.gmra.mxu0 %v2350
        %v2542 = vpop.f32.mrf.mxu0
        %v2543 = vadd.f32 %v2379, %v2542
        %v2544 = vpop.f32.mrf.mxu0
        %v2545 = vadd.f32 %v2379, %v2544
        %2546 = vmatmul.bf16.gmra.mxu0 %v2351
        %v2547 = vpop.f32.mrf.mxu0
        %v2548 = vadd.f32 %v2379, %v2547
        %v2549 = vpop.f32.mrf.mxu0
        %v2550 = vadd.f32 %v2379, %v2549
        %2551 = vmatmul.bf16.gmra.mxu0 %v2352
        %v2552 = vpop.f32.mrf.mxu0
        %v2553 = vadd.f32 %v2379, %v2552
        %v2554 = vpop.f32.mrf.mxu0
        %v2555 = vadd.f32 %v2379, %v2554
        %2556 = vmatmul.bf16.gmra.mxu0 %v2353
        %v2557 = vpop.f32.mrf.mxu0
        %v2558 = vadd.f32 %v2379, %v2557
        %v2559 = vpop.f32.mrf.mxu0
        %v2560 = vadd.f32 %v2379, %v2559
        %2561 = vmatmul.bf16.gmra.mxu0 %v2354
        %v2562 = vpop.f32.mrf.mxu0
        %v2563 = vadd.f32 %v2379, %v2562
        %v2564 = vpop.f32.mrf.mxu0
        %v2565 = vadd.f32 %v2379, %v2564
        %2566 = vmatmul.bf16.gmra.mxu0 %v2355
        %v2567 = vpop.f32.mrf.mxu0
        %v2568 = vadd.f32 %v2379, %v2567
        %v2569 = vpop.f32.mrf.mxu0
        %v2570 = vadd.f32 %v2379, %v2569
        %2571 = vmatmul.bf16.gmra.mxu0 %v2356
        %v2572 = vpop.f32.mrf.mxu0
        %v2573 = vadd.f32 %v2379, %v2572
        %v2574 = vpop.f32.mrf.mxu0
        %v2575 = vadd.f32 %v2379, %v2574
        %2576 = vmatmul.bf16.gmra.mxu0 %v2357
        %v2577 = vpop.f32.mrf.mxu0
        %v2578 = vadd.f32 %v2379, %v2577
        %v2579 = vpop.f32.mrf.mxu0
        %v2580 = vadd.f32 %v2379, %v2579
        %2581 = vmatmul.bf16.gmra.mxu0 %v2358
        %v2582 = vpop.f32.mrf.mxu0
        %v2583 = vadd.f32 %v2379, %v2582
        %v2584 = vpop.f32.mrf.mxu0
        %v2585 = vadd.f32 %v2379, %v2584
        %2586 = vmatmul.bf16.gmra.mxu0 %v2359
        %v2587 = vpop.f32.mrf.mxu0
        %v2588 = vadd.f32 %v2379, %v2587
        %v2589 = vpop.f32.mrf.mxu0
        %v2590 = vadd.f32 %v2379, %v2589
        %2591 = vmatmul.bf16.gmra.mxu0 %v2360
        %v2592 = vpop.f32.mrf.mxu0
        %v2593 = vadd.f32 %v2379, %v2592
        %v2594 = vpop.f32.mrf.mxu0
        %v2595 = vadd.f32 %v2379, %v2594
        %2596 = vdwg.mxu0
        %v2597 = vadd.f32 %v1869, %v2438
        %v2598 = vadd.f32 %v1870, %v2440
        %v2599 = vadd.f32 %v1871, %v2443
        %v2600 = vadd.f32 %v1872, %v2445
        %v2601 = vadd.f32 %v1873, %v2448
        %v2602 = vadd.f32 %v1874, %v2450
        %v2603 = vadd.f32 %v1875, %v2453
        %v2604 = vadd.f32 %v1876, %v2455
        %v2605 = vadd.f32 %v1877, %v2458
        %v2606 = vadd.f32 %v1878, %v2460
        %v2607 = vadd.f32 %v1879, %v2463
        %v2608 = vadd.f32 %v1880, %v2465
        %v2609 = vadd.f32 %v1881, %v2468
        %v2610 = vadd.f32 %v1882, %v2470
        %v2611 = vadd.f32 %v1883, %v2473
        %v2612 = vadd.f32 %v1884, %v2475
        %v2613 = vadd.f32 %v1885, %v2478
        %v2614 = vadd.f32 %v1886, %v2480
        %v2615 = vadd.f32 %v1887, %v2483
        %v2616 = vadd.f32 %v1888, %v2485
        %v2617 = vadd.f32 %v1889, %v2488
        %v2618 = vadd.f32 %v1890, %v2490
        %v2619 = vadd.f32 %v1891, %v2493
        %v2620 = vadd.f32 %v1892, %v2495
        %v2621 = vadd.f32 %v1893, %v2498
        %v2622 = vadd.f32 %v1894, %v2500
        %v2623 = vadd.f32 %v1895, %v2503
        %v2624 = vadd.f32 %v1896, %v2505
        %v2625 = vadd.f32 %v1897, %v2508
        %v2626 = vadd.f32 %v1898, %v2510
        %v2627 = vadd.f32 %v1899, %v2513
        %v2628 = vadd.f32 %v1900, %v2515
        %v2629 = vadd.f32 %v1901, %v2518
        %v2630 = vadd.f32 %v1902, %v2520
        %v2631 = vadd.f32 %v1903, %v2523
        %v2632 = vadd.f32 %v1904, %v2525
        %v2633 = vadd.f32 %v1905, %v2528
        %v2634 = vadd.f32 %v1906, %v2530
        %v2635 = vadd.f32 %v1907, %v2533
        %v2636 = vadd.f32 %v1908, %v2535
        %v2637 = vadd.f32 %v1909, %v2538
        %v2638 = vadd.f32 %v1910, %v2540
        %v2639 = vadd.f32 %v1911, %v2543
        %v2640 = vadd.f32 %v1912, %v2545
        %v2641 = vadd.f32 %v1913, %v2548
        %v2642 = vadd.f32 %v1914, %v2550
        %v2643 = vadd.f32 %v1915, %v2553
        %v2644 = vadd.f32 %v1916, %v2555
        %v2645 = vadd.f32 %v1917, %v2558
        %v2646 = vadd.f32 %v1918, %v2560
        %v2647 = vadd.f32 %v1919, %v2563
        %v2648 = vadd.f32 %v1920, %v2565
        %v2649 = vadd.f32 %v1921, %v2568
        %v2650 = vadd.f32 %v1922, %v2570
        %v2651 = vadd.f32 %v1923, %v2573
        %v2652 = vadd.f32 %v1924, %v2575
        %v2653 = vadd.f32 %v1925, %v2578
        %v2654 = vadd.f32 %v1926, %v2580
        %v2655 = vadd.f32 %v1927, %v2583
        %v2656 = vadd.f32 %v1928, %v2585
        %v2657 = vadd.f32 %v1929, %v2588
        %v2658 = vadd.f32 %v1930, %v2590
        %v2659 = vadd.f32 %v1931, %v2593
        %v2660 = vadd.f32 %v1932, %v2595
        %v2661 = vadd.f32 %v2597, %v984
        %v2662 = vadd.f32 %v2598, %v986
        %v2663 = vadd.f32 %v2599, %v989
        %v2664 = vadd.f32 %v2600, %v991
        %v2665 = vadd.f32 %v2601, %v994
        %v2666 = vadd.f32 %v2602, %v996
        %v2667 = vadd.f32 %v2603, %v999
        %v2668 = vadd.f32 %v2604, %v1001
        %v2669 = vadd.f32 %v2605, %v1004
        %v2670 = vadd.f32 %v2606, %v1006
        %v2671 = vadd.f32 %v2607, %v1009
        %v2672 = vadd.f32 %v2608, %v1011
        %v2673 = vadd.f32 %v2609, %v1014
        %v2674 = vadd.f32 %v2610, %v1016
        %v2675 = vadd.f32 %v2611, %v1019
        %v2676 = vadd.f32 %v2612, %v1021
        %v2677 = vadd.f32 %v2613, %v1024
        %v2678 = vadd.f32 %v2614, %v1026
        %v2679 = vadd.f32 %v2615, %v1029
        %v2680 = vadd.f32 %v2616, %v1031
        %v2681 = vadd.f32 %v2617, %v1034
        %v2682 = vadd.f32 %v2618, %v1036
        %v2683 = vadd.f32 %v2619, %v1039
        %v2684 = vadd.f32 %v2620, %v1041
        %v2685 = vadd.f32 %v2621, %v1044
        %v2686 = vadd.f32 %v2622, %v1046
        %v2687 = vadd.f32 %v2623, %v1049
        %v2688 = vadd.f32 %v2624, %v1051
        %v2689 = vadd.f32 %v2625, %v1054
        %v2690 = vadd.f32 %v2626, %v1056
        %v2691 = vadd.f32 %v2627, %v1059
        %v2692 = vadd.f32 %v2628, %v1061
        %v2693 = vadd.f32 %v2629, %v1064
        %v2694 = vadd.f32 %v2630, %v1066
        %v2695 = vadd.f32 %v2631, %v1069
        %v2696 = vadd.f32 %v2632, %v1071
        %v2697 = vadd.f32 %v2633, %v1074
        %v2698 = vadd.f32 %v2634, %v1076
        %v2699 = vadd.f32 %v2635, %v1079
        %v2700 = vadd.f32 %v2636, %v1081
        %v2701 = vadd.f32 %v2637, %v1084
        %v2702 = vadd.f32 %v2638, %v1086
        %v2703 = vadd.f32 %v2639, %v1089
        %v2704 = vadd.f32 %v2640, %v1091
        %v2705 = vadd.f32 %v2641, %v1094
        %v2706 = vadd.f32 %v2642, %v1096
        %v2707 = vadd.f32 %v2643, %v1099
        %v2708 = vadd.f32 %v2644, %v1101
        %v2709 = vadd.f32 %v2645, %v1104
        %v2710 = vadd.f32 %v2646, %v1106
        %v2711 = vadd.f32 %v2647, %v1109
        %v2712 = vadd.f32 %v2648, %v1111
        %v2713 = vadd.f32 %v2649, %v1114
        %v2714 = vadd.f32 %v2650, %v1116
        %v2715 = vadd.f32 %v2651, %v1119
        %v2716 = vadd.f32 %v2652, %v1121
        %v2717 = vadd.f32 %v2653, %v1124
        %v2718 = vadd.f32 %v2654, %v1126
        %v2719 = vadd.f32 %v2655, %v1129
        %v2720 = vadd.f32 %v2656, %v1131
        %v2721 = vadd.f32 %v2657, %v1134
        %v2722 = vadd.f32 %v2658, %v1136
        %v2723 = vadd.f32 %v2659, %v1139
        %v2724 = vadd.f32 %v2660, %v1141
        %v2725 = vmax.f32 %v2661, 0.0
        %v2726 = vmax.f32 %v2662, 0.0
        %v2727 = vmax.f32 %v2663, 0.0
        %v2728 = vmax.f32 %v2664, 0.0
        %v2729 = vmax.f32 %v2665, 0.0
        %v2730 = vmax.f32 %v2666, 0.0
        %v2731 = vmax.f32 %v2667, 0.0
        %v2732 = vmax.f32 %v2668, 0.0
        %v2733 = vmax.f32 %v2669, 0.0
        %v2734 = vmax.f32 %v2670, 0.0
        %v2735 = vmax.f32 %v2671, 0.0
        %v2736 = vmax.f32 %v2672, 0.0
        %v2737 = vmax.f32 %v2673, 0.0
        %v2738 = vmax.f32 %v2674, 0.0
        %v2739 = vmax.f32 %v2675, 0.0
        %v2740 = vmax.f32 %v2676, 0.0
        %v2741 = vmax.f32 %v2677, 0.0
        %v2742 = vmax.f32 %v2678, 0.0
        %v2743 = vmax.f32 %v2679, 0.0
        %v2744 = vmax.f32 %v2680, 0.0
        %v2745 = vmax.f32 %v2681, 0.0
        %v2746 = vmax.f32 %v2682, 0.0
        %v2747 = vmax.f32 %v2683, 0.0
        %v2748 = vmax.f32 %v2684, 0.0
        %v2749 = vmax.f32 %v2685, 0.0
        %v2750 = vmax.f32 %v2686, 0.0
        %v2751 = vmax.f32 %v2687, 0.0
        %v2752 = vmax.f32 %v2688, 0.0
        %v2753 = vmax.f32 %v2689, 0.0
        %v2754 = vmax.f32 %v2690, 0.0
        %v2755 = vmax.f32 %v2691, 0.0
        %v2756 = vmax.f32 %v2692, 0.0
        %v2757 = vmax.f32 %v2693, 0.0
        %v2758 = vmax.f32 %v2694, 0.0
        %v2759 = vmax.f32 %v2695, 0.0
        %v2760 = vmax.f32 %v2696, 0.0
        %v2761 = vmax.f32 %v2697, 0.0
        %v2762 = vmax.f32 %v2698, 0.0
        %v2763 = vmax.f32 %v2699, 0.0
        %v2764 = vmax.f32 %v2700, 0.0
        %v2765 = vmax.f32 %v2701, 0.0
        %v2766 = vmax.f32 %v2702, 0.0
        %v2767 = vmax.f32 %v2703, 0.0
        %v2768 = vmax.f32 %v2704, 0.0
        %v2769 = vmax.f32 %v2705, 0.0
        %v2770 = vmax.f32 %v2706, 0.0
        %v2771 = vmax.f32 %v2707, 0.0
        %v2772 = vmax.f32 %v2708, 0.0
        %v2773 = vmax.f32 %v2709, 0.0
        %v2774 = vmax.f32 %v2710, 0.0
        %v2775 = vmax.f32 %v2711, 0.0
        %v2776 = vmax.f32 %v2712, 0.0
        %v2777 = vmax.f32 %v2713, 0.0
        %v2778 = vmax.f32 %v2714, 0.0
        %v2779 = vmax.f32 %v2715, 0.0
        %v2780 = vmax.f32 %v2716, 0.0
        %v2781 = vmax.f32 %v2717, 0.0
        %v2782 = vmax.f32 %v2718, 0.0
        %v2783 = vmax.f32 %v2719, 0.0
        %v2784 = vmax.f32 %v2720, 0.0
        %v2785 = vmax.f32 %v2721, 0.0
        %v2786 = vmax.f32 %v2722, 0.0
        %v2787 = vmax.f32 %v2723, 0.0
        %v2788 = vmax.f32 %v2724, 0.0
        %v2789 = vpack.c.bf16 %v2726, %v2725
        %v2790 = vpack.c.bf16 %v2728, %v2727
        %v2791 = vpack.c.bf16 %v2730, %v2729
        %v2792 = vpack.c.bf16 %v2732, %v2731
        %v2793 = vpack.c.bf16 %v2734, %v2733
        %v2794 = vpack.c.bf16 %v2736, %v2735
        %v2795 = vpack.c.bf16 %v2738, %v2737
        %v2796 = vpack.c.bf16 %v2740, %v2739
        %v2797 = vpack.c.bf16 %v2742, %v2741
        %v2798 = vpack.c.bf16 %v2744, %v2743
        %v2799 = vpack.c.bf16 %v2746, %v2745
        %v2800 = vpack.c.bf16 %v2748, %v2747
        %v2801 = vpack.c.bf16 %v2750, %v2749
        %v2802 = vpack.c.bf16 %v2752, %v2751
        %v2803 = vpack.c.bf16 %v2754, %v2753
        %v2804 = vpack.c.bf16 %v2756, %v2755
        %v2805 = vpack.c.bf16 %v2758, %v2757
        %v2806 = vpack.c.bf16 %v2760, %v2759
        %v2807 = vpack.c.bf16 %v2762, %v2761
        %v2808 = vpack.c.bf16 %v2764, %v2763
        %v2809 = vpack.c.bf16 %v2766, %v2765
        %v2810 = vpack.c.bf16 %v2768, %v2767
        %v2811 = vpack.c.bf16 %v2770, %v2769
        %v2812 = vpack.c.bf16 %v2772, %v2771
        %v2813 = vpack.c.bf16 %v2774, %v2773
        %v2814 = vpack.c.bf16 %v2776, %v2775
        %v2815 = vpack.c.bf16 %v2778, %v2777
        %v2816 = vpack.c.bf16 %v2780, %v2779
        %v2817 = vpack.c.bf16 %v2782, %v2781
        %v2818 = vpack.c.bf16 %v2784, %v2783
        %v2819 = vpack.c.bf16 %v2786, %v2785
        %v2820 = vpack.c.bf16 %v2788, %v2787
        %s2821 = scalar_lea.vmem %s3, 128
        %v2822 = vld [vmem:[%s2821] sm:$0xf]
        %v2823 = vld [vmem:[%s2821 + $0x4] sm:$0xf]
        %v2824 = vld [vmem:[%s2821 + $0x8] sm:$0xf]
        %v2825 = vld [vmem:[%s2821 + $0xc] sm:$0xf]
        %v2826 = vld [vmem:[%s2821 + $0x10] sm:$0xf]
        %v2827 = vld [vmem:[%s2821 + $0x14] sm:$0xf]
        %v2828 = vld [vmem:[%s2821 + $0x18] sm:$0xf]
        %v2829 = vld [vmem:[%s2821 + $0x1c] sm:$0xf]
        %v2830 = vld [vmem:[%s2821 + $0x20] sm:$0xf]
        %v2831 = vld [vmem:[%s2821 + $0x24] sm:$0xf]
        %v2832 = vld [vmem:[%s2821 + $0x28] sm:$0xf]
        %v2833 = vld [vmem:[%s2821 + $0x2c] sm:$0xf]
        %v2834 = vld [vmem:[%s2821 + $0x30] sm:$0xf]
        %v2835 = vld [vmem:[%s2821 + $0x34] sm:$0xf]
        %v2836 = vld [vmem:[%s2821 + $0x38] sm:$0xf]
        %v2837 = vld [vmem:[%s2821 + $0x3c] sm:$0xf]
        %v2838 = vld [vmem:[%s4 + $0x2] sm:$0x1]
        %v2839 = vperm.slane %v2838, 0
        %v2856 = vunpack.c.l.b16 %v2822
        %v2857 = vunpack.c.l.b16 %v2823
        %v2858 = vunpack.c.l.b16 %v2824
        %v2859 = vunpack.c.l.b16 %v2825
        %v2860 = vunpack.c.l.b16 %v2826
        %v2861 = vunpack.c.l.b16 %v2827
        %v2862 = vunpack.c.l.b16 %v2828
        %v2863 = vunpack.c.l.b16 %v2829
        %v2864 = vunpack.c.l.b16 %v2830
        %v2865 = vunpack.c.l.b16 %v2831
        %v2866 = vunpack.c.l.b16 %v2832
        %v2867 = vunpack.c.l.b16 %v2833
        %v2868 = vunpack.c.l.b16 %v2834
        %v2869 = vunpack.c.l.b16 %v2835
        %v2870 = vunpack.c.l.b16 %v2836
        %v2871 = vunpack.c.l.b16 %v2837
        %v2872 = vpack.c.b16 %v2857, %v2856
        %v2873 = vpack.c.b16 %v2859, %v2858
        %v2874 = vpack.c.b16 %v2861, %v2860
        %v2875 = vpack.c.b16 %v2863, %v2862
        %v2876 = vpack.c.b16 %v2865, %v2864
        %v2877 = vpack.c.b16 %v2867, %v2866
        %v2878 = vpack.c.b16 %v2869, %v2868
        %v2879 = vpack.c.b16 %v2871, %v2870
        %2888 = vmatpush.bf16.msra.mxu0 %v2879
        %2889 = vmatpush.bf16.msra.mxu0 %v2878
        %2890 = vmatpush.bf16.msra.mxu0 %v2877
        %2891 = vmatpush.bf16.msra.mxu0 %v2876
        %2892 = vmatpush.bf16.msra.mxu0 %v2875
        %2893 = vmatpush.bf16.msra.mxu0 %v2874
        %2894 = vmatpush.bf16.msra.mxu0 %v2873
        %2895 = vmatpush.bf16.msra.mxu0 %v2872
        %2896 = vmatmul.bf16.gmra.mxu0 %v2789
        %v2897 = vpop.f32.mrf.mxu0
        %v2898 = vadd.f32 %v2839, %v2897
        %v2899 = vpop.f32.mrf.mxu0
        %v2900 = vadd.f32 %v2839, %v2899
        %2901 = vmatmul.bf16.gmra.mxu0 %v2790
        %v2902 = vpop.f32.mrf.mxu0
        %v2903 = vadd.f32 %v2839, %v2902
        %v2904 = vpop.f32.mrf.mxu0
        %v2905 = vadd.f32 %v2839, %v2904
        %2906 = vmatmul.bf16.gmra.mxu0 %v2791
        %v2907 = vpop.f32.mrf.mxu0
        %v2908 = vadd.f32 %v2839, %v2907
        %v2909 = vpop.f32.mrf.mxu0
        %v2910 = vadd.f32 %v2839, %v2909
        %2911 = vmatmul.bf16.gmra.mxu0 %v2792
        %v2912 = vpop.f32.mrf.mxu0
        %v2913 = vadd.f32 %v2839, %v2912
        %v2914 = vpop.f32.mrf.mxu0
        %v2915 = vadd.f32 %v2839, %v2914
        %2916 = vmatmul.bf16.gmra.mxu0 %v2793
        %v2917 = vpop.f32.mrf.mxu0
        %v2918 = vadd.f32 %v2839, %v2917
        %v2919 = vpop.f32.mrf.mxu0
        %v2920 = vadd.f32 %v2839, %v2919
        %2921 = vmatmul.bf16.gmra.mxu0 %v2794
        %v2922 = vpop.f32.mrf.mxu0
        %v2923 = vadd.f32 %v2839, %v2922
        %v2924 = vpop.f32.mrf.mxu0
        %v2925 = vadd.f32 %v2839, %v2924
        %2926 = vmatmul.bf16.gmra.mxu0 %v2795
        %v2927 = vpop.f32.mrf.mxu0
        %v2928 = vadd.f32 %v2839, %v2927
        %v2929 = vpop.f32.mrf.mxu0
        %v2930 = vadd.f32 %v2839, %v2929
        %2931 = vmatmul.bf16.gmra.mxu0 %v2796
        %v2932 = vpop.f32.mrf.mxu0
        %v2933 = vadd.f32 %v2839, %v2932
        %v2934 = vpop.f32.mrf.mxu0
        %v2935 = vadd.f32 %v2839, %v2934
        %2936 = vmatmul.bf16.gmra.mxu0 %v2797
        %v2937 = vpop.f32.mrf.mxu0
        %v2938 = vadd.f32 %v2839, %v2937
        %v2939 = vpop.f32.mrf.mxu0
        %v2940 = vadd.f32 %v2839, %v2939
        %2941 = vmatmul.bf16.gmra.mxu0 %v2798
        %v2942 = vpop.f32.mrf.mxu0
        %v2943 = vadd.f32 %v2839, %v2942
        %v2944 = vpop.f32.mrf.mxu0
        %v2945 = vadd.f32 %v2839, %v2944
        %2946 = vmatmul.bf16.gmra.mxu0 %v2799
        %v2947 = vpop.f32.mrf.mxu0
        %v2948 = vadd.f32 %v2839, %v2947
        %v2949 = vpop.f32.mrf.mxu0
        %v2950 = vadd.f32 %v2839, %v2949
        %2951 = vmatmul.bf16.gmra.mxu0 %v2800
        %v2952 = vpop.f32.mrf.mxu0
        %v2953 = vadd.f32 %v2839, %v2952
        %v2954 = vpop.f32.mrf.mxu0
        %v2955 = vadd.f32 %v2839, %v2954
        %2956 = vmatmul.bf16.gmra.mxu0 %v2801
        %v2957 = vpop.f32.mrf.mxu0
        %v2958 = vadd.f32 %v2839, %v2957
        %v2959 = vpop.f32.mrf.mxu0
        %v2960 = vadd.f32 %v2839, %v2959
        %2961 = vmatmul.bf16.gmra.mxu0 %v2802
        %v2962 = vpop.f32.mrf.mxu0
        %v2963 = vadd.f32 %v2839, %v2962
        %v2964 = vpop.f32.mrf.mxu0
        %v2965 = vadd.f32 %v2839, %v2964
        %2966 = vmatmul.bf16.gmra.mxu0 %v2803
        %v2967 = vpop.f32.mrf.mxu0
        %v2968 = vadd.f32 %v2839, %v2967
        %v2969 = vpop.f32.mrf.mxu0
        %v2970 = vadd.f32 %v2839, %v2969
        %2971 = vmatmul.bf16.gmra.mxu0 %v2804
        %v2972 = vpop.f32.mrf.mxu0
        %v2973 = vadd.f32 %v2839, %v2972
        %v2974 = vpop.f32.mrf.mxu0
        %v2975 = vadd.f32 %v2839, %v2974
        %2976 = vmatmul.bf16.gmra.mxu0 %v2805
        %v2977 = vpop.f32.mrf.mxu0
        %v2978 = vadd.f32 %v2839, %v2977
        %v2979 = vpop.f32.mrf.mxu0
        %v2980 = vadd.f32 %v2839, %v2979
        %2981 = vmatmul.bf16.gmra.mxu0 %v2806
        %v2982 = vpop.f32.mrf.mxu0
        %v2983 = vadd.f32 %v2839, %v2982
        %v2984 = vpop.f32.mrf.mxu0
        %v2985 = vadd.f32 %v2839, %v2984
        %2986 = vmatmul.bf16.gmra.mxu0 %v2807
        %v2987 = vpop.f32.mrf.mxu0
        %v2988 = vadd.f32 %v2839, %v2987
        %v2989 = vpop.f32.mrf.mxu0
        %v2990 = vadd.f32 %v2839, %v2989
        %2991 = vmatmul.bf16.gmra.mxu0 %v2808
        %v2992 = vpop.f32.mrf.mxu0
        %v2993 = vadd.f32 %v2839, %v2992
        %v2994 = vpop.f32.mrf.mxu0
        %v2995 = vadd.f32 %v2839, %v2994
        %2996 = vmatmul.bf16.gmra.mxu0 %v2809
        %v2997 = vpop.f32.mrf.mxu0
        %v2998 = vadd.f32 %v2839, %v2997
        %v2999 = vpop.f32.mrf.mxu0
        %v3000 = vadd.f32 %v2839, %v2999
        %3001 = vmatmul.bf16.gmra.mxu0 %v2810
        %v3002 = vpop.f32.mrf.mxu0
        %v3003 = vadd.f32 %v2839, %v3002
        %v3004 = vpop.f32.mrf.mxu0
        %v3005 = vadd.f32 %v2839, %v3004
        %3006 = vmatmul.bf16.gmra.mxu0 %v2811
        %v3007 = vpop.f32.mrf.mxu0
        %v3008 = vadd.f32 %v2839, %v3007
        %v3009 = vpop.f32.mrf.mxu0
        %v3010 = vadd.f32 %v2839, %v3009
        %3011 = vmatmul.bf16.gmra.mxu0 %v2812
        %v3012 = vpop.f32.mrf.mxu0
        %v3013 = vadd.f32 %v2839, %v3012
        %v3014 = vpop.f32.mrf.mxu0
        %v3015 = vadd.f32 %v2839, %v3014
        %3016 = vmatmul.bf16.gmra.mxu0 %v2813
        %v3017 = vpop.f32.mrf.mxu0
        %v3018 = vadd.f32 %v2839, %v3017
        %v3019 = vpop.f32.mrf.mxu0
        %v3020 = vadd.f32 %v2839, %v3019
        %3021 = vmatmul.bf16.gmra.mxu0 %v2814
        %v3022 = vpop.f32.mrf.mxu0
        %v3023 = vadd.f32 %v2839, %v3022
        %v3024 = vpop.f32.mrf.mxu0
        %v3025 = vadd.f32 %v2839, %v3024
        %3026 = vmatmul.bf16.gmra.mxu0 %v2815
        %v3027 = vpop.f32.mrf.mxu0
        %v3028 = vadd.f32 %v2839, %v3027
        %v3029 = vpop.f32.mrf.mxu0
        %v3030 = vadd.f32 %v2839, %v3029
        %3031 = vmatmul.bf16.gmra.mxu0 %v2816
        %v3032 = vpop.f32.mrf.mxu0
        %v3033 = vadd.f32 %v2839, %v3032
        %v3034 = vpop.f32.mrf.mxu0
        %v3035 = vadd.f32 %v2839, %v3034
        %3036 = vmatmul.bf16.gmra.mxu0 %v2817
        %v3037 = vpop.f32.mrf.mxu0
        %v3038 = vadd.f32 %v2839, %v3037
        %v3039 = vpop.f32.mrf.mxu0
        %v3040 = vadd.f32 %v2839, %v3039
        %3041 = vmatmul.bf16.gmra.mxu0 %v2818
        %v3042 = vpop.f32.mrf.mxu0
        %v3043 = vadd.f32 %v2839, %v3042
        %v3044 = vpop.f32.mrf.mxu0
        %v3045 = vadd.f32 %v2839, %v3044
        %3046 = vmatmul.bf16.gmra.mxu0 %v2819
        %v3047 = vpop.f32.mrf.mxu0
        %v3048 = vadd.f32 %v2839, %v3047
        %v3049 = vpop.f32.mrf.mxu0
        %v3050 = vadd.f32 %v2839, %v3049
        %3051 = vmatmul.bf16.gmra.mxu0 %v2820
        %v3052 = vpop.f32.mrf.mxu0
        %v3053 = vadd.f32 %v2839, %v3052
        %v3054 = vpop.f32.mrf.mxu0
        %v3055 = vadd.f32 %v2839, %v3054
        %3056 = vdwg.mxu0
        %v3057 = vmax.f32 %v2898, 0.0
        %v3058 = vmax.f32 %v2900, 0.0
        %v3059 = vmax.f32 %v2903, 0.0
        %v3060 = vmax.f32 %v2905, 0.0
        %v3061 = vmax.f32 %v2908, 0.0
        %v3062 = vmax.f32 %v2910, 0.0
        %v3063 = vmax.f32 %v2913, 0.0
        %v3064 = vmax.f32 %v2915, 0.0
        %v3065 = vmax.f32 %v2918, 0.0
        %v3066 = vmax.f32 %v2920, 0.0
        %v3067 = vmax.f32 %v2923, 0.0
        %v3068 = vmax.f32 %v2925, 0.0
        %v3069 = vmax.f32 %v2928, 0.0
        %v3070 = vmax.f32 %v2930, 0.0
        %v3071 = vmax.f32 %v2933, 0.0
        %v3072 = vmax.f32 %v2935, 0.0
        %v3073 = vmax.f32 %v2938, 0.0
        %v3074 = vmax.f32 %v2940, 0.0
        %v3075 = vmax.f32 %v2943, 0.0
        %v3076 = vmax.f32 %v2945, 0.0
        %v3077 = vmax.f32 %v2948, 0.0
        %v3078 = vmax.f32 %v2950, 0.0
        %v3079 = vmax.f32 %v2953, 0.0
        %v3080 = vmax.f32 %v2955, 0.0
        %v3081 = vmax.f32 %v2958, 0.0
        %v3082 = vmax.f32 %v2960, 0.0
        %v3083 = vmax.f32 %v2963, 0.0
        %v3084 = vmax.f32 %v2965, 0.0
        %v3085 = vmax.f32 %v2968, 0.0
        %v3086 = vmax.f32 %v2970, 0.0
        %v3087 = vmax.f32 %v2973, 0.0
        %v3088 = vmax.f32 %v2975, 0.0
        %v3089 = vmax.f32 %v2978, 0.0
        %v3090 = vmax.f32 %v2980, 0.0
        %v3091 = vmax.f32 %v2983, 0.0
        %v3092 = vmax.f32 %v2985, 0.0
        %v3093 = vmax.f32 %v2988, 0.0
        %v3094 = vmax.f32 %v2990, 0.0
        %v3095 = vmax.f32 %v2993, 0.0
        %v3096 = vmax.f32 %v2995, 0.0
        %v3097 = vmax.f32 %v2998, 0.0
        %v3098 = vmax.f32 %v3000, 0.0
        %v3099 = vmax.f32 %v3003, 0.0
        %v3100 = vmax.f32 %v3005, 0.0
        %v3101 = vmax.f32 %v3008, 0.0
        %v3102 = vmax.f32 %v3010, 0.0
        %v3103 = vmax.f32 %v3013, 0.0
        %v3104 = vmax.f32 %v3015, 0.0
        %v3105 = vmax.f32 %v3018, 0.0
        %v3106 = vmax.f32 %v3020, 0.0
        %v3107 = vmax.f32 %v3023, 0.0
        %v3108 = vmax.f32 %v3025, 0.0
        %v3109 = vmax.f32 %v3028, 0.0
        %v3110 = vmax.f32 %v3030, 0.0
        %v3111 = vmax.f32 %v3033, 0.0
        %v3112 = vmax.f32 %v3035, 0.0
        %v3113 = vmax.f32 %v3038, 0.0
        %v3114 = vmax.f32 %v3040, 0.0
        %v3115 = vmax.f32 %v3043, 0.0
        %v3116 = vmax.f32 %v3045, 0.0
        %v3117 = vmax.f32 %v3048, 0.0
        %v3118 = vmax.f32 %v3050, 0.0
        %v3119 = vmax.f32 %v3053, 0.0
        %v3120 = vmax.f32 %v3055, 0.0
        %v3121 = vpack.c.bf16 %v3058, %v3057
        %v3122 = vpack.c.bf16 %v3060, %v3059
        %v3123 = vpack.c.bf16 %v3062, %v3061
        %v3124 = vpack.c.bf16 %v3064, %v3063
        %v3125 = vpack.c.bf16 %v3066, %v3065
        %v3126 = vpack.c.bf16 %v3068, %v3067
        %v3127 = vpack.c.bf16 %v3070, %v3069
        %v3128 = vpack.c.bf16 %v3072, %v3071
        %v3129 = vpack.c.bf16 %v3074, %v3073
        %v3130 = vpack.c.bf16 %v3076, %v3075
        %v3131 = vpack.c.bf16 %v3078, %v3077
        %v3132 = vpack.c.bf16 %v3080, %v3079
        %v3133 = vpack.c.bf16 %v3082, %v3081
        %v3134 = vpack.c.bf16 %v3084, %v3083
        %v3135 = vpack.c.bf16 %v3086, %v3085
        %v3136 = vpack.c.bf16 %v3088, %v3087
        %v3137 = vpack.c.bf16 %v3090, %v3089
        %v3138 = vpack.c.bf16 %v3092, %v3091
        %v3139 = vpack.c.bf16 %v3094, %v3093
        %v3140 = vpack.c.bf16 %v3096, %v3095
        %v3141 = vpack.c.bf16 %v3098, %v3097
        %v3142 = vpack.c.bf16 %v3100, %v3099
        %v3143 = vpack.c.bf16 %v3102, %v3101
        %v3144 = vpack.c.bf16 %v3104, %v3103
        %v3145 = vpack.c.bf16 %v3106, %v3105
        %v3146 = vpack.c.bf16 %v3108, %v3107
        %v3147 = vpack.c.bf16 %v3110, %v3109
        %v3148 = vpack.c.bf16 %v3112, %v3111
        %v3149 = vpack.c.bf16 %v3114, %v3113
        %v3150 = vpack.c.bf16 %v3116, %v3115
        %v3151 = vpack.c.bf16 %v3118, %v3117
        %v3152 = vpack.c.bf16 %v3120, %v3119
        %s3153 = scalar_lea.vmem %s5, 128
        %v3154 = vld [vmem:[%s3153] sm:$0xf]
        %v3155 = vld [vmem:[%s3153 + $0x4] sm:$0xf]
        %v3156 = vld [vmem:[%s3153 + $0x8] sm:$0xf]
        %v3157 = vld [vmem:[%s3153 + $0xc] sm:$0xf]
        %v3158 = vld [vmem:[%s3153 + $0x10] sm:$0xf]
        %v3159 = vld [vmem:[%s3153 + $0x14] sm:$0xf]
        %v3160 = vld [vmem:[%s3153 + $0x18] sm:$0xf]
        %v3161 = vld [vmem:[%s3153 + $0x1c] sm:$0xf]
        %v3162 = vld [vmem:[%s3153 + $0x20] sm:$0xf]
        %v3163 = vld [vmem:[%s3153 + $0x24] sm:$0xf]
        %v3164 = vld [vmem:[%s3153 + $0x28] sm:$0xf]
        %v3165 = vld [vmem:[%s3153 + $0x2c] sm:$0xf]
        %v3166 = vld [vmem:[%s3153 + $0x30] sm:$0xf]
        %v3167 = vld [vmem:[%s3153 + $0x34] sm:$0xf]
        %v3168 = vld [vmem:[%s3153 + $0x38] sm:$0xf]
        %v3169 = vld [vmem:[%s3153 + $0x3c] sm:$0xf]
        %v3170 = vld [vmem:[%s6 + $0x2] sm:$0x1]
        %v3171 = vperm.slane %v3170, 0
        %v3188 = vunpack.c.l.b16 %v3154
        %v3189 = vunpack.c.l.b16 %v3155
        %v3190 = vunpack.c.l.b16 %v3156
        %v3191 = vunpack.c.l.b16 %v3157
        %v3192 = vunpack.c.l.b16 %v3158
        %v3193 = vunpack.c.l.b16 %v3159
        %v3194 = vunpack.c.l.b16 %v3160
        %v3195 = vunpack.c.l.b16 %v3161
        %v3196 = vunpack.c.l.b16 %v3162
        %v3197 = vunpack.c.l.b16 %v3163
        %v3198 = vunpack.c.l.b16 %v3164
        %v3199 = vunpack.c.l.b16 %v3165
        %v3200 = vunpack.c.l.b16 %v3166
        %v3201 = vunpack.c.l.b16 %v3167
        %v3202 = vunpack.c.l.b16 %v3168
        %v3203 = vunpack.c.l.b16 %v3169
        %v3204 = vpack.c.b16 %v3189, %v3188
        %v3205 = vpack.c.b16 %v3191, %v3190
        %v3206 = vpack.c.b16 %v3193, %v3192
        %v3207 = vpack.c.b16 %v3195, %v3194
        %v3208 = vpack.c.b16 %v3197, %v3196
        %v3209 = vpack.c.b16 %v3199, %v3198
        %v3210 = vpack.c.b16 %v3201, %v3200
        %v3211 = vpack.c.b16 %v3203, %v3202
        %3220 = vmatpush.bf16.msra.mxu0 %v3211
        %3221 = vmatpush.bf16.msra.mxu0 %v3210
        %3222 = vmatpush.bf16.msra.mxu0 %v3209
        %3223 = vmatpush.bf16.msra.mxu0 %v3208
        %3224 = vmatpush.bf16.msra.mxu0 %v3207
        %3225 = vmatpush.bf16.msra.mxu0 %v3206
        %3226 = vmatpush.bf16.msra.mxu0 %v3205
        %3227 = vmatpush.bf16.msra.mxu0 %v3204
        %3228 = vmatmul.bf16.gmra.mxu0 %v3121
        %v3229 = vpop.f32.mrf.mxu0
        %v3230 = vadd.f32 %v3171, %v3229
        %v3231 = vpop.f32.mrf.mxu0
        %v3232 = vadd.f32 %v3171, %v3231
        %3233 = vmatmul.bf16.gmra.mxu0 %v3122
        %v3234 = vpop.f32.mrf.mxu0
        %v3235 = vadd.f32 %v3171, %v3234
        %v3236 = vpop.f32.mrf.mxu0
        %v3237 = vadd.f32 %v3171, %v3236
        %3238 = vmatmul.bf16.gmra.mxu0 %v3123
        %v3239 = vpop.f32.mrf.mxu0
        %v3240 = vadd.f32 %v3171, %v3239
        %v3241 = vpop.f32.mrf.mxu0
        %v3242 = vadd.f32 %v3171, %v3241
        %3243 = vmatmul.bf16.gmra.mxu0 %v3124
        %v3244 = vpop.f32.mrf.mxu0
        %v3245 = vadd.f32 %v3171, %v3244
        %v3246 = vpop.f32.mrf.mxu0
        %v3247 = vadd.f32 %v3171, %v3246
        %3248 = vmatmul.bf16.gmra.mxu0 %v3125
        %v3249 = vpop.f32.mrf.mxu0
        %v3250 = vadd.f32 %v3171, %v3249
        %v3251 = vpop.f32.mrf.mxu0
        %v3252 = vadd.f32 %v3171, %v3251
        %3253 = vmatmul.bf16.gmra.mxu0 %v3126
        %v3254 = vpop.f32.mrf.mxu0
        %v3255 = vadd.f32 %v3171, %v3254
        %v3256 = vpop.f32.mrf.mxu0
        %v3257 = vadd.f32 %v3171, %v3256
        %3258 = vmatmul.bf16.gmra.mxu0 %v3127
        %v3259 = vpop.f32.mrf.mxu0
        %v3260 = vadd.f32 %v3171, %v3259
        %v3261 = vpop.f32.mrf.mxu0
        %v3262 = vadd.f32 %v3171, %v3261
        %3263 = vmatmul.bf16.gmra.mxu0 %v3128
        %v3264 = vpop.f32.mrf.mxu0
        %v3265 = vadd.f32 %v3171, %v3264
        %v3266 = vpop.f32.mrf.mxu0
        %v3267 = vadd.f32 %v3171, %v3266
        %3268 = vmatmul.bf16.gmra.mxu0 %v3129
        %v3269 = vpop.f32.mrf.mxu0
        %v3270 = vadd.f32 %v3171, %v3269
        %v3271 = vpop.f32.mrf.mxu0
        %v3272 = vadd.f32 %v3171, %v3271
        %3273 = vmatmul.bf16.gmra.mxu0 %v3130
        %v3274 = vpop.f32.mrf.mxu0
        %v3275 = vadd.f32 %v3171, %v3274
        %v3276 = vpop.f32.mrf.mxu0
        %v3277 = vadd.f32 %v3171, %v3276
        %3278 = vmatmul.bf16.gmra.mxu0 %v3131
        %v3279 = vpop.f32.mrf.mxu0
        %v3280 = vadd.f32 %v3171, %v3279
        %v3281 = vpop.f32.mrf.mxu0
        %v3282 = vadd.f32 %v3171, %v3281
        %3283 = vmatmul.bf16.gmra.mxu0 %v3132
        %v3284 = vpop.f32.mrf.mxu0
        %v3285 = vadd.f32 %v3171, %v3284
        %v3286 = vpop.f32.mrf.mxu0
        %v3287 = vadd.f32 %v3171, %v3286
        %3288 = vmatmul.bf16.gmra.mxu0 %v3133
        %v3289 = vpop.f32.mrf.mxu0
        %v3290 = vadd.f32 %v3171, %v3289
        %v3291 = vpop.f32.mrf.mxu0
        %v3292 = vadd.f32 %v3171, %v3291
        %3293 = vmatmul.bf16.gmra.mxu0 %v3134
        %v3294 = vpop.f32.mrf.mxu0
        %v3295 = vadd.f32 %v3171, %v3294
        %v3296 = vpop.f32.mrf.mxu0
        %v3297 = vadd.f32 %v3171, %v3296
        %3298 = vmatmul.bf16.gmra.mxu0 %v3135
        %v3299 = vpop.f32.mrf.mxu0
        %v3300 = vadd.f32 %v3171, %v3299
        %v3301 = vpop.f32.mrf.mxu0
        %v3302 = vadd.f32 %v3171, %v3301
        %3303 = vmatmul.bf16.gmra.mxu0 %v3136
        %v3304 = vpop.f32.mrf.mxu0
        %v3305 = vadd.f32 %v3171, %v3304
        %v3306 = vpop.f32.mrf.mxu0
        %v3307 = vadd.f32 %v3171, %v3306
        %3308 = vmatmul.bf16.gmra.mxu0 %v3137
        %v3309 = vpop.f32.mrf.mxu0
        %v3310 = vadd.f32 %v3171, %v3309
        %v3311 = vpop.f32.mrf.mxu0
        %v3312 = vadd.f32 %v3171, %v3311
        %3313 = vmatmul.bf16.gmra.mxu0 %v3138
        %v3314 = vpop.f32.mrf.mxu0
        %v3315 = vadd.f32 %v3171, %v3314
        %v3316 = vpop.f32.mrf.mxu0
        %v3317 = vadd.f32 %v3171, %v3316
        %3318 = vmatmul.bf16.gmra.mxu0 %v3139
        %v3319 = vpop.f32.mrf.mxu0
        %v3320 = vadd.f32 %v3171, %v3319
        %v3321 = vpop.f32.mrf.mxu0
        %v3322 = vadd.f32 %v3171, %v3321
        %3323 = vmatmul.bf16.gmra.mxu0 %v3140
        %v3324 = vpop.f32.mrf.mxu0
        %v3325 = vadd.f32 %v3171, %v3324
        %v3326 = vpop.f32.mrf.mxu0
        %v3327 = vadd.f32 %v3171, %v3326
        %3328 = vmatmul.bf16.gmra.mxu0 %v3141
        %v3329 = vpop.f32.mrf.mxu0
        %v3330 = vadd.f32 %v3171, %v3329
        %v3331 = vpop.f32.mrf.mxu0
        %v3332 = vadd.f32 %v3171, %v3331
        %3333 = vmatmul.bf16.gmra.mxu0 %v3142
        %v3334 = vpop.f32.mrf.mxu0
        %v3335 = vadd.f32 %v3171, %v3334
        %v3336 = vpop.f32.mrf.mxu0
        %v3337 = vadd.f32 %v3171, %v3336
        %3338 = vmatmul.bf16.gmra.mxu0 %v3143
        %v3339 = vpop.f32.mrf.mxu0
        %v3340 = vadd.f32 %v3171, %v3339
        %v3341 = vpop.f32.mrf.mxu0
        %v3342 = vadd.f32 %v3171, %v3341
        %3343 = vmatmul.bf16.gmra.mxu0 %v3144
        %v3344 = vpop.f32.mrf.mxu0
        %v3345 = vadd.f32 %v3171, %v3344
        %v3346 = vpop.f32.mrf.mxu0
        %v3347 = vadd.f32 %v3171, %v3346
        %3348 = vmatmul.bf16.gmra.mxu0 %v3145
        %v3349 = vpop.f32.mrf.mxu0
        %v3350 = vadd.f32 %v3171, %v3349
        %v3351 = vpop.f32.mrf.mxu0
        %v3352 = vadd.f32 %v3171, %v3351
        %3353 = vmatmul.bf16.gmra.mxu0 %v3146
        %v3354 = vpop.f32.mrf.mxu0
        %v3355 = vadd.f32 %v3171, %v3354
        %v3356 = vpop.f32.mrf.mxu0
        %v3357 = vadd.f32 %v3171, %v3356
        %3358 = vmatmul.bf16.gmra.mxu0 %v3147
        %v3359 = vpop.f32.mrf.mxu0
        %v3360 = vadd.f32 %v3171, %v3359
        %v3361 = vpop.f32.mrf.mxu0
        %v3362 = vadd.f32 %v3171, %v3361
        %3363 = vmatmul.bf16.gmra.mxu0 %v3148
        %v3364 = vpop.f32.mrf.mxu0
        %v3365 = vadd.f32 %v3171, %v3364
        %v3366 = vpop.f32.mrf.mxu0
        %v3367 = vadd.f32 %v3171, %v3366
        %3368 = vmatmul.bf16.gmra.mxu0 %v3149
        %v3369 = vpop.f32.mrf.mxu0
        %v3370 = vadd.f32 %v3171, %v3369
        %v3371 = vpop.f32.mrf.mxu0
        %v3372 = vadd.f32 %v3171, %v3371
        %3373 = vmatmul.bf16.gmra.mxu0 %v3150
        %v3374 = vpop.f32.mrf.mxu0
        %v3375 = vadd.f32 %v3171, %v3374
        %v3376 = vpop.f32.mrf.mxu0
        %v3377 = vadd.f32 %v3171, %v3376
        %3378 = vmatmul.bf16.gmra.mxu0 %v3151
        %v3379 = vpop.f32.mrf.mxu0
        %v3380 = vadd.f32 %v3171, %v3379
        %v3381 = vpop.f32.mrf.mxu0
        %v3382 = vadd.f32 %v3171, %v3381
        %3383 = vmatmul.bf16.gmra.mxu0 %v3152
        %v3384 = vpop.f32.mrf.mxu0
        %v3385 = vadd.f32 %v3171, %v3384
        %v3386 = vpop.f32.mrf.mxu0
        %v3387 = vadd.f32 %v3171, %v3386
        %3388 = vdwg.mxu0
        %v3389 = vadd.f32 %v2661, %v3230
        %v3390 = vadd.f32 %v2662, %v3232
        %v3391 = vadd.f32 %v2663, %v3235
        %v3392 = vadd.f32 %v2664, %v3237
        %v3393 = vadd.f32 %v2665, %v3240
        %v3394 = vadd.f32 %v2666, %v3242
        %v3395 = vadd.f32 %v2667, %v3245
        %v3396 = vadd.f32 %v2668, %v3247
        %v3397 = vadd.f32 %v2669, %v3250
        %v3398 = vadd.f32 %v2670, %v3252
        %v3399 = vadd.f32 %v2671, %v3255
        %v3400 = vadd.f32 %v2672, %v3257
        %v3401 = vadd.f32 %v2673, %v3260
        %v3402 = vadd.f32 %v2674, %v3262
        %v3403 = vadd.f32 %v2675, %v3265
        %v3404 = vadd.f32 %v2676, %v3267
        %v3405 = vadd.f32 %v2677, %v3270
        %v3406 = vadd.f32 %v2678, %v3272
        %v3407 = vadd.f32 %v2679, %v3275
        %v3408 = vadd.f32 %v2680, %v3277
        %v3409 = vadd.f32 %v2681, %v3280
        %v3410 = vadd.f32 %v2682, %v3282
        %v3411 = vadd.f32 %v2683, %v3285
        %v3412 = vadd.f32 %v2684, %v3287
        %v3413 = vadd.f32 %v2685, %v3290
        %v3414 = vadd.f32 %v2686, %v3292
        %v3415 = vadd.f32 %v2687, %v3295
        %v3416 = vadd.f32 %v2688, %v3297
        %v3417 = vadd.f32 %v2689, %v3300
        %v3418 = vadd.f32 %v2690, %v3302
        %v3419 = vadd.f32 %v2691, %v3305
        %v3420 = vadd.f32 %v2692, %v3307
        %v3421 = vadd.f32 %v2693, %v3310
        %v3422 = vadd.f32 %v2694, %v3312
        %v3423 = vadd.f32 %v2695, %v3315
        %v3424 = vadd.f32 %v2696, %v3317
        %v3425 = vadd.f32 %v2697, %v3320
        %v3426 = vadd.f32 %v2698, %v3322
        %v3427 = vadd.f32 %v2699, %v3325
        %v3428 = vadd.f32 %v2700, %v3327
        %v3429 = vadd.f32 %v2701, %v3330
        %v3430 = vadd.f32 %v2702, %v3332
        %v3431 = vadd.f32 %v2703, %v3335
        %v3432 = vadd.f32 %v2704, %v3337
        %v3433 = vadd.f32 %v2705, %v3340
        %v3434 = vadd.f32 %v2706, %v3342
        %v3435 = vadd.f32 %v2707, %v3345
        %v3436 = vadd.f32 %v2708, %v3347
        %v3437 = vadd.f32 %v2709, %v3350
        %v3438 = vadd.f32 %v2710, %v3352
        %v3439 = vadd.f32 %v2711, %v3355
        %v3440 = vadd.f32 %v2712, %v3357
        %v3441 = vadd.f32 %v2713, %v3360
        %v3442 = vadd.f32 %v2714, %v3362
        %v3443 = vadd.f32 %v2715, %v3365
        %v3444 = vadd.f32 %v2716, %v3367
        %v3445 = vadd.f32 %v2717, %v3370
        %v3446 = vadd.f32 %v2718, %v3372
        %v3447 = vadd.f32 %v2719, %v3375
        %v3448 = vadd.f32 %v2720, %v3377
        %v3449 = vadd.f32 %v2721, %v3380
        %v3450 = vadd.f32 %v2722, %v3382
        %v3451 = vadd.f32 %v2723, %v3385
        %v3452 = vadd.f32 %v2724, %v3387
        %v3453 = vmax.f32 %v3389, 0.0
        %v3454 = vmax.f32 %v3390, 0.0
        %v3455 = vmax.f32 %v3391, 0.0
        %v3456 = vmax.f32 %v3392, 0.0
        %v3457 = vmax.f32 %v3393, 0.0
        %v3458 = vmax.f32 %v3394, 0.0
        %v3459 = vmax.f32 %v3395, 0.0
        %v3460 = vmax.f32 %v3396, 0.0
        %v3461 = vmax.f32 %v3397, 0.0
        %v3462 = vmax.f32 %v3398, 0.0
        %v3463 = vmax.f32 %v3399, 0.0
        %v3464 = vmax.f32 %v3400, 0.0
        %v3465 = vmax.f32 %v3401, 0.0
        %v3466 = vmax.f32 %v3402, 0.0
        %v3467 = vmax.f32 %v3403, 0.0
        %v3468 = vmax.f32 %v3404, 0.0
        %v3469 = vmax.f32 %v3405, 0.0
        %v3470 = vmax.f32 %v3406, 0.0
        %v3471 = vmax.f32 %v3407, 0.0
        %v3472 = vmax.f32 %v3408, 0.0
        %v3473 = vmax.f32 %v3409, 0.0
        %v3474 = vmax.f32 %v3410, 0.0
        %v3475 = vmax.f32 %v3411, 0.0
        %v3476 = vmax.f32 %v3412, 0.0
        %v3477 = vmax.f32 %v3413, 0.0
        %v3478 = vmax.f32 %v3414, 0.0
        %v3479 = vmax.f32 %v3415, 0.0
        %v3480 = vmax.f32 %v3416, 0.0
        %v3481 = vmax.f32 %v3417, 0.0
        %v3482 = vmax.f32 %v3418, 0.0
        %v3483 = vmax.f32 %v3419, 0.0
        %v3484 = vmax.f32 %v3420, 0.0
        %v3485 = vmax.f32 %v3421, 0.0
        %v3486 = vmax.f32 %v3422, 0.0
        %v3487 = vmax.f32 %v3423, 0.0
        %v3488 = vmax.f32 %v3424, 0.0
        %v3489 = vmax.f32 %v3425, 0.0
        %v3490 = vmax.f32 %v3426, 0.0
        %v3491 = vmax.f32 %v3427, 0.0
        %v3492 = vmax.f32 %v3428, 0.0
        %v3493 = vmax.f32 %v3429, 0.0
        %v3494 = vmax.f32 %v3430, 0.0
        %v3495 = vmax.f32 %v3431, 0.0
        %v3496 = vmax.f32 %v3432, 0.0
        %v3497 = vmax.f32 %v3433, 0.0
        %v3498 = vmax.f32 %v3434, 0.0
        %v3499 = vmax.f32 %v3435, 0.0
        %v3500 = vmax.f32 %v3436, 0.0
        %v3501 = vmax.f32 %v3437, 0.0
        %v3502 = vmax.f32 %v3438, 0.0
        %v3503 = vmax.f32 %v3439, 0.0
        %v3504 = vmax.f32 %v3440, 0.0
        %v3505 = vmax.f32 %v3441, 0.0
        %v3506 = vmax.f32 %v3442, 0.0
        %v3507 = vmax.f32 %v3443, 0.0
        %v3508 = vmax.f32 %v3444, 0.0
        %v3509 = vmax.f32 %v3445, 0.0
        %v3510 = vmax.f32 %v3446, 0.0
        %v3511 = vmax.f32 %v3447, 0.0
        %v3512 = vmax.f32 %v3448, 0.0
        %v3513 = vmax.f32 %v3449, 0.0
        %v3514 = vmax.f32 %v3450, 0.0
        %v3515 = vmax.f32 %v3451, 0.0
        %v3516 = vmax.f32 %v3452, 0.0
        %v3517 = vpack.c.bf16 %v3454, %v3453
        %v3518 = vpack.c.bf16 %v3456, %v3455
        %v3519 = vpack.c.bf16 %v3458, %v3457
        %v3520 = vpack.c.bf16 %v3460, %v3459
        %v3521 = vpack.c.bf16 %v3462, %v3461
        %v3522 = vpack.c.bf16 %v3464, %v3463
        %v3523 = vpack.c.bf16 %v3466, %v3465
        %v3524 = vpack.c.bf16 %v3468, %v3467
        %v3525 = vpack.c.bf16 %v3470, %v3469
        %v3526 = vpack.c.bf16 %v3472, %v3471
        %v3527 = vpack.c.bf16 %v3474, %v3473
        %v3528 = vpack.c.bf16 %v3476, %v3475
        %v3529 = vpack.c.bf16 %v3478, %v3477
        %v3530 = vpack.c.bf16 %v3480, %v3479
        %v3531 = vpack.c.bf16 %v3482, %v3481
        %v3532 = vpack.c.bf16 %v3484, %v3483
        %v3533 = vpack.c.bf16 %v3486, %v3485
        %v3534 = vpack.c.bf16 %v3488, %v3487
        %v3535 = vpack.c.bf16 %v3490, %v3489
        %v3536 = vpack.c.bf16 %v3492, %v3491
        %v3537 = vpack.c.bf16 %v3494, %v3493
        %v3538 = vpack.c.bf16 %v3496, %v3495
        %v3539 = vpack.c.bf16 %v3498, %v3497
        %v3540 = vpack.c.bf16 %v3500, %v3499
        %v3541 = vpack.c.bf16 %v3502, %v3501
        %v3542 = vpack.c.bf16 %v3504, %v3503
        %v3543 = vpack.c.bf16 %v3506, %v3505
        %v3544 = vpack.c.bf16 %v3508, %v3507
        %v3545 = vpack.c.bf16 %v3510, %v3509
        %v3546 = vpack.c.bf16 %v3512, %v3511
        %v3547 = vpack.c.bf16 %v3514, %v3513
        %v3548 = vpack.c.bf16 %v3516, %v3515
        %v3549 = vld [vmem:[%s7] sm:$0xf]
        %v3550 = vld [vmem:[%s7 + $0x4] sm:$0xf]
        %v3551 = vld [vmem:[%s7 + $0x8] sm:$0xf]
        %v3552 = vld [vmem:[%s7 + $0xc] sm:$0xf]
        %v3553 = vld [vmem:[%s7 + $0x10] sm:$0xf]
        %v3554 = vld [vmem:[%s7 + $0x14] sm:$0xf]
        %v3555 = vld [vmem:[%s7 + $0x18] sm:$0xf]
        %v3556 = vld [vmem:[%s7 + $0x1c] sm:$0xf]
        %v3557 = vld [vmem:[%s7 + $0x20] sm:$0xf]
        %v3558 = vld [vmem:[%s7 + $0x24] sm:$0xf]
        %v3559 = vld [vmem:[%s7 + $0x28] sm:$0xf]
        %v3560 = vld [vmem:[%s7 + $0x2c] sm:$0xf]
        %v3561 = vld [vmem:[%s7 + $0x30] sm:$0xf]
        %v3562 = vld [vmem:[%s7 + $0x34] sm:$0xf]
        %v3563 = vld [vmem:[%s7 + $0x38] sm:$0xf]
        %v3564 = vld [vmem:[%s7 + $0x3c] sm:$0xf]
        %v3565 = vld [vmem:[%s8] sm:$0x1]
        %v3567 = vperm.slane %v3565, 0
        %v3585 = vunpack.c.l.b16 %v3549
        %v3586 = vunpack.c.l.b16 %v3550
        %v3587 = vunpack.c.l.b16 %v3551
        %v3588 = vunpack.c.l.b16 %v3552
        %v3589 = vunpack.c.l.b16 %v3553
        %v3590 = vunpack.c.l.b16 %v3554
        %v3591 = vunpack.c.l.b16 %v3555
        %v3592 = vunpack.c.l.b16 %v3556
        %v3593 = vunpack.c.l.b16 %v3557
        %v3594 = vunpack.c.l.b16 %v3558
        %v3595 = vunpack.c.l.b16 %v3559
        %v3596 = vunpack.c.l.b16 %v3560
        %v3597 = vunpack.c.l.b16 %v3561
        %v3598 = vunpack.c.l.b16 %v3562
        %v3599 = vunpack.c.l.b16 %v3563
        %v3600 = vunpack.c.l.b16 %v3564
        %v3601 = vpack.c.b16 %v3586, %v3585
        %v3602 = vpack.c.b16 %v3588, %v3587
        %v3603 = vpack.c.b16 %v3590, %v3589
        %v3604 = vpack.c.b16 %v3592, %v3591
        %v3605 = vpack.c.b16 %v3594, %v3593
        %v3606 = vpack.c.b16 %v3596, %v3595
        %v3607 = vpack.c.b16 %v3598, %v3597
        %v3608 = vpack.c.b16 %v3600, %v3599
        %3617 = vmatpush.bf16.msra.mxu0 %v3608
        %3618 = vmatpush.bf16.msra.mxu0 %v3607
        %3619 = vmatpush.bf16.msra.mxu0 %v3606
        %3620 = vmatpush.bf16.msra.mxu0 %v3605
        %3621 = vmatpush.bf16.msra.mxu0 %v3604
        %3622 = vmatpush.bf16.msra.mxu0 %v3603
        %3623 = vmatpush.bf16.msra.mxu0 %v3602
        %3624 = vmatpush.bf16.msra.mxu0 %v3601
        %3625 = vmatmul.bf16.gmra.mxu0 %v3517
        %v3626 = vpop.f32.mrf.mxu0
        %v3627 = vadd.f32 %v3567, %v3626
        %v3628 = vpop.f32.mrf.mxu0
        %v3629 = vadd.f32 %v3567, %v3628
        %3630 = vmatmul.bf16.gmra.mxu0 %v3518
        %v3631 = vpop.f32.mrf.mxu0
        %v3632 = vadd.f32 %v3567, %v3631
        %v3633 = vpop.f32.mrf.mxu0
        %v3634 = vadd.f32 %v3567, %v3633
        %3635 = vmatmul.bf16.gmra.mxu0 %v3519
        %v3636 = vpop.f32.mrf.mxu0
        %v3637 = vadd.f32 %v3567, %v3636
        %v3638 = vpop.f32.mrf.mxu0
        %v3639 = vadd.f32 %v3567, %v3638
        %3640 = vmatmul.bf16.gmra.mxu0 %v3520
        %v3641 = vpop.f32.mrf.mxu0
        %v3642 = vadd.f32 %v3567, %v3641
        %v3643 = vpop.f32.mrf.mxu0
        %v3644 = vadd.f32 %v3567, %v3643
        %3645 = vmatmul.bf16.gmra.mxu0 %v3521
        %v3646 = vpop.f32.mrf.mxu0
        %v3647 = vadd.f32 %v3567, %v3646
        %v3648 = vpop.f32.mrf.mxu0
        %v3649 = vadd.f32 %v3567, %v3648
        %3650 = vmatmul.bf16.gmra.mxu0 %v3522
        %v3651 = vpop.f32.mrf.mxu0
        %v3652 = vadd.f32 %v3567, %v3651
        %v3653 = vpop.f32.mrf.mxu0
        %v3654 = vadd.f32 %v3567, %v3653
        %3655 = vmatmul.bf16.gmra.mxu0 %v3523
        %v3656 = vpop.f32.mrf.mxu0
        %v3657 = vadd.f32 %v3567, %v3656
        %v3658 = vpop.f32.mrf.mxu0
        %v3659 = vadd.f32 %v3567, %v3658
        %3660 = vmatmul.bf16.gmra.mxu0 %v3524
        %v3661 = vpop.f32.mrf.mxu0
        %v3662 = vadd.f32 %v3567, %v3661
        %v3663 = vpop.f32.mrf.mxu0
        %v3664 = vadd.f32 %v3567, %v3663
        %3665 = vmatmul.bf16.gmra.mxu0 %v3525
        %v3666 = vpop.f32.mrf.mxu0
        %v3667 = vadd.f32 %v3567, %v3666
        %v3668 = vpop.f32.mrf.mxu0
        %v3669 = vadd.f32 %v3567, %v3668
        %3670 = vmatmul.bf16.gmra.mxu0 %v3526
        %v3671 = vpop.f32.mrf.mxu0
        %v3672 = vadd.f32 %v3567, %v3671
        %v3673 = vpop.f32.mrf.mxu0
        %v3674 = vadd.f32 %v3567, %v3673
        %3675 = vmatmul.bf16.gmra.mxu0 %v3527
        %v3676 = vpop.f32.mrf.mxu0
        %v3677 = vadd.f32 %v3567, %v3676
        %v3678 = vpop.f32.mrf.mxu0
        %v3679 = vadd.f32 %v3567, %v3678
        %3680 = vmatmul.bf16.gmra.mxu0 %v3528
        %v3681 = vpop.f32.mrf.mxu0
        %v3682 = vadd.f32 %v3567, %v3681
        %v3683 = vpop.f32.mrf.mxu0
        %v3684 = vadd.f32 %v3567, %v3683
        %3685 = vmatmul.bf16.gmra.mxu0 %v3529
        %v3686 = vpop.f32.mrf.mxu0
        %v3687 = vadd.f32 %v3567, %v3686
        %v3688 = vpop.f32.mrf.mxu0
        %v3689 = vadd.f32 %v3567, %v3688
        %3690 = vmatmul.bf16.gmra.mxu0 %v3530
        %v3691 = vpop.f32.mrf.mxu0
        %v3692 = vadd.f32 %v3567, %v3691
        %v3693 = vpop.f32.mrf.mxu0
        %v3694 = vadd.f32 %v3567, %v3693
        %3695 = vmatmul.bf16.gmra.mxu0 %v3531
        %v3696 = vpop.f32.mrf.mxu0
        %v3697 = vadd.f32 %v3567, %v3696
        %v3698 = vpop.f32.mrf.mxu0
        %v3699 = vadd.f32 %v3567, %v3698
        %3700 = vmatmul.bf16.gmra.mxu0 %v3532
        %v3701 = vpop.f32.mrf.mxu0
        %v3702 = vadd.f32 %v3567, %v3701
        %v3703 = vpop.f32.mrf.mxu0
        %v3704 = vadd.f32 %v3567, %v3703
        %3705 = vmatmul.bf16.gmra.mxu0 %v3533
        %v3706 = vpop.f32.mrf.mxu0
        %v3707 = vadd.f32 %v3567, %v3706
        %v3708 = vpop.f32.mrf.mxu0
        %v3709 = vadd.f32 %v3567, %v3708
        %3710 = vmatmul.bf16.gmra.mxu0 %v3534
        %v3711 = vpop.f32.mrf.mxu0
        %v3712 = vadd.f32 %v3567, %v3711
        %v3713 = vpop.f32.mrf.mxu0
        %v3714 = vadd.f32 %v3567, %v3713
        %3715 = vmatmul.bf16.gmra.mxu0 %v3535
        %v3716 = vpop.f32.mrf.mxu0
        %v3717 = vadd.f32 %v3567, %v3716
        %v3718 = vpop.f32.mrf.mxu0
        %v3719 = vadd.f32 %v3567, %v3718
        %3720 = vmatmul.bf16.gmra.mxu0 %v3536
        %v3721 = vpop.f32.mrf.mxu0
        %v3722 = vadd.f32 %v3567, %v3721
        %v3723 = vpop.f32.mrf.mxu0
        %v3724 = vadd.f32 %v3567, %v3723
        %3725 = vmatmul.bf16.gmra.mxu0 %v3537
        %v3726 = vpop.f32.mrf.mxu0
        %v3727 = vadd.f32 %v3567, %v3726
        %v3728 = vpop.f32.mrf.mxu0
        %v3729 = vadd.f32 %v3567, %v3728
        %3730 = vmatmul.bf16.gmra.mxu0 %v3538
        %v3731 = vpop.f32.mrf.mxu0
        %v3732 = vadd.f32 %v3567, %v3731
        %v3733 = vpop.f32.mrf.mxu0
        %v3734 = vadd.f32 %v3567, %v3733
        %3735 = vmatmul.bf16.gmra.mxu0 %v3539
        %v3736 = vpop.f32.mrf.mxu0
        %v3737 = vadd.f32 %v3567, %v3736
        %v3738 = vpop.f32.mrf.mxu0
        %v3739 = vadd.f32 %v3567, %v3738
        %3740 = vmatmul.bf16.gmra.mxu0 %v3540
        %v3741 = vpop.f32.mrf.mxu0
        %v3742 = vadd.f32 %v3567, %v3741
        %v3743 = vpop.f32.mrf.mxu0
        %v3744 = vadd.f32 %v3567, %v3743
        %3745 = vmatmul.bf16.gmra.mxu0 %v3541
        %v3746 = vpop.f32.mrf.mxu0
        %v3747 = vadd.f32 %v3567, %v3746
        %v3748 = vpop.f32.mrf.mxu0
        %v3749 = vadd.f32 %v3567, %v3748
        %3750 = vmatmul.bf16.gmra.mxu0 %v3542
        %v3751 = vpop.f32.mrf.mxu0
        %v3752 = vadd.f32 %v3567, %v3751
        %v3753 = vpop.f32.mrf.mxu0
        %v3754 = vadd.f32 %v3567, %v3753
        %3755 = vmatmul.bf16.gmra.mxu0 %v3543
        %v3756 = vpop.f32.mrf.mxu0
        %v3757 = vadd.f32 %v3567, %v3756
        %v3758 = vpop.f32.mrf.mxu0
        %v3759 = vadd.f32 %v3567, %v3758
        %3760 = vmatmul.bf16.gmra.mxu0 %v3544
        %v3761 = vpop.f32.mrf.mxu0
        %v3762 = vadd.f32 %v3567, %v3761
        %v3763 = vpop.f32.mrf.mxu0
        %v3764 = vadd.f32 %v3567, %v3763
        %3765 = vmatmul.bf16.gmra.mxu0 %v3545
        %v3766 = vpop.f32.mrf.mxu0
        %v3767 = vadd.f32 %v3567, %v3766
        %v3768 = vpop.f32.mrf.mxu0
        %v3769 = vadd.f32 %v3567, %v3768
        %3770 = vmatmul.bf16.gmra.mxu0 %v3546
        %v3771 = vpop.f32.mrf.mxu0
        %v3772 = vadd.f32 %v3567, %v3771
        %v3773 = vpop.f32.mrf.mxu0
        %v3774 = vadd.f32 %v3567, %v3773
        %3775 = vmatmul.bf16.gmra.mxu0 %v3547
        %v3776 = vpop.f32.mrf.mxu0
        %v3777 = vadd.f32 %v3567, %v3776
        %v3778 = vpop.f32.mrf.mxu0
        %v3779 = vadd.f32 %v3567, %v3778
        %3780 = vmatmul.bf16.gmra.mxu0 %v3548
        %v3781 = vpop.f32.mrf.mxu0
        %v3782 = vadd.f32 %v3567, %v3781
        %v3783 = vpop.f32.mrf.mxu0
        %v3784 = vadd.f32 %v3567, %v3783
        %3785 = vdwg.mxu0
        %vm3786 = vcmask 31744
        %3787 = vst.msk [vmem:[%s334] sm:$0xff] %vm3786, %v3627
        %3788 = vst.msk [vmem:[%s334 + $0x8] sm:$0xff] %vm3786, %v3629
        %3789 = vst.msk [vmem:[%s334 + $0x10] sm:$0xff] %vm3786, %v3632
        %3790 = vst.msk [vmem:[%s334 + $0x18] sm:$0xff] %vm3786, %v3634
        %3791 = vst.msk [vmem:[%s334 + $0x20] sm:$0xff] %vm3786, %v3637
        %3792 = vst.msk [vmem:[%s334 + $0x28] sm:$0xff] %vm3786, %v3639
        %3793 = vst.msk [vmem:[%s334 + $0x30] sm:$0xff] %vm3786, %v3642
        %3794 = vst.msk [vmem:[%s334 + $0x38] sm:$0xff] %vm3786, %v3644
        %3795 = vst.msk [vmem:[%s334 + $0x40] sm:$0xff] %vm3786, %v3647
        %3796 = vst.msk [vmem:[%s334 + $0x48] sm:$0xff] %vm3786, %v3649
        %3797 = vst.msk [vmem:[%s334 + $0x50] sm:$0xff] %vm3786, %v3652
        %3798 = vst.msk [vmem:[%s334 + $0x58] sm:$0xff] %vm3786, %v3654
        %3799 = vst.msk [vmem:[%s334 + $0x60] sm:$0xff] %vm3786, %v3657
        %3800 = vst.msk [vmem:[%s334 + $0x68] sm:$0xff] %vm3786, %v3659
        %3801 = vst.msk [vmem:[%s334 + $0x70] sm:$0xff] %vm3786, %v3662
        %3802 = vst.msk [vmem:[%s334 + $0x78] sm:$0xff] %vm3786, %v3664
        %3803 = vst.msk [vmem:[%s334 + $0x80] sm:$0xff] %vm3786, %v3667
        %3804 = vst.msk [vmem:[%s334 + $0x88] sm:$0xff] %vm3786, %v3669
        %3805 = vst.msk [vmem:[%s334 + $0x90] sm:$0xff] %vm3786, %v3672
        %3806 = vst.msk [vmem:[%s334 + $0x98] sm:$0xff] %vm3786, %v3674
        %3807 = vst.msk [vmem:[%s334 + $0xa0] sm:$0xff] %vm3786, %v3677
        %3808 = vst.msk [vmem:[%s334 + $0xa8] sm:$0xff] %vm3786, %v3679
        %3809 = vst.msk [vmem:[%s334 + $0xb0] sm:$0xff] %vm3786, %v3682
        %3810 = vst.msk [vmem:[%s334 + $0xb8] sm:$0xff] %vm3786, %v3684
        %3811 = vst.msk [vmem:[%s334 + $0xc0] sm:$0xff] %vm3786, %v3687
        %3812 = vst.msk [vmem:[%s334 + $0xc8] sm:$0xff] %vm3786, %v3689
        %3813 = vst.msk [vmem:[%s334 + $0xd0] sm:$0xff] %vm3786, %v3692
        %3814 = vst.msk [vmem:[%s334 + $0xd8] sm:$0xff] %vm3786, %v3694
        %3815 = vst.msk [vmem:[%s334 + $0xe0] sm:$0xff] %vm3786, %v3697
        %3816 = vst.msk [vmem:[%s334 + $0xe8] sm:$0xff] %vm3786, %v3699
        %3817 = vst.msk [vmem:[%s334 + $0xf0] sm:$0xff] %vm3786, %v3702
        %3818 = vst.msk [vmem:[%s334 + $0xf8] sm:$0xff] %vm3786, %v3704
        %3819 = vst.msk [vmem:[%s334 + $0x100] sm:$0xff] %vm3786, %v3707
        %3820 = vst.msk [vmem:[%s334 + $0x108] sm:$0xff] %vm3786, %v3709
        %3821 = vst.msk [vmem:[%s334 + $0x110] sm:$0xff] %vm3786, %v3712
        %3822 = vst.msk [vmem:[%s334 + $0x118] sm:$0xff] %vm3786, %v3714
        %3823 = vst.msk [vmem:[%s334 + $0x120] sm:$0xff] %vm3786, %v3717
        %3824 = vst.msk [vmem:[%s334 + $0x128] sm:$0xff] %vm3786, %v3719
        %3825 = vst.msk [vmem:[%s334 + $0x130] sm:$0xff] %vm3786, %v3722
        %3826 = vst.msk [vmem:[%s334 + $0x138] sm:$0xff] %vm3786, %v3724
        %3827 = vst.msk [vmem:[%s334 + $0x140] sm:$0xff] %vm3786, %v3727
        %3828 = vst.msk [vmem:[%s334 + $0x148] sm:$0xff] %vm3786, %v3729
        %3829 = vst.msk [vmem:[%s334 + $0x150] sm:$0xff] %vm3786, %v3732
        %3830 = vst.msk [vmem:[%s334 + $0x158] sm:$0xff] %vm3786, %v3734
        %3831 = vst.msk [vmem:[%s334 + $0x160] sm:$0xff] %vm3786, %v3737
        %3832 = vst.msk [vmem:[%s334 + $0x168] sm:$0xff] %vm3786, %v3739
        %3833 = vst.msk [vmem:[%s334 + $0x170] sm:$0xff] %vm3786, %v3742
        %3834 = vst.msk [vmem:[%s334 + $0x178] sm:$0xff] %vm3786, %v3744
        %3835 = vst.msk [vmem:[%s334 + $0x180] sm:$0xff] %vm3786, %v3747
        %3836 = vst.msk [vmem:[%s334 + $0x188] sm:$0xff] %vm3786, %v3749
        %3837 = vst.msk [vmem:[%s334 + $0x190] sm:$0xff] %vm3786, %v3752
        %3838 = vst.msk [vmem:[%s334 + $0x198] sm:$0xff] %vm3786, %v3754
        %3839 = vst.msk [vmem:[%s334 + $0x1a0] sm:$0xff] %vm3786, %v3757
        %3840 = vst.msk [vmem:[%s334 + $0x1a8] sm:$0xff] %vm3786, %v3759
        %3841 = vst.msk [vmem:[%s334 + $0x1b0] sm:$0xff] %vm3786, %v3762
        %3842 = vst.msk [vmem:[%s334 + $0x1b8] sm:$0xff] %vm3786, %v3764
        %3843 = vst.msk [vmem:[%s334 + $0x1c0] sm:$0xff] %vm3786, %v3767
        %3844 = vst.msk [vmem:[%s334 + $0x1c8] sm:$0xff] %vm3786, %v3769
        %3845 = vst.msk [vmem:[%s334 + $0x1d0] sm:$0xff] %vm3786, %v3772
        %3846 = vst.msk [vmem:[%s334 + $0x1d8] sm:$0xff] %vm3786, %v3774
        %3847 = vst.msk [vmem:[%s334 + $0x1e0] sm:$0xff] %vm3786, %v3777
        %3848 = vst.msk [vmem:[%s334 + $0x1e8] sm:$0xff] %vm3786, %v3779
        %3849 = vst.msk [vmem:[%s334 + $0x1f0] sm:$0xff] %vm3786, %v3782
        %3850 = vst.msk [vmem:[%s334 + $0x1f8] sm:$0xff] %vm3786, %v3784
        %s3851 = sand.u32 %s222, 1
        %s3852 = sand.u32 %s222, 1
        %s3853 = smul.addr %s3852, 512
        %s3854 = scalar_lea.vmem [#allocation2], %s3853
        // Predicated region
        $region57: #{tpu_custom_call.1} parent=55 // pred_check
          %p3855 = pneg %p232
        $region58: #{tpu_custom_call.1} parent=55 // pred_check_branch
          %3857 = sbr.rel (%p3855) target = $region60
        $region59: #{tpu_custom_call.1} parent=55 // pred_region
          %s3858 = smul.u32 64, %s20
          %s3859 = ssub.s32 250, %s3858
          %p3860 = scmp.lt.s32.totalorder %s3859, 64
          %s3861 = scalar_select %p3860, %s3859, 64
          %s3862 = smul.u32 8, %s3861
          %p3863 = scmp.ne.s32.totalorder 0, %s3862
          %s3864 = smul.addr %s3858, 8
          %s3865 = scalar_lea.vmem %s9, %s3864
          // Predicated region
          $region61: #{tpu_custom_call.1} parent=59 // pred_check
            %p3866 = pneg %p3863
          $region62: #{tpu_custom_call.1} parent=59 // pred_check_branch
            %3868 = sbr.rel (%p3866) target = $region64
          $region63: #{tpu_custom_call.1} parent=59 // pred_region
            // Predicated region
            $region65: #{tpu_custom_call.1} parent=63 // pred_check
              _
            $region66: #{tpu_custom_call.1} parent=63 // pred_check_branch
              %3870 = sbr.rel (0) target = $region68
            $region67: #{tpu_custom_call.1} parent=63 // pred_region
              // Predicated region
              $region87: #{tpu_custom_call.1} parent=67 // pred_check
                _
              $region88: #{tpu_custom_call.1} parent=67 // pred_check_branch
                %3982 = sbr.rel (0) target = $region90
              $region89: #{tpu_custom_call.1} parent=67 // pred_region
                %s3983 = sshrl.u32 %s3861, 5
                // While loop
                $region91: #{tpu_custom_call.1} parent=89 // loop_pre_header
                  _
                $region92: #{tpu_custom_call.1} parent=89 // loop_header
                  %s3985 = sphi 0, %s3987
                  %p3986 = scmp.ge.s32.totalorder %s3985, %s3983
                  %s3990 = sphi 0, %s4059
                  %s3991 = sphi %s3854, %s4062
                  %s3992 = sphi %s3865, %s4063
                $region93: #{tpu_custom_call.1} parent=89 // loop_header_branch
                  %3989 = sbr.rel (%p3986) target = $region97
                $region94: #{tpu_custom_call.1} parent=89 // loop_body
                  %v3993 = vld [vmem:[%s3991] sm:$0xff]
                  %3994 = vst [vmem:[%s3992] sm:$0xff] %v3993
                  %v3995 = vld [vmem:[%s3991 + $0x8] sm:$0xff]
                  %3996 = vst [vmem:[%s3992 + $0x8] sm:$0xff] %v3995
                  %v3997 = vld [vmem:[%s3991 + $0x10] sm:$0xff]
                  %3998 = vst [vmem:[%s3992 + $0x10] sm:$0xff] %v3997
                  %v3999 = vld [vmem:[%s3991 + $0x18] sm:$0xff]
                  %4000 = vst [vmem:[%s3992 + $0x18] sm:$0xff] %v3999
                  %v4001 = vld [vmem:[%s3991 + $0x20] sm:$0xff]
                  %4002 = vst [vmem:[%s3992 + $0x20] sm:$0xff] %v4001
                  %v4003 = vld [vmem:[%s3991 + $0x28] sm:$0xff]
                  %4004 = vst [vmem:[%s3992 + $0x28] sm:$0xff] %v4003
                  %v4005 = vld [vmem:[%s3991 + $0x30] sm:$0xff]
                  %4006 = vst [vmem:[%s3992 + $0x30] sm:$0xff] %v4005
                  %v4007 = vld [vmem:[%s3991 + $0x38] sm:$0xff]
                  %4008 = vst [vmem:[%s3992 + $0x38] sm:$0xff] %v4007
                  %v4009 = vld [vmem:[%s3991 + $0x40] sm:$0xff]
                  %4010 = vst [vmem:[%s3992 + $0x40] sm:$0xff] %v4009
                  %v4011 = vld [vmem:[%s3991 + $0x48] sm:$0xff]
                  %4012 = vst [vmem:[%s3992 + $0x48] sm:$0xff] %v4011
                  %v4013 = vld [vmem:[%s3991 + $0x50] sm:$0xff]
                  %4014 = vst [vmem:[%s3992 + $0x50] sm:$0xff] %v4013
                  %v4015 = vld [vmem:[%s3991 + $0x58] sm:$0xff]
                  %4016 = vst [vmem:[%s3992 + $0x58] sm:$0xff] %v4015
                  %v4017 = vld [vmem:[%s3991 + $0x60] sm:$0xff]
                  %4018 = vst [vmem:[%s3992 + $0x60] sm:$0xff] %v4017
                  %v4019 = vld [vmem:[%s3991 + $0x68] sm:$0xff]
                  %4020 = vst [vmem:[%s3992 + $0x68] sm:$0xff] %v4019
                  %v4021 = vld [vmem:[%s3991 + $0x70] sm:$0xff]
                  %4022 = vst [vmem:[%s3992 + $0x70] sm:$0xff] %v4021
                  %v4023 = vld [vmem:[%s3991 + $0x78] sm:$0xff]
                  %4024 = vst [vmem:[%s3992 + $0x78] sm:$0xff] %v4023
                  %v4025 = vld [vmem:[%s3991 + $0x80] sm:$0xff]
                  %4026 = vst [vmem:[%s3992 + $0x80] sm:$0xff] %v4025
                  %v4027 = vld [vmem:[%s3991 + $0x88] sm:$0xff]
                  %4028 = vst [vmem:[%s3992 + $0x88] sm:$0xff] %v4027
                  %v4029 = vld [vmem:[%s3991 + $0x90] sm:$0xff]
                  %4030 = vst [vmem:[%s3992 + $0x90] sm:$0xff] %v4029
                  %v4031 = vld [vmem:[%s3991 + $0x98] sm:$0xff]
                  %4032 = vst [vmem:[%s3992 + $0x98] sm:$0xff] %v4031
                  %v4033 = vld [vmem:[%s3991 + $0xa0] sm:$0xff]
                  %4034 = vst [vmem:[%s3992 + $0xa0] sm:$0xff] %v4033
                  %v4035 = vld [vmem:[%s3991 + $0xa8] sm:$0xff]
                  %4036 = vst [vmem:[%s3992 + $0xa8] sm:$0xff] %v4035
                  %v4037 = vld [vmem:[%s3991 + $0xb0] sm:$0xff]
                  %4038 = vst [vmem:[%s3992 + $0xb0] sm:$0xff] %v4037
                  %v4039 = vld [vmem:[%s3991 + $0xb8] sm:$0xff]
                  %4040 = vst [vmem:[%s3992 + $0xb8] sm:$0xff] %v4039
                  %v4041 = vld [vmem:[%s3991 + $0xc0] sm:$0xff]
                  %4042 = vst [vmem:[%s3992 + $0xc0] sm:$0xff] %v4041
                  %v4043 = vld [vmem:[%s3991 + $0xc8] sm:$0xff]
                  %4044 = vst [vmem:[%s3992 + $0xc8] sm:$0xff] %v4043
                  %v4045 = vld [vmem:[%s3991 + $0xd0] sm:$0xff]
                  %4046 = vst [vmem:[%s3992 + $0xd0] sm:$0xff] %v4045
                  %v4047 = vld [vmem:[%s3991 + $0xd8] sm:$0xff]
                  %4048 = vst [vmem:[%s3992 + $0xd8] sm:$0xff] %v4047
                  %v4049 = vld [vmem:[%s3991 + $0xe0] sm:$0xff]
                  %4050 = vst [vmem:[%s3992 + $0xe0] sm:$0xff] %v4049
                  %v4051 = vld [vmem:[%s3991 + $0xe8] sm:$0xff]
                  %4052 = vst [vmem:[%s3992 + $0xe8] sm:$0xff] %v4051
                  %v4053 = vld [vmem:[%s3991 + $0xf0] sm:$0xff]
                  %4054 = vst [vmem:[%s3992 + $0xf0] sm:$0xff] %v4053
                  %v4055 = vld [vmem:[%s3991 + $0xf8] sm:$0xff]
                  %4056 = vst [vmem:[%s3992 + $0xf8] sm:$0xff] %v4055
                  %s4057 = sadd.s32 1, %s3990
                  %p4058 = scmp.ge.s32.totalorder %s4057, %s3983
                  %s4059 = scalar_select %p4058, 0, %s4057
                  %s4060 = smul.u32 %s4059, 256
                  %s4061 = smul.u32 %s4059, 256
                  %s4062 = scalar_lea.vmem %s3854, %s4060 [#allocation2]
                  %s4063 = scalar_lea.vmem %s3865, %s4061
                $region95: #{tpu_custom_call.1} parent=89 // loop_footer
                  %s3987 = sadd.s32 %s3985, 1
                $region96: #{tpu_custom_call.1} parent=89 // loop_footer_branch
                  %3984 = sbr.rel target = $region92
                $region97: #{tpu_custom_call.1} parent=89 // loop_exit
                  _
                %s4064 = sshrl.u32 %s3861, 5
                %s4065 = sand.u32 %s3861, 31
                %s4066 = smul.u32 %s4064, 32
                %s4067 = smul.u32 8, %s4066
                %s4068 = scalar_lea.vmem %s3854, %s4067 [#allocation2]
                %s4069 = smul.u32 8, %s4066
                %s4070 = scalar_lea.vmem %s3865, %s4069
                // While loop
                $region98: #{tpu_custom_call.1} parent=89 // loop_pre_header
                  _
                $region99: #{tpu_custom_call.1} parent=89 // loop_header
                  %s4072 = sphi 0, %s4074
                  %p4073 = scmp.ge.s32.totalorder %s4072, %s4065
                  %s4077 = sphi 0, %s4084
                  %s4078 = sphi %s4068, %s4087
                  %s4079 = sphi %s4070, %s4088
                $region100: #{tpu_custom_call.1} parent=89 // loop_header_branch
                  %4076 = sbr.rel (%p4073) target = $region104
                $region101: #{tpu_custom_call.1} parent=89 // loop_body
                  %v4080 = vld [vmem:[%s4078] sm:$0xff]
                  %4081 = vst [vmem:[%s4079] sm:$0xff] %v4080
                  %s4082 = sadd.s32 1, %s4077
                  %p4083 = scmp.ge.s32.totalorder %s4082, %s4065
                  %s4084 = scalar_select %p4083, 0, %s4082
                  %s4085 = smul.u32 %s4084, 8
                  %s4086 = smul.u32 %s4084, 8
                  %s4087 = scalar_lea.vmem %s4068, %s4085 [#allocation2]
                  %s4088 = scalar_lea.vmem %s4070, %s4086
                $region102: #{tpu_custom_call.1} parent=89 // loop_footer
                  %s4074 = sadd.s32 %s4072, 1
                $region103: #{tpu_custom_call.1} parent=89 // loop_footer_branch
                  %4071 = sbr.rel target = $region99
                $region104: #{tpu_custom_call.1} parent=89 // loop_exit
                  _
              $region90: #{tpu_custom_call.1} parent=67 // pred_fallthru
                _
              // Predicated region
              $region105: #{tpu_custom_call.1} parent=67 // pred_check
                _
              $region106: #{tpu_custom_call.1} parent=67 // pred_check_branch
                %4090 = sbr.rel target = $region108
              $region107: #{tpu_custom_call.1} parent=67 // pred_region
                _
              $region108: #{tpu_custom_call.1} parent=67 // pred_fallthru
                _
            $region68: #{tpu_custom_call.1} parent=63 // pred_fallthru
              _
            // Predicated region
            $region69: #{tpu_custom_call.1} parent=63 // pred_check
              _
            $region70: #{tpu_custom_call.1} parent=63 // pred_check_branch
              %3872 = sbr.rel target = $region72
            $region71: #{tpu_custom_call.1} parent=63 // pred_region
              %s3874 = ssub.s32 256, 1
              %s3875 = sshrl.u32 %s3861, 5
              // While loop
              $region73: #{tpu_custom_call.1} parent=71 // loop_pre_header
                _
              $region74: #{tpu_custom_call.1} parent=71 // loop_header
                %s3877 = sphi 0, %s3879
                %p3878 = scmp.ge.s32.totalorder %s3877, %s3875
                %s3882 = sphi 0, %s3951
                %s3883 = sphi %s3854, %s3954
                %s3884 = sphi %s3865, %s3955
              $region75: #{tpu_custom_call.1} parent=71 // loop_header_branch
                %3881 = sbr.rel (%p3878) target = $region79
              $region76: #{tpu_custom_call.1} parent=71 // loop_body
                %v3885 = vld [vmem:[%s3883] sm:%s3874]
                %3886 = vst [vmem:[%s3884] sm:%s3874] %v3885
                %v3887 = vld [vmem:[%s3883 + $0x8] sm:%s3874]
                %3888 = vst [vmem:[%s3884 + $0x8] sm:%s3874] %v3887
                %v3889 = vld [vmem:[%s3883 + $0x10] sm:%s3874]
                %3890 = vst [vmem:[%s3884 + $0x10] sm:%s3874] %v3889
                %v3891 = vld [vmem:[%s3883 + $0x18] sm:%s3874]
                %3892 = vst [vmem:[%s3884 + $0x18] sm:%s3874] %v3891
                %v3893 = vld [vmem:[%s3883 + $0x20] sm:%s3874]
                %3894 = vst [vmem:[%s3884 + $0x20] sm:%s3874] %v3893
                %v3895 = vld [vmem:[%s3883 + $0x28] sm:%s3874]
                %3896 = vst [vmem:[%s3884 + $0x28] sm:%s3874] %v3895
                %v3897 = vld [vmem:[%s3883 + $0x30] sm:%s3874]
                %3898 = vst [vmem:[%s3884 + $0x30] sm:%s3874] %v3897
                %v3899 = vld [vmem:[%s3883 + $0x38] sm:%s3874]
                %3900 = vst [vmem:[%s3884 + $0x38] sm:%s3874] %v3899
                %v3901 = vld [vmem:[%s3883 + $0x40] sm:%s3874]
                %3902 = vst [vmem:[%s3884 + $0x40] sm:%s3874] %v3901
                %v3903 = vld [vmem:[%s3883 + $0x48] sm:%s3874]
                %3904 = vst [vmem:[%s3884 + $0x48] sm:%s3874] %v3903
                %v3905 = vld [vmem:[%s3883 + $0x50] sm:%s3874]
                %3906 = vst [vmem:[%s3884 + $0x50] sm:%s3874] %v3905
                %v3907 = vld [vmem:[%s3883 + $0x58] sm:%s3874]
                %3908 = vst [vmem:[%s3884 + $0x58] sm:%s3874] %v3907
                %v3909 = vld [vmem:[%s3883 + $0x60] sm:%s3874]
                %3910 = vst [vmem:[%s3884 + $0x60] sm:%s3874] %v3909
                %v3911 = vld [vmem:[%s3883 + $0x68] sm:%s3874]
                %3912 = vst [vmem:[%s3884 + $0x68] sm:%s3874] %v3911
                %v3913 = vld [vmem:[%s3883 + $0x70] sm:%s3874]
                %3914 = vst [vmem:[%s3884 + $0x70] sm:%s3874] %v3913
                %v3915 = vld [vmem:[%s3883 + $0x78] sm:%s3874]
                %3916 = vst [vmem:[%s3884 + $0x78] sm:%s3874] %v3915
                %v3917 = vld [vmem:[%s3883 + $0x80] sm:%s3874]
                %3918 = vst [vmem:[%s3884 + $0x80] sm:%s3874] %v3917
                %v3919 = vld [vmem:[%s3883 + $0x88] sm:%s3874]
                %3920 = vst [vmem:[%s3884 + $0x88] sm:%s3874] %v3919
                %v3921 = vld [vmem:[%s3883 + $0x90] sm:%s3874]
                %3922 = vst [vmem:[%s3884 + $0x90] sm:%s3874] %v3921
                %v3923 = vld [vmem:[%s3883 + $0x98] sm:%s3874]
                %3924 = vst [vmem:[%s3884 + $0x98] sm:%s3874] %v3923
                %v3925 = vld [vmem:[%s3883 + $0xa0] sm:%s3874]
                %3926 = vst [vmem:[%s3884 + $0xa0] sm:%s3874] %v3925
                %v3927 = vld [vmem:[%s3883 + $0xa8] sm:%s3874]
                %3928 = vst [vmem:[%s3884 + $0xa8] sm:%s3874] %v3927
                %v3929 = vld [vmem:[%s3883 + $0xb0] sm:%s3874]
                %3930 = vst [vmem:[%s3884 + $0xb0] sm:%s3874] %v3929
                %v3931 = vld [vmem:[%s3883 + $0xb8] sm:%s3874]
                %3932 = vst [vmem:[%s3884 + $0xb8] sm:%s3874] %v3931
                %v3933 = vld [vmem:[%s3883 + $0xc0] sm:%s3874]
                %3934 = vst [vmem:[%s3884 + $0xc0] sm:%s3874] %v3933
                %v3935 = vld [vmem:[%s3883 + $0xc8] sm:%s3874]
                %3936 = vst [vmem:[%s3884 + $0xc8] sm:%s3874] %v3935
                %v3937 = vld [vmem:[%s3883 + $0xd0] sm:%s3874]
                %3938 = vst [vmem:[%s3884 + $0xd0] sm:%s3874] %v3937
                %v3939 = vld [vmem:[%s3883 + $0xd8] sm:%s3874]
                %3940 = vst [vmem:[%s3884 + $0xd8] sm:%s3874] %v3939
                %v3941 = vld [vmem:[%s3883 + $0xe0] sm:%s3874]
                %3942 = vst [vmem:[%s3884 + $0xe0] sm:%s3874] %v3941
                %v3943 = vld [vmem:[%s3883 + $0xe8] sm:%s3874]
                %3944 = vst [vmem:[%s3884 + $0xe8] sm:%s3874] %v3943
                %v3945 = vld [vmem:[%s3883 + $0xf0] sm:%s3874]
                %3946 = vst [vmem:[%s3884 + $0xf0] sm:%s3874] %v3945
                %v3947 = vld [vmem:[%s3883 + $0xf8] sm:%s3874]
                %3948 = vst [vmem:[%s3884 + $0xf8] sm:%s3874] %v3947
                %s3949 = sadd.s32 1, %s3882
                %p3950 = scmp.ge.s32.totalorder %s3949, %s3875
                %s3951 = scalar_select %p3950, 0, %s3949
                %s3952 = smul.u32 %s3951, 256
                %s3953 = smul.u32 %s3951, 256
                %s3954 = scalar_lea.vmem %s3854, %s3952 [#allocation2]
                %s3955 = scalar_lea.vmem %s3865, %s3953
              $region77: #{tpu_custom_call.1} parent=71 // loop_footer
                %s3879 = sadd.s32 %s3877, 1
              $region78: #{tpu_custom_call.1} parent=71 // loop_footer_branch
                %3876 = sbr.rel target = $region74
              $region79: #{tpu_custom_call.1} parent=71 // loop_exit
                _
              %s3956 = sshrl.u32 %s3861, 5
              %s3957 = sand.u32 %s3861, 31
              %s3958 = smul.u32 %s3956, 32
              %s3959 = smul.u32 8, %s3958
              %s3960 = scalar_lea.vmem %s3854, %s3959 [#allocation2]
              %s3961 = smul.u32 8, %s3958
              %s3962 = scalar_lea.vmem %s3865, %s3961
              // While loop
              $region80: #{tpu_custom_call.1} parent=71 // loop_pre_header
                _
              $region81: #{tpu_custom_call.1} parent=71 // loop_header
                %s3964 = sphi 0, %s3966
                %p3965 = scmp.ge.s32.totalorder %s3964, %s3957
                %s3969 = sphi 0, %s3976
                %s3970 = sphi %s3960, %s3979
                %s3971 = sphi %s3962, %s3980
              $region82: #{tpu_custom_call.1} parent=71 // loop_header_branch
                %3968 = sbr.rel (%p3965) target = $region86
              $region83: #{tpu_custom_call.1} parent=71 // loop_body
                %v3972 = vld [vmem:[%s3970] sm:%s3874]
                %3973 = vst [vmem:[%s3971] sm:%s3874] %v3972
                %s3974 = sadd.s32 1, %s3969
                %p3975 = scmp.ge.s32.totalorder %s3974, %s3957
                %s3976 = scalar_select %p3975, 0, %s3974
                %s3977 = smul.u32 %s3976, 8
                %s3978 = smul.u32 %s3976, 8
                %s3979 = scalar_lea.vmem %s3960, %s3977 [#allocation2]
                %s3980 = scalar_lea.vmem %s3962, %s3978
              $region84: #{tpu_custom_call.1} parent=71 // loop_footer
                %s3966 = sadd.s32 %s3964, 1
              $region85: #{tpu_custom_call.1} parent=71 // loop_footer_branch
                %3963 = sbr.rel target = $region81
              $region86: #{tpu_custom_call.1} parent=71 // loop_exit
                _
            $region72: #{tpu_custom_call.1} parent=63 // pred_fallthru
              _
          $region64: #{tpu_custom_call.1} parent=59 // pred_fallthru
            _
          %4091 = vnop
        $region60: #{tpu_custom_call.1} parent=55 // pred_fallthru
          _
      $region56: #{tpu_custom_call.1} parent=5 // pred_fallthru
        _
      %p4092 = scmp.le.s32.totalorder 2, %s15
      // Predicated region
      $region109: #{tpu_custom_call.1} parent=5 // pred_check
        %p4093 = pneg %p4092
      $region110: #{tpu_custom_call.1} parent=5 // pred_check_branch
        %4095 = sbr.rel (%p4093) target = $region112
      $region111: #{tpu_custom_call.1} parent=5 // pred_region
        %s4096 = ssub.s32 %s15, 2
        // Predicated region
        $region113: #{tpu_custom_call.1} parent=111 // pred_check
          %p4097 = pneg %p238
        $region114: #{tpu_custom_call.1} parent=111 // pred_check_branch
          %4099 = sbr.rel (%p4097) target = $region116
        $region115: #{tpu_custom_call.1} parent=111 // pred_region
          %s4100 = sand.u32 %s223, 1
          %s4101 = sand.u32 %s223, 1
          %s4102 = smul.addr %s4101, 512
          %s4103 = scalar_lea.vmem [#allocation2], %s4102
        $region116: #{tpu_custom_call.1} parent=111 // pred_fallthru
          _
      $region112: #{tpu_custom_call.1} parent=5 // pred_fallthru
        _
    $region6: #{tpu_custom_call.1} parent=1 // loop_footer
      %s19 = sadd.s32 1, %s15
    $region7: #{tpu_custom_call.1} parent=1 // loop_footer_branch
      %14 = sbr.rel target = $region3
    $region8: #{tpu_custom_call.1} parent=1 // loop_exit
      _

</llo_original>
